<compile_context>
chip_gen: v7x
topology: tpu7x:2x2x1
jax: 0.10.0
libtpu: 0.0.40
codegen_flags: <defaults>
</compile_context>

<pallas_src>
import math
import jax
import jax.numpy as jnp
from jax.experimental import pallas as pl
from jax.experimental.pallas import tpu as pltpu

# ----------------------------- config ---------------------------------------
N = 2          # batch
L = 8          # sequence length
D = 32         # in_dim
KD = 32        # key_dim (defaults to in_dim)
H = 8          # n_heads
K = KD // H    # per-head dim
HID = 64       # hidden_dim (must be > in_dim)
EPS = 1e-5
INV_SQRT_K = 1.0 / math.sqrt(K)


def _layer_norm(y, gamma, beta):
    # Single pass over y: mean and E[y^2] share the cross-lane reduction stage.
    mu = jnp.mean(y, axis=-1, keepdims=True)
    mu2 = jnp.mean(y * y, axis=-1, keepdims=True)
    var = mu2 - mu * mu
    return (y - mu) * jax.lax.rsqrt(var + EPS) * gamma + beta


def transformer_block_kernel(
    x_ref,        # (B, L, D)   batch block
    wqkv_ref,     # (D, 3*KD)   fused q/k/v projection (no bias)
    wo_ref,       # (KD, D)     output projection
    w1_ref,       # (D, HID)    FFN up
    b1_ref,       # (1, HID)
    w2_ref,       # (HID, D)    FFN down
    vecs_ref,     # (6, D) rows: [bo, g1, be1, g2, be2, b2]
    o_ref,        # (B, L, D)
):
    B = x_ref.shape[0]                       # static block batch size
    x = x_ref[...].reshape(B * L, D)         # batch-flattened for matmuls

    # ---- fused QKV projection: one MXU op instead of three ----
    qkv = jnp.dot(x, wqkv_ref[...], preferred_element_type=jnp.float32)  # (B*L, 3*KD)
    q = qkv[:, 0 * KD:1 * KD]
    k = qkv[:, 1 * KD:2 * KD]
    v = qkv[:, 2 * KD:3 * KD]

    # ---- multi-head attention (mask=None), all heads in one batched dot ----
    def split_heads(t):   # (B*L, KD) -> (B*H, L, K)
        return t.reshape(B, L, H, K).transpose(0, 2, 1, 3).reshape(B * H, L, K)

    qh, kh, vh = split_heads(q), split_heads(k), split_heads(v)
    s = jnp.einsum('nlk,nmk->nlm', qh, kh,
                   preferred_element_type=jnp.float32) * INV_SQRT_K   # (B*H, L, L)
    s = s - jnp.max(s, axis=-1, keepdims=True)
    p = jnp.exp(s)
    p = p * pl.reciprocal(jnp.sum(p, axis=-1, keepdims=True))         # exact recip
    att = jnp.einsum('nlm,nmk->nlk', p, vh,
                     preferred_element_type=jnp.float32)              # (B*H, L, K)
    att = att.reshape(B, H, L, K).transpose(0, 2, 1, 3).reshape(B * L, KD)

    attn = jnp.dot(att, wo_ref[...],
                   preferred_element_type=jnp.float32) + vecs_ref[0:1, :]  # + bo

    # TODO(synk): nn.Dropout layers implemented as identity (eval mode).
    h1 = _layer_norm(x + attn, vecs_ref[1:2, :], vecs_ref[2:3, :])    # a_norm

    # ---- feed-forward ----
    z = jnp.dot(h1, w1_ref[...], preferred_element_type=jnp.float32) + b1_ref[...]
    z = jnp.maximum(z, 0.0)                                           # ReLU
    h2 = jnp.dot(z, w2_ref[...], preferred_element_type=jnp.float32) + vecs_ref[5:6, :]

    out = _layer_norm(h1 + h2, vecs_ref[3:4, :], vecs_ref[4:5, :])    # l_norm
    o_ref[...] = out.reshape(B, L, D).astype(o_ref.dtype)


def _batch_block_for_device(n):
    """Grid strategy per chip: collapse on single-TC v5e/v6e, keep per-batch
    grid on dual-TC v7x so the batch is split across the two TensorCores."""
    try:
        kind = jax.devices()[0].device_kind.lower()
    except Exception:
        kind = ""
    if "v7" in kind or "7x" in kind:
        return 1
    return n


def transformer_block(x, params, batch_block=None):
    (wq, wk, wv, wo, bo, w1, b1, w2, b2, g1, be1, g2, be2) = params
    n, l, d = x.shape
    if batch_block is None:
        batch_block = _batch_block_for_device(n)
    assert n % batch_block == 0

    # ---- pack small inputs once in the wrapper (fewer BlockSpecs / DMAs) ----
    wqkv = jnp.concatenate([wq, wk, wv], axis=1)                   # (D, 3*KD)
    vecs = jnp.concatenate([bo, g1, be1, g2, be2, b2], axis=0)     # (6, D)

    full = lambda a: pl.BlockSpec(a.shape, lambda i: (0,) * a.ndim)
    grid = (n // batch_block,)
    return pl.pallas_call(
        transformer_block_kernel,
        out_shape=jax.ShapeDtypeStruct((n, l, d), x.dtype),
        grid_spec=pltpu.PrefetchScalarGridSpec(
            num_scalar_prefetch=0,
            grid=grid,
            in_specs=[
                pl.BlockSpec((batch_block, l, d), lambda i: (i, 0, 0)),
                full(wqkv), full(wo), full(w1), full(b1), full(w2), full(vecs),
            ],
            out_specs=pl.BlockSpec((batch_block, l, d), lambda i: (i, 0, 0)),
        ),
        compiler_params=pltpu.CompilerParams(
            dimension_semantics=("parallel",)),
    )(x, wqkv, wo, w1, b1, w2, vecs)


# ------------------------- pure-JAX reference --------------------------------
def reference(x, params):
    (wq, wk, wv, wo, bo, w1, b1, w2, b2, g1, be1, g2, be2) = params
    n, l, d = x.shape

    def ln(y, g, b):
        mu = jnp.mean(y, axis=-1, keepdims=True)
        var = jnp.mean((y - mu) ** 2, axis=-1, keepdims=True)
        return (y - mu) / jnp.sqrt(var + EPS) * g + b

    q = x @ wq
    k = x @ wk
    v = x @ wv
    split = lambda t: t.reshape(n, l, H, K).transpose(0, 2, 1, 3)
    qh, kh, vh = split(q), split(k), split(v)              # (n, H, l, K)
    a = jnp.einsum("nhlk,nhmk->nhlm", qh, kh) * INV_SQRT_K
    w = jax.nn.softmax(a, axis=-1)
    att = jnp.einsum("nhlm,nhmk->nhlk", w, vh)             # (n, H, l, K)
    att = att.transpose(0, 2, 1, 3).reshape(n, l, H * K)
    att = att @ wo + bo[0]
    h1 = ln(x + att, g1[0], be1[0])
    h2 = jnp.maximum(h1 @ w1 + b1[0], 0.0) @ w2 + b2[0]
    return ln(h1 + h2, g2[0], be2[0])


# ------------------------------- main ----------------------------------------
if __name__ == "__main__":
    key = jax.random.PRNGKey(0)
    ks = jax.random.split(key, 16)

    x = jax.random.normal(ks[0], (N, L, D), dtype=jnp.float32)

    wq = jax.random.normal(ks[1], (D, KD), dtype=jnp.float32) * 0.1
    wk = jax.random.normal(ks[2], (D, KD), dtype=jnp.float32) * 0.1
    wv = jax.random.normal(ks[3], (D, KD), dtype=jnp.float32) * 0.1
    wo = jax.random.normal(ks[4], (KD, D), dtype=jnp.float32) * 0.1
    bo = jax.random.normal(ks[5], (1, D), dtype=jnp.float32) * 0.1
    w1 = jax.random.normal(ks[6], (D, HID), dtype=jnp.float32) * 0.1
    b1 = jax.random.normal(ks[7], (1, HID), dtype=jnp.float32) * 0.1
    w2 = jax.random.normal(ks[8], (HID, D), dtype=jnp.float32) * 0.1
    b2 = jax.random.normal(ks[9], (1, D), dtype=jnp.float32) * 0.1
    g1 = 1.0 + jax.random.normal(ks[10], (1, D), dtype=jnp.float32) * 0.05
    be1 = jax.random.normal(ks[11], (1, D), dtype=jnp.float32) * 0.05
    g2 = 1.0 + jax.random.normal(ks[12], (1, D), dtype=jnp.float32) * 0.05
    be2 = jax.random.normal(ks[13], (1, D), dtype=jnp.float32) * 0.05

    params = (wq, wk, wv, wo, bo, w1, b1, w2, b2, g1, be1, g2, be2)

    out = transformer_block(x, params)
    out = jax.block_until_ready(out)

    ref = reference(x, params)
    assert out.shape == (N, L, D)
    assert jnp.allclose(out, ref, atol=1e-4, rtol=1e-4), (
        f"max abs err {jnp.max(jnp.abs(out - ref))}")
    print("KERNEL_OK")
</pallas_src>

<mosaic_0001>
module attributes {stable_mosaic.version = 11 : i64} {
  func.func @transformer_block_kernel(%arg0: i32, %arg1: memref<2x8x32xf32, #tpu.memory_space<vmem>>, %arg2: memref<32x96xf32, #tpu.memory_space<vmem>>, %arg3: memref<32x32xf32, #tpu.memory_space<vmem>>, %arg4: memref<32x64xf32, #tpu.memory_space<vmem>>, %arg5: memref<1x64xf32, #tpu.memory_space<vmem>>, %arg6: memref<64x32xf32, #tpu.memory_space<vmem>>, %arg7: memref<6x32xf32, #tpu.memory_space<vmem>>, %arg8: memref<2x8x32xf32, #tpu.memory_space<vmem>>) attributes {dimension_semantics = [#tpu.dimension_semantics<parallel>], iteration_bounds = array<i64: 1>, scalar_prefetch = 0 : i64, scratch_operands = 0 : i64, tpu.core_type = #tpu.core_type<tc>, window_params = [{transform_indices = @transform_0, window_bounds = array<i64: 2, 8, 32>}, {pipeline_mode = #tpu.pipeline_mode<synchronous>, transform_indices = @transform_1, window_bounds = array<i64: 32, 96>}, {pipeline_mode = #tpu.pipeline_mode<synchronous>, transform_indices = @transform_2, window_bounds = array<i64: 32, 32>}, {pipeline_mode = #tpu.pipeline_mode<synchronous>, transform_indices = @transform_3, window_bounds = array<i64: 32, 64>}, {pipeline_mode = #tpu.pipeline_mode<synchronous>, transform_indices = @transform_4, window_bounds = array<i64: 1, 64>}, {pipeline_mode = #tpu.pipeline_mode<synchronous>, transform_indices = @transform_5, window_bounds = array<i64: 64, 32>}, {pipeline_mode = #tpu.pipeline_mode<synchronous>, transform_indices = @transform_6, window_bounds = array<i64: 6, 32>}, {transform_indices = @transform_7, window_bounds = array<i64: 2, 8, 32>}]} {
    %c0 = arith.constant 0 : index
    %c0_0 = arith.constant 0 : index
    %c0_1 = arith.constant 0 : index
    %0 = vector.load %arg1[%c0, %c0_0, %c0_1] : memref<2x8x32xf32, #tpu.memory_space<vmem>>, vector<2x8x32xf32>
    %1 = vector.shape_cast %0 : vector<2x8x32xf32> to vector<16x32xf32>
    %c0_2 = arith.constant 0 : index
    %c0_3 = arith.constant 0 : index
    %2 = vector.load %arg2[%c0_2, %c0_3] : memref<32x96xf32, #tpu.memory_space<vmem>>, vector<32x96xf32>
    %cst = arith.constant dense<0.000000e+00> : vector<16x96xf32>
    %3 = tpu.matmul %1, %2, %cst {dimension_numbers = #tpu.dot_dimension_numbers<[1], [0], [0], [1], [0, 0, 1, 1], [], []>} : vector<16x32xf32>, vector<32x96xf32>, vector<16x96xf32> -> vector<16x96xf32>
    %4 = vector.extract_strided_slice %3 {offsets = [0, 0], sizes = [16, 32], strides = [1, 1]} : vector<16x96xf32> to vector<16x32xf32>
    %5 = vector.extract_strided_slice %3 {offsets = [0, 32], sizes = [16, 32], strides = [1, 1]} : vector<16x96xf32> to vector<16x32xf32>
    %6 = vector.extract_strided_slice %3 {offsets = [0, 64], sizes = [16, 32], strides = [1, 1]} : vector<16x96xf32> to vector<16x32xf32>
    %7 = vector.shape_cast %4 : vector<16x32xf32> to vector<2x8x8x4xf32>
    %8 = tpu.transpose %7, [0, 2, 1, 3] : vector<2x8x8x4xf32> -> vector<2x8x8x4xf32>
    %9 = vector.shape_cast %8 : vector<2x8x8x4xf32> to vector<16x8x4xf32>
    %10 = vector.shape_cast %5 : vector<16x32xf32> to vector<2x8x8x4xf32>
    %11 = tpu.transpose %10, [0, 2, 1, 3] : vector<2x8x8x4xf32> -> vector<2x8x8x4xf32>
    %12 = vector.shape_cast %11 : vector<2x8x8x4xf32> to vector<16x8x4xf32>
    %13 = vector.shape_cast %6 : vector<16x32xf32> to vector<2x8x8x4xf32>
    %14 = tpu.transpose %13, [0, 2, 1, 3] : vector<2x8x8x4xf32> -> vector<2x8x8x4xf32>
    %15 = vector.shape_cast %14 : vector<2x8x8x4xf32> to vector<16x8x4xf32>
    "tpu.trace_start"() <{level = 10 : i32, message = "nlk,nmk->nlm"}> : () -> ()
    %cst_4 = arith.constant dense<0.000000e+00> : vector<16x8x8xf32>
    %16 = tpu.matmul %9, %12, %cst_4 {dimension_numbers = #tpu.dot_dimension_numbers<[2], [2], [1], [1], [0, 0, 0, 1, 1, 1], [0], [0]>} : vector<16x8x4xf32>, vector<16x8x4xf32>, vector<16x8x8xf32> -> vector<16x8x8xf32>
    "tpu.trace_stop"() : () -> ()
    %cst_5 = arith.constant 5.000000e-01 : f32
    %17 = vector.broadcast %cst_5 : f32 to vector<16x8x8xf32>
    %18 = arith.mulf %16, %17 : vector<16x8x8xf32>
    %cst_6 = arith.constant dense<0xFF800000> : vector<16x8xf32>
    %19 = vector.multi_reduction <maximumf>, %18, %cst_6 [2] : vector<16x8x8xf32> to vector<16x8xf32>
    %20 = vector.shape_cast %19 : vector<16x8xf32> to vector<16x8x1xf32>
    %21 = vector.broadcast %20 : vector<16x8x1xf32> to vector<16x8x8xf32>
    %22 = arith.subf %18, %21 : vector<16x8x8xf32>
    %23 = math.exp %22 : vector<16x8x8xf32>
    %cst_7 = arith.constant dense<0.000000e+00> : vector<16x8xf32>
    %24 = vector.multi_reduction <add>, %23, %cst_7 [2] : vector<16x8x8xf32> to vector<16x8xf32>
    %25 = vector.shape_cast %24 : vector<16x8xf32> to vector<16x8x1xf32>
    %26 = tpu.reciprocal %25 : vector<16x8x1xf32> -> vector<16x8x1xf32>
    %27 = vector.broadcast %26 : vector<16x8x1xf32> to vector<16x8x8xf32>
    %28 = arith.mulf %23, %27 : vector<16x8x8xf32>
    "tpu.trace_start"() <{level = 10 : i32, message = "nlm,nmk->nlk"}> : () -> ()
    %cst_8 = arith.constant dense<0.000000e+00> : vector<16x8x4xf32>
    %29 = tpu.matmul %28, %15, %cst_8 {dimension_numbers = #tpu.dot_dimension_numbers<[2], [1], [1], [2], [0, 0, 0, 1, 1, 2], [0], [0]>} : vector<16x8x8xf32>, vector<16x8x4xf32>, vector<16x8x4xf32> -> vector<16x8x4xf32>
    "tpu.trace_stop"() : () -> ()
    %30 = vector.shape_cast %29 : vector<16x8x4xf32> to vector<2x8x8x4xf32>
    %31 = tpu.transpose %30, [0, 2, 1, 3] : vector<2x8x8x4xf32> -> vector<2x8x8x4xf32>
    %32 = vector.shape_cast %31 : vector<2x8x8x4xf32> to vector<16x32xf32>
    %c0_9 = arith.constant 0 : index
    %c0_10 = arith.constant 0 : index
    %33 = vector.load %arg3[%c0_9, %c0_10] : memref<32x32xf32, #tpu.memory_space<vmem>>, vector<32x32xf32>
    %cst_11 = arith.constant dense<0.000000e+00> : vector<16x32xf32>
    %34 = tpu.matmul %32, %33, %cst_11 {dimension_numbers = #tpu.dot_dimension_numbers<[1], [0], [0], [1], [0, 0, 1, 1], [], []>} : vector<16x32xf32>, vector<32x32xf32>, vector<16x32xf32> -> vector<16x32xf32>
    %c0_12 = arith.constant 0 : index
    %c0_13 = arith.constant 0 : index
    %35 = vector.load %arg7[%c0_12, %c0_13] : memref<6x32xf32, #tpu.memory_space<vmem>>, vector<1x32xf32>
    %36 = vector.broadcast %35 : vector<1x32xf32> to vector<16x32xf32>
    %37 = arith.addf %34, %36 : vector<16x32xf32>
    %38 = arith.addf %1, %37 : vector<16x32xf32>
    %c1 = arith.constant 1 : index
    %c0_14 = arith.constant 0 : index
    %39 = vector.load %arg7[%c1, %c0_14] : memref<6x32xf32, #tpu.memory_space<vmem>>, vector<1x32xf32>
    %c2 = arith.constant 2 : index
    %c0_15 = arith.constant 0 : index
    %40 = vector.load %arg7[%c2, %c0_15] : memref<6x32xf32, #tpu.memory_space<vmem>>, vector<1x32xf32>
    %cst_16 = arith.constant dense<0.000000e+00> : vector<16xf32>
    %41 = vector.multi_reduction <add>, %38, %cst_16 [1] : vector<16x32xf32> to vector<16xf32>
    %42 = vector.shape_cast %41 : vector<16xf32> to vector<16x1xf32>
    %cst_17 = arith.constant 3.200000e+01 : f32
    %43 = vector.broadcast %cst_17 : f32 to vector<16x1xf32>
    %44 = arith.divf %42, %43 : vector<16x1xf32>
    %45 = arith.mulf %38, %38 : vector<16x32xf32>
    %cst_18 = arith.constant dense<0.000000e+00> : vector<16xf32>
    %46 = vector.multi_reduction <add>, %45, %cst_18 [1] : vector<16x32xf32> to vector<16xf32>
    %47 = vector.shape_cast %46 : vector<16xf32> to vector<16x1xf32>
    %cst_19 = arith.constant 3.200000e+01 : f32
    %48 = vector.broadcast %cst_19 : f32 to vector<16x1xf32>
    %49 = arith.divf %47, %48 : vector<16x1xf32>
    %50 = arith.mulf %44, %44 : vector<16x1xf32>
    %51 = arith.subf %49, %50 : vector<16x1xf32>
    %52 = vector.broadcast %44 : vector<16x1xf32> to vector<16x32xf32>
    %53 = arith.subf %38, %52 : vector<16x32xf32>
    %cst_20 = arith.constant 9.99999974E-6 : f32
    %54 = vector.broadcast %cst_20 : f32 to vector<16x1xf32>
    %55 = arith.addf %51, %54 : vector<16x1xf32>
    %56 = math.rsqrt %55 : vector<16x1xf32>
    %57 = vector.broadcast %56 : vector<16x1xf32> to vector<16x32xf32>
    %58 = arith.mulf %53, %57 : vector<16x32xf32>
    %59 = vector.broadcast %39 : vector<1x32xf32> to vector<16x32xf32>
    %60 = arith.mulf %58, %59 : vector<16x32xf32>
    %61 = vector.broadcast %40 : vector<1x32xf32> to vector<16x32xf32>
    %62 = arith.addf %60, %61 : vector<16x32xf32>
    %c0_21 = arith.constant 0 : index
    %c0_22 = arith.constant 0 : index
    %63 = vector.load %arg4[%c0_21, %c0_22] : memref<32x64xf32, #tpu.memory_space<vmem>>, vector<32x64xf32>
    %cst_23 = arith.constant dense<0.000000e+00> : vector<16x64xf32>
    %64 = tpu.matmul %62, %63, %cst_23 {dimension_numbers = #tpu.dot_dimension_numbers<[1], [0], [0], [1], [0, 0, 1, 1], [], []>} : vector<16x32xf32>, vector<32x64xf32>, vector<16x64xf32> -> vector<16x64xf32>
    %c0_24 = arith.constant 0 : index
    %c0_25 = arith.constant 0 : index
    %65 = vector.load %arg5[%c0_24, %c0_25] : memref<1x64xf32, #tpu.memory_space<vmem>>, vector<1x64xf32>
    %66 = vector.broadcast %65 : vector<1x64xf32> to vector<16x64xf32>
    %67 = arith.addf %64, %66 : vector<16x64xf32>
    %cst_26 = arith.constant 0.000000e+00 : f32
    %68 = vector.broadcast %cst_26 : f32 to vector<16x64xf32>
    %69 = arith.maximumf %67, %68 : vector<16x64xf32>
    %c0_27 = arith.constant 0 : index
    %c0_28 = arith.constant 0 : index
    %70 = vector.load %arg6[%c0_27, %c0_28] : memref<64x32xf32, #tpu.memory_space<vmem>>, vector<64x32xf32>
    %cst_29 = arith.constant dense<0.000000e+00> : vector<16x32xf32>
    %71 = tpu.matmul %69, %70, %cst_29 {dimension_numbers = #tpu.dot_dimension_numbers<[1], [0], [0], [1], [0, 0, 1, 1], [], []>} : vector<16x64xf32>, vector<64x32xf32>, vector<16x32xf32> -> vector<16x32xf32>
    %c5 = arith.constant 5 : index
    %c0_30 = arith.constant 0 : index
    %72 = vector.load %arg7[%c5, %c0_30] : memref<6x32xf32, #tpu.memory_space<vmem>>, vector<1x32xf32>
    %73 = vector.broadcast %72 : vector<1x32xf32> to vector<16x32xf32>
    %74 = arith.addf %71, %73 : vector<16x32xf32>
    %75 = arith.addf %62, %74 : vector<16x32xf32>
    %c3 = arith.constant 3 : index
    %c0_31 = arith.constant 0 : index
    %76 = vector.load %arg7[%c3, %c0_31] : memref<6x32xf32, #tpu.memory_space<vmem>>, vector<1x32xf32>
    %c4 = arith.constant 4 : index
    %c0_32 = arith.constant 0 : index
    %77 = vector.load %arg7[%c4, %c0_32] : memref<6x32xf32, #tpu.memory_space<vmem>>, vector<1x32xf32>
    %cst_33 = arith.constant dense<0.000000e+00> : vector<16xf32>
    %78 = vector.multi_reduction <add>, %75, %cst_33 [1] : vector<16x32xf32> to vector<16xf32>
    %79 = vector.shape_cast %78 : vector<16xf32> to vector<16x1xf32>
    %cst_34 = arith.constant 3.200000e+01 : f32
    %80 = vector.broadcast %cst_34 : f32 to vector<16x1xf32>
    %81 = arith.divf %79, %80 : vector<16x1xf32>
    %82 = arith.mulf %75, %75 : vector<16x32xf32>
    %cst_35 = arith.constant dense<0.000000e+00> : vector<16xf32>
    %83 = vector.multi_reduction <add>, %82, %cst_35 [1] : vector<16x32xf32> to vector<16xf32>
    %84 = vector.shape_cast %83 : vector<16xf32> to vector<16x1xf32>
    %cst_36 = arith.constant 3.200000e+01 : f32
    %85 = vector.broadcast %cst_36 : f32 to vector<16x1xf32>
    %86 = arith.divf %84, %85 : vector<16x1xf32>
    %87 = arith.mulf %81, %81 : vector<16x1xf32>
    %88 = arith.subf %86, %87 : vector<16x1xf32>
    %89 = vector.broadcast %81 : vector<16x1xf32> to vector<16x32xf32>
    %90 = arith.subf %75, %89 : vector<16x32xf32>
    %cst_37 = arith.constant 9.99999974E-6 : f32
    %91 = vector.broadcast %cst_37 : f32 to vector<16x1xf32>
    %92 = arith.addf %88, %91 : vector<16x1xf32>
    %93 = math.rsqrt %92 : vector<16x1xf32>
    %94 = vector.broadcast %93 : vector<16x1xf32> to vector<16x32xf32>
    %95 = arith.mulf %90, %94 : vector<16x32xf32>
    %96 = vector.broadcast %76 : vector<1x32xf32> to vector<16x32xf32>
    %97 = arith.mulf %95, %96 : vector<16x32xf32>
    %98 = vector.broadcast %77 : vector<1x32xf32> to vector<16x32xf32>
    %99 = arith.addf %97, %98 : vector<16x32xf32>
    %100 = vector.shape_cast %99 : vector<16x32xf32> to vector<2x8x32xf32>
    %c0_38 = arith.constant 0 : index
    %c0_39 = arith.constant 0 : index
    %c0_40 = arith.constant 0 : index
    %101 = vector.load %arg8[%c0_38, %c0_39, %c0_40] : memref<2x8x32xf32, #tpu.memory_space<vmem>>, vector<2x8x32xf32>
    tpu.vector_store %arg8[%c0_38, %c0_39, %c0_40], %100 {strides = array<i32>} : memref<2x8x32xf32, #tpu.memory_space<vmem>>, vector<2x8x32xf32>,
    return
  }
  func.func @transform_0(%arg0: i32) -> (i32, i32, i32) {
    %c0_i32 = arith.constant 0 : i32
    %c0_i32_0 = arith.constant 0 : i32
    %c0_i32_1 = arith.constant 0 : i32
    return %arg0, %c0_i32, %c0_i32_0 : i32, i32, i32
  }
  func.func @transform_1(%arg0: i32) -> (i32, i32) {
    %c0_i32 = arith.constant 0 : i32
    %c0_i32_0 = arith.constant 0 : i32
    %c0_i32_1 = arith.constant 0 : i32
    return %c0_i32, %c0_i32_0 : i32, i32
  }
  func.func @transform_2(%arg0: i32) -> (i32, i32) {
    %c0_i32 = arith.constant 0 : i32
    %c0_i32_0 = arith.constant 0 : i32
    %c0_i32_1 = arith.constant 0 : i32
    return %c0_i32, %c0_i32_0 : i32, i32
  }
  func.func @transform_3(%arg0: i32) -> (i32, i32) {
    %c0_i32 = arith.constant 0 : i32
    %c0_i32_0 = arith.constant 0 : i32
    %c0_i32_1 = arith.constant 0 : i32
    return %c0_i32, %c0_i32_0 : i32, i32
  }
  func.func @transform_4(%arg0: i32) -> (i32, i32) {
    %c0_i32 = arith.constant 0 : i32
    %c0_i32_0 = arith.constant 0 : i32
    %c0_i32_1 = arith.constant 0 : i32
    return %c0_i32, %c0_i32_0 : i32, i32
  }
  func.func @transform_5(%arg0: i32) -> (i32, i32) {
    %c0_i32 = arith.constant 0 : i32
    %c0_i32_0 = arith.constant 0 : i32
    %c0_i32_1 = arith.constant 0 : i32
    return %c0_i32, %c0_i32_0 : i32, i32
  }
  func.func @transform_6(%arg0: i32) -> (i32, i32) {
    %c0_i32 = arith.constant 0 : i32
    %c0_i32_0 = arith.constant 0 : i32
    %c0_i32_1 = arith.constant 0 : i32
    return %c0_i32, %c0_i32_0 : i32, i32
  }
  func.func @transform_7(%arg0: i32) -> (i32, i32, i32) {
    %c0_i32 = arith.constant 0 : i32
    %c0_i32_0 = arith.constant 0 : i32
    %c0_i32_1 = arith.constant 0 : i32
    return %arg0, %c0_i32, %c0_i32_0 : i32, i32, i32
  }
}

</mosaic_0001>

<llo_original>
// kernel: tpu_custom_call.1
$region0: #{tpu_custom_call.1}
  #allocation0 [shape = 'u32[]', space=smem, size = 0x4, offset = 0x4, fixed_abs, tag = 'smem constant byte address 0x4 - core index']
  #allocation1 [shape = 'u32[144,128]{1,0:T(1,128)}', space=vmem, size = 0x12000, scoped, tag = 'internal scratch']
  %s0 = inlined_call_operand.hbm [shape: f32[2,8,32], index: 0, kind: input, shape index: {}]
  %s1 = inlined_call_operand.vmem [shape: f32[32,96], index: 1, kind: input, shape index: {}]
  %s2 = inlined_call_operand.vmem [shape: f32[32,32], index: 2, kind: input, shape index: {}]
  %s3 = inlined_call_operand.vmem [shape: f32[32,64], index: 3, kind: input, shape index: {}]
  %s4 = inlined_call_operand.vmem [shape: f32[1,64], index: 4, kind: input, shape index: {}]
  %s5 = inlined_call_operand.vmem [shape: f32[64,32], index: 5, kind: input, shape index: {}]
  %s6 = inlined_call_operand.vmem [shape: f32[6,32], index: 6, kind: input, shape index: {}]
  %s7 = inlined_call_operand.hbm [shape: f32[2,8,32], index: 7, kind: output, shape index: {}]
  %s8 = sld [smem:[#allocation0]]
  $region42: #{tpu_custom_call.1} parent=0
    _
  %s10 = ssub.s32 1, %s8
  %s11 = scalar_select 0, %s10, %s8
  $region1: #{tpu_custom_call.1} parent=0
    #allocation2 [shape = 'u8[8192]{0}', space=vmem, size = 0x2000, scoped, tag = 'input window, operand 0, single buffered']
    #allocation3 [shape = 's32[1]{0}', space=sflag, size = 0x4, scoped, tag = 'scoped memory for tpu_custom_call.1']
    #allocation4 [shape = 's32[1]{0}', space=sflag, size = 0x4, scoped, tag = 'scoped memory for tpu_custom_call.1']
    #allocation5 [shape = 'u8[8192]{0}', space=vmem, size = 0x2000, scoped, tag = 'output window, operand 0, single buffered']
    %12 = vsyncpa [#allocation3], 0
    %13 = vsyncpa [#allocation4], 0
    // Predicated region
    $region2: #{tpu_custom_call.1} parent=1 // pred_check
      _
    $region3: #{tpu_custom_call.1} parent=1 // pred_check_branch
      %15 = sbr.rel (0) target = $region5
    $region4: #{tpu_custom_call.1} parent=1 // pred_region
      %s17 = ssub.s32 256, 256
      %18 = vsyncadd [#allocation3], %s17
      %s19 = sshll.u32 [#allocation2], 4
      %s20 = int_to_ptr.vmem [resolvable:$true] %s19
      %25 = dma.hbm_to_vmem [thread:$0]  %s0, 256, %s20, [#allocation3], 128, 128, 8
    $region5: #{tpu_custom_call.1} parent=1 // pred_fallthru
      _
    // Predicated region
    $region6: #{tpu_custom_call.1} parent=1 // pred_check
      _
    $region7: #{tpu_custom_call.1} parent=1 // pred_check_branch
      %27 = sbr.rel (0) target = $region9
    $region8: #{tpu_custom_call.1} parent=1 // pred_region
      _
    $region9: #{tpu_custom_call.1} parent=1 // pred_fallthru
      _
    // Predicated region
    $region10: #{tpu_custom_call.1} parent=1 // pred_check
      _
    $region11: #{tpu_custom_call.1} parent=1 // pred_check_branch
      %29 = sbr.rel (0) target = $region13
    $region12: #{tpu_custom_call.1} parent=1 // pred_region
      _
    $region13: #{tpu_custom_call.1} parent=1 // pred_fallthru
      _
    // Predicated region
    $region14: #{tpu_custom_call.1} parent=1 // pred_check
      _
    $region15: #{tpu_custom_call.1} parent=1 // pred_check_branch
      %31 = sbr.rel (0) target = $region17
    $region16: #{tpu_custom_call.1} parent=1 // pred_region
      _
    $region17: #{tpu_custom_call.1} parent=1 // pred_fallthru
      _
    // Predicated region
    $region18: #{tpu_custom_call.1} parent=1 // pred_check
      _
    $region19: #{tpu_custom_call.1} parent=1 // pred_check_branch
      %33 = sbr.rel (0) target = $region21
    $region20: #{tpu_custom_call.1} parent=1 // pred_region
      _
    $region21: #{tpu_custom_call.1} parent=1 // pred_fallthru
      _
    // Predicated region
    $region22: #{tpu_custom_call.1} parent=1 // pred_check
      _
    $region23: #{tpu_custom_call.1} parent=1 // pred_check_branch
      %35 = sbr.rel (0) target = $region25
    $region24: #{tpu_custom_call.1} parent=1 // pred_region
      _
    $region25: #{tpu_custom_call.1} parent=1 // pred_fallthru
      _
    // Predicated region
    $region26: #{tpu_custom_call.1} parent=1 // pred_check
      _
    $region27: #{tpu_custom_call.1} parent=1 // pred_check_branch
      %37 = sbr.rel (0) target = $region29
    $region28: #{tpu_custom_call.1} parent=1 // pred_region
      _
    $region29: #{tpu_custom_call.1} parent=1 // pred_fallthru
      _
    // Predicated region
    $region30: #{tpu_custom_call.1} parent=1 // pred_check
      _
    $region31: #{tpu_custom_call.1} parent=1 // pred_check_branch
      %39 = sbr.rel (0) target = $region33
    $region32: #{tpu_custom_call.1} parent=1 // pred_region
      %40 = dma.done [#allocation3], 256
    $region33: #{tpu_custom_call.1} parent=1 // pred_fallthru
      _
    %v41 = vld [vmem:[#allocation2] sm:$0xff]
    %v42 = vld [vmem:[#allocation2 + $0x8] sm:$0xff]
    %v43 = vld [vmem:[%s1] sm:$0xff]
    %v44 = vld [vmem:[%s1 + $0x8] sm:$0xff]
    %v45 = vld [vmem:[%s1 + $0x10] sm:$0xff]
    %v46 = vld [vmem:[%s1 + $0x18] sm:$0xff]
    %vm47 = vcmask 261120
    %v49 = vsel %vm47, %v41, 0
    %v52 = vsel %vm47, %v42, 0
    %54 = vmatprep.subr.mxu0 0.0
    %55 = vmatpush1.msra.mxu0 %v43
    %56 = vmatprep.subr.mxu0 0.0
    %57 = vmatpush1.msra.mxu0 %v44
    %58 = vmatprep.subr.mxu0 0.0
    %59 = vmatpush1.msra.mxu0 %v45
    %60 = vmatprep.subr.mxu0 0.0
    %61 = vmatpush1.msra.mxu0 %v46
    %62 = vmatprep.subr.mxu0 0.0
    %63 = vmatpush1.msra.mxu0 0.0
    %64 = vmatprep.subr.mxu0 0.0
    %65 = vmatpush1.msra.mxu0 0.0
    %66 = vmatprep.subr.mxu0 0.0
    %67 = vmatpush1.msra.mxu0 0.0
    %68 = vmatprep.subr.mxu0 0.0
    %69 = vmatpush1.msra.mxu0 0.0
    %70 = vmatprep.subr.mxu0 0.0
    %71 = vmatpush1.msra.mxu0 0.0
    %72 = vmatprep.subr.mxu0 0.0
    %73 = vmatpush1.msra.mxu0 0.0
    %74 = vmatprep.subr.mxu0 0.0
    %75 = vmatpush1.msra.mxu0 0.0
    %76 = vmatprep.subr.mxu0 0.0
    %77 = vmatpush1.msra.mxu0 0.0
    %78 = vmatprep.subr.mxu0 0.0
    %79 = vmatpush1.msra.mxu0 0.0
    %80 = vmatprep.subr.mxu0 0.0
    %81 = vmatpush1.msra.mxu0 0.0
    %82 = vmatprep.subr.mxu0 0.0
    %83 = vmatpush1.msra.mxu0 0.0
    %84 = vmatprep.subr.mxu0 0.0
    %85 = vmatpush1.msra.mxu0 0.0
    %86 = vmatprep.subr.mxu0 0.0
    %87 = vmatpush1.msra.mxu0 0.0
    %88 = vmatprep.subr.mxu0 0.0
    %89 = vmatpush1.msra.mxu0 0.0
    %90 = vmatprep.subr.mxu0 0.0
    %91 = vmatpush1.msra.mxu0 0.0
    %92 = vmatprep.subr.mxu0 0.0
    %93 = vmatpush1.msra.mxu0 0.0
    %94 = vmatprep.subr.mxu0 0.0
    %95 = vmatpush1.msra.mxu0 0.0
    %96 = vmatprep.subr.mxu0 0.0
    %97 = vmatpush1.msra.mxu0 0.0
    %98 = vmatprep.subr.mxu0 0.0
    %99 = vmatpush1.msra.mxu0 0.0
    %100 = vmatprep.subr.mxu0 0.0
    %101 = vmatpush1.msra.mxu0 0.0
    %102 = vmatprep.subr.mxu0 0.0
    %103 = vmatpush1.msra.mxu0 0.0
    %104 = vmatprep.subr.mxu0 0.0
    %105 = vmatpush1.msra.mxu0 0.0
    %106 = vmatprep.subr.mxu0 0.0
    %107 = vmatpush1.msra.mxu0 0.0
    %108 = vmatprep.subr.mxu0 0.0
    %109 = vmatpush1.msra.mxu0 0.0
    %110 = vmatprep.subr.mxu0 0.0
    %111 = vmatpush1.msra.mxu0 0.0
    %112 = vmatprep.subr.mxu0 0.0
    %113 = vmatpush1.msra.mxu0 0.0
    %114 = vmatprep.subr.mxu0 0.0
    %115 = vmatpush1.msra.mxu0 0.0
    %116 = vmatprep.subr.mxu0 0.0
    %117 = vmatpush1.msra.mxu0 0.0
    %118 = vmatprep.mubr.f32.mxu0 0.0
    %119 = vmatmul.mubr.f32.gmra.mrb[0].mxu0 %v49
    %v120 = vpop.f32.mrb[0].mxu0
    %v121 = vadd.f32 0.0, %v120
    %v122 = vpop.f32.mrb[0].mxu0
    %123 = vmatprep.mubr.f32.mxu0 0.0
    %124 = vmatmul.mubr.f32.gmra.mrb[0].mxu0 %v52
    %v125 = vpop.f32.mrb[0].mxu0
    %v126 = vadd.f32 0.0, %v125
    %v127 = vpop.f32.mrb[0].mxu0
    %128 = vdwg.mxu0
    %131 = vrot.lane.b32.xlu0 %v121, 124
    %v132 = vpop.permute.xlu0 %131
    %133 = vrot.lane.b32.xlu0 %v126, 124
    %v134 = vpop.permute.xlu0 %133
    %137 = vrot.lane.b32.xlu0 %v121, 120
    %v138 = vpop.permute.xlu0 %137
    %139 = vrot.lane.b32.xlu0 %v126, 120
    %v140 = vpop.permute.xlu0 %139
    %143 = vrot.lane.b32.xlu0 %v121, 116
    %v144 = vpop.permute.xlu0 %143
    %145 = vrot.lane.b32.xlu0 %v126, 116
    %v146 = vpop.permute.xlu0 %145
    %149 = vrot.lane.b32.xlu0 %v121, 112
    %v150 = vpop.permute.xlu0 %149
    %151 = vrot.lane.b32.xlu0 %v126, 112
    %v152 = vpop.permute.xlu0 %151
    %155 = vrot.lane.b32.xlu0 %v121, 108
    %v156 = vpop.permute.xlu0 %155
    %157 = vrot.lane.b32.xlu0 %v126, 108
    %v158 = vpop.permute.xlu0 %157
    %161 = vrot.lane.b32.xlu0 %v121, 104
    %v162 = vpop.permute.xlu0 %161
    %163 = vrot.lane.b32.xlu0 %v126, 104
    %v164 = vpop.permute.xlu0 %163
    %167 = vrot.lane.b32.xlu0 %v121, 100
    %v168 = vpop.permute.xlu0 %167
    %169 = vrot.lane.b32.xlu0 %v126, 100
    %v170 = vpop.permute.xlu0 %169
    %v173 = vcombine.low %v121, %v138
    %v174 = vcombine.high %v121, %v138
    %v176 = vunpack.c.l.s4 1983009808
    %v177 = vunpack.c.0.s8 %v176
    %v178 = vlaneseq
    %v179 = vshrl.u32 %v178, 7
    %v180 = vsub.s32 %v177, %v179
    %v181 = vrot.slane %v173, %v180
    %v183 = vunpack.c.l.s4 1983009808
    %v184 = vunpack.c.0.s8 %v183
    %v185 = vlaneseq
    %v186 = vshrl.u32 %v185, 7
    %v187 = vsub.s32 %v184, %v186
    %v188 = vrot.slane %v174, %v187
    %v189 = vcombine.low %v132, %v144
    %v190 = vcombine.high %v132, %v144
    %v192 = vunpack.c.l.s4 1983009808
    %v193 = vunpack.c.0.s8 %v192
    %v194 = vlaneseq
    %v195 = vshrl.u32 %v194, 7
    %v196 = vsub.s32 %v193, %v195
    %v197 = vrot.slane %v189, %v196
    %v199 = vunpack.c.l.s4 1983009808
    %v200 = vunpack.c.0.s8 %v199
    %v201 = vlaneseq
    %v202 = vshrl.u32 %v201, 7
    %v203 = vsub.s32 %v200, %v202
    %v204 = vrot.slane %v190, %v203
    %v205 = vcombine.low %v150, %v162
    %v206 = vcombine.high %v150, %v162
    %v208 = vunpack.c.l.s4 1983009808
    %v209 = vunpack.c.0.s8 %v208
    %v210 = vlaneseq
    %v211 = vshrl.u32 %v210, 7
    %v212 = vsub.s32 %v209, %v211
    %v213 = vrot.slane %v205, %v212
    %v215 = vunpack.c.l.s4 1983009808
    %v216 = vunpack.c.0.s8 %v215
    %v217 = vlaneseq
    %v218 = vshrl.u32 %v217, 7
    %v219 = vsub.s32 %v216, %v218
    %v220 = vrot.slane %v206, %v219
    %v221 = vcombine.low %v156, %v168
    %v222 = vcombine.high %v156, %v168
    %v224 = vunpack.c.l.s4 1983009808
    %v225 = vunpack.c.0.s8 %v224
    %v226 = vlaneseq
    %v227 = vshrl.u32 %v226, 7
    %v228 = vsub.s32 %v225, %v227
    %v229 = vrot.slane %v221, %v228
    %v231 = vunpack.c.l.s4 1983009808
    %v232 = vunpack.c.0.s8 %v231
    %v233 = vlaneseq
    %v234 = vshrl.u32 %v233, 7
    %v235 = vsub.s32 %v232, %v234
    %v236 = vrot.slane %v222, %v235
    %v237 = vcombine.low %v181, %v197
    %v238 = vcombine.high %v181, %v197
    %v240 = vunpack.c.l.s4 1934713408
    %v241 = vunpack.c.0.s8 %v240
    %v242 = vlaneseq
    %v243 = vshrl.u32 %v242, 7
    %v244 = vsub.s32 %v241, %v243
    %v245 = vrot.slane %v237, %v244
    %v247 = vunpack.c.l.s4 1934713408
    %v248 = vunpack.c.0.s8 %v247
    %v249 = vlaneseq
    %v250 = vshrl.u32 %v249, 7
    %v251 = vsub.s32 %v248, %v250
    %v252 = vrot.slane %v238, %v251
    %v253 = vcombine.low %v188, %v204
    %v254 = vcombine.high %v188, %v204
    %v256 = vunpack.c.l.s4 1934713408
    %v257 = vunpack.c.0.s8 %v256
    %v258 = vlaneseq
    %v259 = vshrl.u32 %v258, 7
    %v260 = vsub.s32 %v257, %v259
    %v261 = vrot.slane %v253, %v260
    %v263 = vunpack.c.l.s4 1934713408
    %v264 = vunpack.c.0.s8 %v263
    %v265 = vlaneseq
    %v266 = vshrl.u32 %v265, 7
    %v267 = vsub.s32 %v264, %v266
    %v268 = vrot.slane %v254, %v267
    %v269 = vcombine.low %v213, %v229
    %v270 = vcombine.high %v213, %v229
    %v272 = vunpack.c.l.s4 1934713408
    %v273 = vunpack.c.0.s8 %v272
    %v274 = vlaneseq
    %v275 = vshrl.u32 %v274, 7
    %v276 = vsub.s32 %v273, %v275
    %v277 = vrot.slane %v269, %v276
    %v279 = vunpack.c.l.s4 1934713408
    %v280 = vunpack.c.0.s8 %v279
    %v281 = vlaneseq
    %v282 = vshrl.u32 %v281, 7
    %v283 = vsub.s32 %v280, %v282
    %v284 = vrot.slane %v270, %v283
    %v285 = vcombine.low %v220, %v236
    %v286 = vcombine.high %v220, %v236
    %v288 = vunpack.c.l.s4 1934713408
    %v289 = vunpack.c.0.s8 %v288
    %v290 = vlaneseq
    %v291 = vshrl.u32 %v290, 7
    %v292 = vsub.s32 %v289, %v291
    %v293 = vrot.slane %v285, %v292
    %v295 = vunpack.c.l.s4 1934713408
    %v296 = vunpack.c.0.s8 %v295
    %v297 = vlaneseq
    %v298 = vshrl.u32 %v297, 7
    %v299 = vsub.s32 %v296, %v298
    %v300 = vrot.slane %v286, %v299
    %v301 = vcombine.low %v245, %v277
    %v302 = vcombine.high %v245, %v277
    %v303 = vcombine.low %v252, %v284
    %v304 = vcombine.high %v252, %v284
    %v305 = vcombine.low %v261, %v293
    %v306 = vcombine.high %v261, %v293
    %v307 = vcombine.low %v268, %v300
    %v308 = vcombine.high %v268, %v300
    %v309 = vcombine.low %v126, %v140
    %v310 = vcombine.high %v126, %v140
    %v312 = vunpack.c.l.s4 1983009808
    %v313 = vunpack.c.0.s8 %v312
    %v314 = vlaneseq
    %v315 = vshrl.u32 %v314, 7
    %v316 = vsub.s32 %v313, %v315
    %v317 = vrot.slane %v309, %v316
    %v319 = vunpack.c.l.s4 1983009808
    %v320 = vunpack.c.0.s8 %v319
    %v321 = vlaneseq
    %v322 = vshrl.u32 %v321, 7
    %v323 = vsub.s32 %v320, %v322
    %v324 = vrot.slane %v310, %v323
    %v325 = vcombine.low %v134, %v146
    %v326 = vcombine.high %v134, %v146
    %v328 = vunpack.c.l.s4 1983009808
    %v329 = vunpack.c.0.s8 %v328
    %v330 = vlaneseq
    %v331 = vshrl.u32 %v330, 7
    %v332 = vsub.s32 %v329, %v331
    %v333 = vrot.slane %v325, %v332
    %v335 = vunpack.c.l.s4 1983009808
    %v336 = vunpack.c.0.s8 %v335
    %v337 = vlaneseq
    %v338 = vshrl.u32 %v337, 7
    %v339 = vsub.s32 %v336, %v338
    %v340 = vrot.slane %v326, %v339
    %v341 = vcombine.low %v152, %v164
    %v342 = vcombine.high %v152, %v164
    %v344 = vunpack.c.l.s4 1983009808
    %v345 = vunpack.c.0.s8 %v344
    %v346 = vlaneseq
    %v347 = vshrl.u32 %v346, 7
    %v348 = vsub.s32 %v345, %v347
    %v349 = vrot.slane %v341, %v348
    %v351 = vunpack.c.l.s4 1983009808
    %v352 = vunpack.c.0.s8 %v351
    %v353 = vlaneseq
    %v354 = vshrl.u32 %v353, 7
    %v355 = vsub.s32 %v352, %v354
    %v356 = vrot.slane %v342, %v355
    %v357 = vcombine.low %v158, %v170
    %v358 = vcombine.high %v158, %v170
    %v360 = vunpack.c.l.s4 1983009808
    %v361 = vunpack.c.0.s8 %v360
    %v362 = vlaneseq
    %v363 = vshrl.u32 %v362, 7
    %v364 = vsub.s32 %v361, %v363
    %v365 = vrot.slane %v357, %v364
    %v367 = vunpack.c.l.s4 1983009808
    %v368 = vunpack.c.0.s8 %v367
    %v369 = vlaneseq
    %v370 = vshrl.u32 %v369, 7
    %v371 = vsub.s32 %v368, %v370
    %v372 = vrot.slane %v358, %v371
    %v373 = vcombine.low %v317, %v333
    %v374 = vcombine.high %v317, %v333
    %v376 = vunpack.c.l.s4 1934713408
    %v377 = vunpack.c.0.s8 %v376
    %v378 = vlaneseq
    %v379 = vshrl.u32 %v378, 7
    %v380 = vsub.s32 %v377, %v379
    %v381 = vrot.slane %v373, %v380
    %v383 = vunpack.c.l.s4 1934713408
    %v384 = vunpack.c.0.s8 %v383
    %v385 = vlaneseq
    %v386 = vshrl.u32 %v385, 7
    %v387 = vsub.s32 %v384, %v386
    %v388 = vrot.slane %v374, %v387
    %v389 = vcombine.low %v324, %v340
    %v390 = vcombine.high %v324, %v340
    %v392 = vunpack.c.l.s4 1934713408
    %v393 = vunpack.c.0.s8 %v392
    %v394 = vlaneseq
    %v395 = vshrl.u32 %v394, 7
    %v396 = vsub.s32 %v393, %v395
    %v397 = vrot.slane %v389, %v396
    %v399 = vunpack.c.l.s4 1934713408
    %v400 = vunpack.c.0.s8 %v399
    %v401 = vlaneseq
    %v402 = vshrl.u32 %v401, 7
    %v403 = vsub.s32 %v400, %v402
    %v404 = vrot.slane %v390, %v403
    %v405 = vcombine.low %v349, %v365
    %v406 = vcombine.high %v349, %v365
    %v408 = vunpack.c.l.s4 1934713408
    %v409 = vunpack.c.0.s8 %v408
    %v410 = vlaneseq
    %v411 = vshrl.u32 %v410, 7
    %v412 = vsub.s32 %v409, %v411
    %v413 = vrot.slane %v405, %v412
    %v415 = vunpack.c.l.s4 1934713408
    %v416 = vunpack.c.0.s8 %v415
    %v417 = vlaneseq
    %v418 = vshrl.u32 %v417, 7
    %v419 = vsub.s32 %v416, %v418
    %v420 = vrot.slane %v406, %v419
    %v421 = vcombine.low %v356, %v372
    %v422 = vcombine.high %v356, %v372
    %v424 = vunpack.c.l.s4 1934713408
    %v425 = vunpack.c.0.s8 %v424
    %v426 = vlaneseq
    %v427 = vshrl.u32 %v426, 7
    %v428 = vsub.s32 %v425, %v427
    %v429 = vrot.slane %v421, %v428
    %v431 = vunpack.c.l.s4 1934713408
    %v432 = vunpack.c.0.s8 %v431
    %v433 = vlaneseq
    %v434 = vshrl.u32 %v433, 7
    %v435 = vsub.s32 %v432, %v434
    %v436 = vrot.slane %v422, %v435
    %v437 = vcombine.low %v381, %v413
    %v438 = vcombine.high %v381, %v413
    %v439 = vcombine.low %v388, %v420
    %v440 = vcombine.high %v388, %v420
    %v441 = vcombine.low %v397, %v429
    %v442 = vcombine.high %v397, %v429
    %v443 = vcombine.low %v404, %v436
    %v444 = vcombine.high %v404, %v436
    %v445 = vcombine.low %v301, %v303
    %v446 = vcombine.high %v301, %v303
    %v448 = vunpack.c.l.s4 1983009808
    %v449 = vunpack.c.0.s8 %v448
    %v450 = vlaneseq
    %v451 = vshrl.u32 %v450, 7
    %v452 = vsub.s32 %v449, %v451
    %v453 = vrot.slane %v445, %v452
    %v455 = vunpack.c.l.s4 1983009808
    %v456 = vunpack.c.0.s8 %v455
    %v457 = vlaneseq
    %v458 = vshrl.u32 %v457, 7
    %v459 = vsub.s32 %v456, %v458
    %v460 = vrot.slane %v446, %v459
    %v461 = vcombine.low %v302, %v304
    %v462 = vcombine.high %v302, %v304
    %v464 = vunpack.c.l.s4 1983009808
    %v465 = vunpack.c.0.s8 %v464
    %v466 = vlaneseq
    %v467 = vshrl.u32 %v466, 7
    %v468 = vsub.s32 %v465, %v467
    %v469 = vrot.slane %v461, %v468
    %v471 = vunpack.c.l.s4 1983009808
    %v472 = vunpack.c.0.s8 %v471
    %v473 = vlaneseq
    %v474 = vshrl.u32 %v473, 7
    %v475 = vsub.s32 %v472, %v474
    %v476 = vrot.slane %v462, %v475
    %v477 = vcombine.low %v305, %v307
    %v478 = vcombine.high %v305, %v307
    %v480 = vunpack.c.l.s4 1983009808
    %v481 = vunpack.c.0.s8 %v480
    %v482 = vlaneseq
    %v483 = vshrl.u32 %v482, 7
    %v484 = vsub.s32 %v481, %v483
    %v485 = vrot.slane %v477, %v484
    %v487 = vunpack.c.l.s4 1983009808
    %v488 = vunpack.c.0.s8 %v487
    %v489 = vlaneseq
    %v490 = vshrl.u32 %v489, 7
    %v491 = vsub.s32 %v488, %v490
    %v492 = vrot.slane %v478, %v491
    %v493 = vcombine.low %v306, %v308
    %v494 = vcombine.high %v306, %v308
    %v496 = vunpack.c.l.s4 1983009808
    %v497 = vunpack.c.0.s8 %v496
    %v498 = vlaneseq
    %v499 = vshrl.u32 %v498, 7
    %v500 = vsub.s32 %v497, %v499
    %v501 = vrot.slane %v493, %v500
    %v503 = vunpack.c.l.s4 1983009808
    %v504 = vunpack.c.0.s8 %v503
    %v505 = vlaneseq
    %v506 = vshrl.u32 %v505, 7
    %v507 = vsub.s32 %v504, %v506
    %v508 = vrot.slane %v494, %v507
    %v509 = vcombine.low %v453, %v469
    %v510 = vcombine.high %v453, %v469
    %v512 = vunpack.c.l.s4 1934713408
    %v513 = vunpack.c.0.s8 %v512
    %v514 = vlaneseq
    %v515 = vshrl.u32 %v514, 7
    %v516 = vsub.s32 %v513, %v515
    %v517 = vrot.slane %v509, %v516
    %v519 = vunpack.c.l.s4 1934713408
    %v520 = vunpack.c.0.s8 %v519
    %v521 = vlaneseq
    %v522 = vshrl.u32 %v521, 7
    %v523 = vsub.s32 %v520, %v522
    %v524 = vrot.slane %v510, %v523
    %v525 = vcombine.low %v460, %v476
    %v526 = vcombine.high %v460, %v476
    %v528 = vunpack.c.l.s4 1934713408
    %v529 = vunpack.c.0.s8 %v528
    %v530 = vlaneseq
    %v531 = vshrl.u32 %v530, 7
    %v532 = vsub.s32 %v529, %v531
    %v533 = vrot.slane %v525, %v532
    %v535 = vunpack.c.l.s4 1934713408
    %v536 = vunpack.c.0.s8 %v535
    %v537 = vlaneseq
    %v538 = vshrl.u32 %v537, 7
    %v539 = vsub.s32 %v536, %v538
    %v540 = vrot.slane %v526, %v539
    %v541 = vcombine.low %v485, %v501
    %v542 = vcombine.high %v485, %v501
    %v544 = vunpack.c.l.s4 1934713408
    %v545 = vunpack.c.0.s8 %v544
    %v546 = vlaneseq
    %v547 = vshrl.u32 %v546, 7
    %v548 = vsub.s32 %v545, %v547
    %v549 = vrot.slane %v541, %v548
    %v551 = vunpack.c.l.s4 1934713408
    %v552 = vunpack.c.0.s8 %v551
    %v553 = vlaneseq
    %v554 = vshrl.u32 %v553, 7
    %v555 = vsub.s32 %v552, %v554
    %v556 = vrot.slane %v542, %v555
    %v557 = vcombine.low %v492, %v508
    %v558 = vcombine.high %v492, %v508
    %v560 = vunpack.c.l.s4 1934713408
    %v561 = vunpack.c.0.s8 %v560
    %v562 = vlaneseq
    %v563 = vshrl.u32 %v562, 7
    %v564 = vsub.s32 %v561, %v563
    %v565 = vrot.slane %v557, %v564
    %v567 = vunpack.c.l.s4 1934713408
    %v568 = vunpack.c.0.s8 %v567
    %v569 = vlaneseq
    %v570 = vshrl.u32 %v569, 7
    %v571 = vsub.s32 %v568, %v570
    %v572 = vrot.slane %v558, %v571
    %v573 = vcombine.low %v517, %v549
    %v574 = vcombine.high %v517, %v549
    %v575 = vcombine.low %v524, %v556
    %v576 = vcombine.high %v524, %v556
    %v577 = vcombine.low %v533, %v565
    %v578 = vcombine.high %v533, %v565
    %v579 = vcombine.low %v540, %v572
    %v580 = vcombine.high %v540, %v572
    %v581 = vcombine.low %v437, %v439
    %v582 = vcombine.high %v437, %v439
    %v584 = vunpack.c.l.s4 1983009808
    %v585 = vunpack.c.0.s8 %v584
    %v586 = vlaneseq
    %v587 = vshrl.u32 %v586, 7
    %v588 = vsub.s32 %v585, %v587
    %v589 = vrot.slane %v581, %v588
    %v591 = vunpack.c.l.s4 1983009808
    %v592 = vunpack.c.0.s8 %v591
    %v593 = vlaneseq
    %v594 = vshrl.u32 %v593, 7
    %v595 = vsub.s32 %v592, %v594
    %v596 = vrot.slane %v582, %v595
    %v597 = vcombine.low %v438, %v440
    %v598 = vcombine.high %v438, %v440
    %v600 = vunpack.c.l.s4 1983009808
    %v601 = vunpack.c.0.s8 %v600
    %v602 = vlaneseq
    %v603 = vshrl.u32 %v602, 7
    %v604 = vsub.s32 %v601, %v603
    %v605 = vrot.slane %v597, %v604
    %v607 = vunpack.c.l.s4 1983009808
    %v608 = vunpack.c.0.s8 %v607
    %v609 = vlaneseq
    %v610 = vshrl.u32 %v609, 7
    %v611 = vsub.s32 %v608, %v610
    %v612 = vrot.slane %v598, %v611
    %v613 = vcombine.low %v441, %v443
    %v614 = vcombine.high %v441, %v443
    %v616 = vunpack.c.l.s4 1983009808
    %v617 = vunpack.c.0.s8 %v616
    %v618 = vlaneseq
    %v619 = vshrl.u32 %v618, 7
    %v620 = vsub.s32 %v617, %v619
    %v621 = vrot.slane %v613, %v620
    %v623 = vunpack.c.l.s4 1983009808
    %v624 = vunpack.c.0.s8 %v623
    %v625 = vlaneseq
    %v626 = vshrl.u32 %v625, 7
    %v627 = vsub.s32 %v624, %v626
    %v628 = vrot.slane %v614, %v627
    %v629 = vcombine.low %v442, %v444
    %v630 = vcombine.high %v442, %v444
    %v632 = vunpack.c.l.s4 1983009808
    %v633 = vunpack.c.0.s8 %v632
    %v634 = vlaneseq
    %v635 = vshrl.u32 %v634, 7
    %v636 = vsub.s32 %v633, %v635
    %v637 = vrot.slane %v629, %v636
    %v639 = vunpack.c.l.s4 1983009808
    %v640 = vunpack.c.0.s8 %v639
    %v641 = vlaneseq
    %v642 = vshrl.u32 %v641, 7
    %v643 = vsub.s32 %v640, %v642
    %v644 = vrot.slane %v630, %v643
    %v645 = vcombine.low %v589, %v605
    %v646 = vcombine.high %v589, %v605
    %v648 = vunpack.c.l.s4 1934713408
    %v649 = vunpack.c.0.s8 %v648
    %v650 = vlaneseq
    %v651 = vshrl.u32 %v650, 7
    %v652 = vsub.s32 %v649, %v651
    %v653 = vrot.slane %v645, %v652
    %v655 = vunpack.c.l.s4 1934713408
    %v656 = vunpack.c.0.s8 %v655
    %v657 = vlaneseq
    %v658 = vshrl.u32 %v657, 7
    %v659 = vsub.s32 %v656, %v658
    %v660 = vrot.slane %v646, %v659
    %v661 = vcombine.low %v596, %v612
    %v662 = vcombine.high %v596, %v612
    %v664 = vunpack.c.l.s4 1934713408
    %v665 = vunpack.c.0.s8 %v664
    %v666 = vlaneseq
    %v667 = vshrl.u32 %v666, 7
    %v668 = vsub.s32 %v665, %v667
    %v669 = vrot.slane %v661, %v668
    %v671 = vunpack.c.l.s4 1934713408
    %v672 = vunpack.c.0.s8 %v671
    %v673 = vlaneseq
    %v674 = vshrl.u32 %v673, 7
    %v675 = vsub.s32 %v672, %v674
    %v676 = vrot.slane %v662, %v675
    %v677 = vcombine.low %v621, %v637
    %v678 = vcombine.high %v621, %v637
    %v680 = vunpack.c.l.s4 1934713408
    %v681 = vunpack.c.0.s8 %v680
    %v682 = vlaneseq
    %v683 = vshrl.u32 %v682, 7
    %v684 = vsub.s32 %v681, %v683
    %v685 = vrot.slane %v677, %v684
    %v687 = vunpack.c.l.s4 1934713408
    %v688 = vunpack.c.0.s8 %v687
    %v689 = vlaneseq
    %v690 = vshrl.u32 %v689, 7
    %v691 = vsub.s32 %v688, %v690
    %v692 = vrot.slane %v678, %v691
    %v693 = vcombine.low %v628, %v644
    %v694 = vcombine.high %v628, %v644
    %v696 = vunpack.c.l.s4 1934713408
    %v697 = vunpack.c.0.s8 %v696
    %v698 = vlaneseq
    %v699 = vshrl.u32 %v698, 7
    %v700 = vsub.s32 %v697, %v699
    %v701 = vrot.slane %v693, %v700
    %v703 = vunpack.c.l.s4 1934713408
    %v704 = vunpack.c.0.s8 %v703
    %v705 = vlaneseq
    %v706 = vshrl.u32 %v705, 7
    %v707 = vsub.s32 %v704, %v706
    %v708 = vrot.slane %v694, %v707
    %v709 = vcombine.low %v653, %v685
    %v710 = vcombine.high %v653, %v685
    %v711 = vcombine.low %v660, %v692
    %v712 = vcombine.high %v660, %v692
    %v713 = vcombine.low %v669, %v701
    %v714 = vcombine.high %v669, %v701
    %v715 = vcombine.low %v676, %v708
    %v716 = vcombine.high %v676, %v708
    %717 = vrot.lane.b32.xlu0 %v121, 96
    %v718 = vpop.permute.xlu0 %717
    %719 = vrot.lane.b32.xlu0 %v126, 96
    %v720 = vpop.permute.xlu0 %719
    %721 = vrot.lane.b32.xlu0 %v132, 96
    %v722 = vpop.permute.xlu0 %721
    %723 = vrot.lane.b32.xlu0 %v134, 96
    %v724 = vpop.permute.xlu0 %723
    %725 = vrot.lane.b32.xlu0 %v138, 96
    %v726 = vpop.permute.xlu0 %725
    %727 = vrot.lane.b32.xlu0 %v140, 96
    %v728 = vpop.permute.xlu0 %727
    %729 = vrot.lane.b32.xlu0 %v144, 96
    %v730 = vpop.permute.xlu0 %729
    %731 = vrot.lane.b32.xlu0 %v146, 96
    %v732 = vpop.permute.xlu0 %731
    %733 = vrot.lane.b32.xlu0 %v150, 96
    %v734 = vpop.permute.xlu0 %733
    %735 = vrot.lane.b32.xlu0 %v152, 96
    %v736 = vpop.permute.xlu0 %735
    %737 = vrot.lane.b32.xlu0 %v156, 96
    %v738 = vpop.permute.xlu0 %737
    %739 = vrot.lane.b32.xlu0 %v158, 96
    %v740 = vpop.permute.xlu0 %739
    %741 = vrot.lane.b32.xlu0 %v162, 96
    %v742 = vpop.permute.xlu0 %741
    %743 = vrot.lane.b32.xlu0 %v164, 96
    %v744 = vpop.permute.xlu0 %743
    %745 = vrot.lane.b32.xlu0 %v168, 96
    %v746 = vpop.permute.xlu0 %745
    %747 = vrot.lane.b32.xlu0 %v170, 96
    %v748 = vpop.permute.xlu0 %747
    %v765 = vcombine.low %v718, %v726
    %v766 = vcombine.high %v718, %v726
    %v768 = vunpack.c.l.s4 1983009808
    %v769 = vunpack.c.0.s8 %v768
    %v770 = vlaneseq
    %v771 = vshrl.u32 %v770, 7
    %v772 = vsub.s32 %v769, %v771
    %v773 = vrot.slane %v765, %v772
    %v775 = vunpack.c.l.s4 1983009808
    %v776 = vunpack.c.0.s8 %v775
    %v777 = vlaneseq
    %v778 = vshrl.u32 %v777, 7
    %v779 = vsub.s32 %v776, %v778
    %v780 = vrot.slane %v766, %v779
    %v781 = vcombine.low %v722, %v730
    %v782 = vcombine.high %v722, %v730
    %v784 = vunpack.c.l.s4 1983009808
    %v785 = vunpack.c.0.s8 %v784
    %v786 = vlaneseq
    %v787 = vshrl.u32 %v786, 7
    %v788 = vsub.s32 %v785, %v787
    %v789 = vrot.slane %v781, %v788
    %v791 = vunpack.c.l.s4 1983009808
    %v792 = vunpack.c.0.s8 %v791
    %v793 = vlaneseq
    %v794 = vshrl.u32 %v793, 7
    %v795 = vsub.s32 %v792, %v794
    %v796 = vrot.slane %v782, %v795
    %v797 = vcombine.low %v734, %v742
    %v798 = vcombine.high %v734, %v742
    %v800 = vunpack.c.l.s4 1983009808
    %v801 = vunpack.c.0.s8 %v800
    %v802 = vlaneseq
    %v803 = vshrl.u32 %v802, 7
    %v804 = vsub.s32 %v801, %v803
    %v805 = vrot.slane %v797, %v804
    %v807 = vunpack.c.l.s4 1983009808
    %v808 = vunpack.c.0.s8 %v807
    %v809 = vlaneseq
    %v810 = vshrl.u32 %v809, 7
    %v811 = vsub.s32 %v808, %v810
    %v812 = vrot.slane %v798, %v811
    %v813 = vcombine.low %v738, %v746
    %v814 = vcombine.high %v738, %v746
    %v816 = vunpack.c.l.s4 1983009808
    %v817 = vunpack.c.0.s8 %v816
    %v818 = vlaneseq
    %v819 = vshrl.u32 %v818, 7
    %v820 = vsub.s32 %v817, %v819
    %v821 = vrot.slane %v813, %v820
    %v823 = vunpack.c.l.s4 1983009808
    %v824 = vunpack.c.0.s8 %v823
    %v825 = vlaneseq
    %v826 = vshrl.u32 %v825, 7
    %v827 = vsub.s32 %v824, %v826
    %v828 = vrot.slane %v814, %v827
    %v829 = vcombine.low %v773, %v789
    %v830 = vcombine.high %v773, %v789
    %v832 = vunpack.c.l.s4 1934713408
    %v833 = vunpack.c.0.s8 %v832
    %v834 = vlaneseq
    %v835 = vshrl.u32 %v834, 7
    %v836 = vsub.s32 %v833, %v835
    %v837 = vrot.slane %v829, %v836
    %v839 = vunpack.c.l.s4 1934713408
    %v840 = vunpack.c.0.s8 %v839
    %v841 = vlaneseq
    %v842 = vshrl.u32 %v841, 7
    %v843 = vsub.s32 %v840, %v842
    %v844 = vrot.slane %v830, %v843
    %v845 = vcombine.low %v780, %v796
    %v846 = vcombine.high %v780, %v796
    %v848 = vunpack.c.l.s4 1934713408
    %v849 = vunpack.c.0.s8 %v848
    %v850 = vlaneseq
    %v851 = vshrl.u32 %v850, 7
    %v852 = vsub.s32 %v849, %v851
    %v853 = vrot.slane %v845, %v852
    %v855 = vunpack.c.l.s4 1934713408
    %v856 = vunpack.c.0.s8 %v855
    %v857 = vlaneseq
    %v858 = vshrl.u32 %v857, 7
    %v859 = vsub.s32 %v856, %v858
    %v860 = vrot.slane %v846, %v859
    %v861 = vcombine.low %v805, %v821
    %v862 = vcombine.high %v805, %v821
    %v864 = vunpack.c.l.s4 1934713408
    %v865 = vunpack.c.0.s8 %v864
    %v866 = vlaneseq
    %v867 = vshrl.u32 %v866, 7
    %v868 = vsub.s32 %v865, %v867
    %v869 = vrot.slane %v861, %v868
    %v871 = vunpack.c.l.s4 1934713408
    %v872 = vunpack.c.0.s8 %v871
    %v873 = vlaneseq
    %v874 = vshrl.u32 %v873, 7
    %v875 = vsub.s32 %v872, %v874
    %v876 = vrot.slane %v862, %v875
    %v877 = vcombine.low %v812, %v828
    %v878 = vcombine.high %v812, %v828
    %v880 = vunpack.c.l.s4 1934713408
    %v881 = vunpack.c.0.s8 %v880
    %v882 = vlaneseq
    %v883 = vshrl.u32 %v882, 7
    %v884 = vsub.s32 %v881, %v883
    %v885 = vrot.slane %v877, %v884
    %v887 = vunpack.c.l.s4 1934713408
    %v888 = vunpack.c.0.s8 %v887
    %v889 = vlaneseq
    %v890 = vshrl.u32 %v889, 7
    %v891 = vsub.s32 %v888, %v890
    %v892 = vrot.slane %v878, %v891
    %v893 = vcombine.low %v837, %v869
    %v894 = vcombine.high %v837, %v869
    %v895 = vcombine.low %v844, %v876
    %v896 = vcombine.high %v844, %v876
    %v897 = vcombine.low %v853, %v885
    %v898 = vcombine.high %v853, %v885
    %v899 = vcombine.low %v860, %v892
    %v900 = vcombine.high %v860, %v892
    %v901 = vcombine.low %v720, %v728
    %v902 = vcombine.high %v720, %v728
    %v904 = vunpack.c.l.s4 1983009808
    %v905 = vunpack.c.0.s8 %v904
    %v906 = vlaneseq
    %v907 = vshrl.u32 %v906, 7
    %v908 = vsub.s32 %v905, %v907
    %v909 = vrot.slane %v901, %v908
    %v911 = vunpack.c.l.s4 1983009808
    %v912 = vunpack.c.0.s8 %v911
    %v913 = vlaneseq
    %v914 = vshrl.u32 %v913, 7
    %v915 = vsub.s32 %v912, %v914
    %v916 = vrot.slane %v902, %v915
    %v917 = vcombine.low %v724, %v732
    %v918 = vcombine.high %v724, %v732
    %v920 = vunpack.c.l.s4 1983009808
    %v921 = vunpack.c.0.s8 %v920
    %v922 = vlaneseq
    %v923 = vshrl.u32 %v922, 7
    %v924 = vsub.s32 %v921, %v923
    %v925 = vrot.slane %v917, %v924
    %v927 = vunpack.c.l.s4 1983009808
    %v928 = vunpack.c.0.s8 %v927
    %v929 = vlaneseq
    %v930 = vshrl.u32 %v929, 7
    %v931 = vsub.s32 %v928, %v930
    %v932 = vrot.slane %v918, %v931
    %v933 = vcombine.low %v736, %v744
    %v934 = vcombine.high %v736, %v744
    %v936 = vunpack.c.l.s4 1983009808
    %v937 = vunpack.c.0.s8 %v936
    %v938 = vlaneseq
    %v939 = vshrl.u32 %v938, 7
    %v940 = vsub.s32 %v937, %v939
    %v941 = vrot.slane %v933, %v940
    %v943 = vunpack.c.l.s4 1983009808
    %v944 = vunpack.c.0.s8 %v943
    %v945 = vlaneseq
    %v946 = vshrl.u32 %v945, 7
    %v947 = vsub.s32 %v944, %v946
    %v948 = vrot.slane %v934, %v947
    %v949 = vcombine.low %v740, %v748
    %v950 = vcombine.high %v740, %v748
    %v952 = vunpack.c.l.s4 1983009808
    %v953 = vunpack.c.0.s8 %v952
    %v954 = vlaneseq
    %v955 = vshrl.u32 %v954, 7
    %v956 = vsub.s32 %v953, %v955
    %v957 = vrot.slane %v949, %v956
    %v959 = vunpack.c.l.s4 1983009808
    %v960 = vunpack.c.0.s8 %v959
    %v961 = vlaneseq
    %v962 = vshrl.u32 %v961, 7
    %v963 = vsub.s32 %v960, %v962
    %v964 = vrot.slane %v950, %v963
    %v965 = vcombine.low %v909, %v925
    %v966 = vcombine.high %v909, %v925
    %v968 = vunpack.c.l.s4 1934713408
    %v969 = vunpack.c.0.s8 %v968
    %v970 = vlaneseq
    %v971 = vshrl.u32 %v970, 7
    %v972 = vsub.s32 %v969, %v971
    %v973 = vrot.slane %v965, %v972
    %v975 = vunpack.c.l.s4 1934713408
    %v976 = vunpack.c.0.s8 %v975
    %v977 = vlaneseq
    %v978 = vshrl.u32 %v977, 7
    %v979 = vsub.s32 %v976, %v978
    %v980 = vrot.slane %v966, %v979
    %v981 = vcombine.low %v916, %v932
    %v982 = vcombine.high %v916, %v932
    %v984 = vunpack.c.l.s4 1934713408
    %v985 = vunpack.c.0.s8 %v984
    %v986 = vlaneseq
    %v987 = vshrl.u32 %v986, 7
    %v988 = vsub.s32 %v985, %v987
    %v989 = vrot.slane %v981, %v988
    %v991 = vunpack.c.l.s4 1934713408
    %v992 = vunpack.c.0.s8 %v991
    %v993 = vlaneseq
    %v994 = vshrl.u32 %v993, 7
    %v995 = vsub.s32 %v992, %v994
    %v996 = vrot.slane %v982, %v995
    %v997 = vcombine.low %v941, %v957
    %v998 = vcombine.high %v941, %v957
    %v1000 = vunpack.c.l.s4 1934713408
    %v1001 = vunpack.c.0.s8 %v1000
    %v1002 = vlaneseq
    %v1003 = vshrl.u32 %v1002, 7
    %v1004 = vsub.s32 %v1001, %v1003
    %v1005 = vrot.slane %v997, %v1004
    %v1007 = vunpack.c.l.s4 1934713408
    %v1008 = vunpack.c.0.s8 %v1007
    %v1009 = vlaneseq
    %v1010 = vshrl.u32 %v1009, 7
    %v1011 = vsub.s32 %v1008, %v1010
    %v1012 = vrot.slane %v998, %v1011
    %v1013 = vcombine.low %v948, %v964
    %v1014 = vcombine.high %v948, %v964
    %v1016 = vunpack.c.l.s4 1934713408
    %v1017 = vunpack.c.0.s8 %v1016
    %v1018 = vlaneseq
    %v1019 = vshrl.u32 %v1018, 7
    %v1020 = vsub.s32 %v1017, %v1019
    %v1021 = vrot.slane %v1013, %v1020
    %v1023 = vunpack.c.l.s4 1934713408
    %v1024 = vunpack.c.0.s8 %v1023
    %v1025 = vlaneseq
    %v1026 = vshrl.u32 %v1025, 7
    %v1027 = vsub.s32 %v1024, %v1026
    %v1028 = vrot.slane %v1014, %v1027
    %v1029 = vcombine.low %v973, %v1005
    %v1030 = vcombine.high %v973, %v1005
    %v1031 = vcombine.low %v980, %v1012
    %v1032 = vcombine.high %v980, %v1012
    %v1033 = vcombine.low %v989, %v1021
    %v1034 = vcombine.high %v989, %v1021
    %v1035 = vcombine.low %v996, %v1028
    %v1036 = vcombine.high %v996, %v1028
    %v1037 = vcombine.low %v893, %v895
    %v1038 = vcombine.high %v893, %v895
    %v1040 = vunpack.c.l.s4 1983009808
    %v1041 = vunpack.c.0.s8 %v1040
    %v1042 = vlaneseq
    %v1043 = vshrl.u32 %v1042, 7
    %v1044 = vsub.s32 %v1041, %v1043
    %v1045 = vrot.slane %v1037, %v1044
    %v1047 = vunpack.c.l.s4 1983009808
    %v1048 = vunpack.c.0.s8 %v1047
    %v1049 = vlaneseq
    %v1050 = vshrl.u32 %v1049, 7
    %v1051 = vsub.s32 %v1048, %v1050
    %v1052 = vrot.slane %v1038, %v1051
    %v1053 = vcombine.low %v894, %v896
    %v1054 = vcombine.high %v894, %v896
    %v1056 = vunpack.c.l.s4 1983009808
    %v1057 = vunpack.c.0.s8 %v1056
    %v1058 = vlaneseq
    %v1059 = vshrl.u32 %v1058, 7
    %v1060 = vsub.s32 %v1057, %v1059
    %v1061 = vrot.slane %v1053, %v1060
    %v1063 = vunpack.c.l.s4 1983009808
    %v1064 = vunpack.c.0.s8 %v1063
    %v1065 = vlaneseq
    %v1066 = vshrl.u32 %v1065, 7
    %v1067 = vsub.s32 %v1064, %v1066
    %v1068 = vrot.slane %v1054, %v1067
    %v1069 = vcombine.low %v897, %v899
    %v1070 = vcombine.high %v897, %v899
    %v1072 = vunpack.c.l.s4 1983009808
    %v1073 = vunpack.c.0.s8 %v1072
    %v1074 = vlaneseq
    %v1075 = vshrl.u32 %v1074, 7
    %v1076 = vsub.s32 %v1073, %v1075
    %v1077 = vrot.slane %v1069, %v1076
    %v1079 = vunpack.c.l.s4 1983009808
    %v1080 = vunpack.c.0.s8 %v1079
    %v1081 = vlaneseq
    %v1082 = vshrl.u32 %v1081, 7
    %v1083 = vsub.s32 %v1080, %v1082
    %v1084 = vrot.slane %v1070, %v1083
    %v1085 = vcombine.low %v898, %v900
    %v1086 = vcombine.high %v898, %v900
    %v1088 = vunpack.c.l.s4 1983009808
    %v1089 = vunpack.c.0.s8 %v1088
    %v1090 = vlaneseq
    %v1091 = vshrl.u32 %v1090, 7
    %v1092 = vsub.s32 %v1089, %v1091
    %v1093 = vrot.slane %v1085, %v1092
    %v1095 = vunpack.c.l.s4 1983009808
    %v1096 = vunpack.c.0.s8 %v1095
    %v1097 = vlaneseq
    %v1098 = vshrl.u32 %v1097, 7
    %v1099 = vsub.s32 %v1096, %v1098
    %v1100 = vrot.slane %v1086, %v1099
    %v1101 = vcombine.low %v1045, %v1061
    %v1102 = vcombine.high %v1045, %v1061
    %v1104 = vunpack.c.l.s4 1934713408
    %v1105 = vunpack.c.0.s8 %v1104
    %v1106 = vlaneseq
    %v1107 = vshrl.u32 %v1106, 7
    %v1108 = vsub.s32 %v1105, %v1107
    %v1109 = vrot.slane %v1101, %v1108
    %v1111 = vunpack.c.l.s4 1934713408
    %v1112 = vunpack.c.0.s8 %v1111
    %v1113 = vlaneseq
    %v1114 = vshrl.u32 %v1113, 7
    %v1115 = vsub.s32 %v1112, %v1114
    %v1116 = vrot.slane %v1102, %v1115
    %v1117 = vcombine.low %v1052, %v1068
    %v1118 = vcombine.high %v1052, %v1068
    %v1120 = vunpack.c.l.s4 1934713408
    %v1121 = vunpack.c.0.s8 %v1120
    %v1122 = vlaneseq
    %v1123 = vshrl.u32 %v1122, 7
    %v1124 = vsub.s32 %v1121, %v1123
    %v1125 = vrot.slane %v1117, %v1124
    %v1127 = vunpack.c.l.s4 1934713408
    %v1128 = vunpack.c.0.s8 %v1127
    %v1129 = vlaneseq
    %v1130 = vshrl.u32 %v1129, 7
    %v1131 = vsub.s32 %v1128, %v1130
    %v1132 = vrot.slane %v1118, %v1131
    %v1133 = vcombine.low %v1077, %v1093
    %v1134 = vcombine.high %v1077, %v1093
    %v1136 = vunpack.c.l.s4 1934713408
    %v1137 = vunpack.c.0.s8 %v1136
    %v1138 = vlaneseq
    %v1139 = vshrl.u32 %v1138, 7
    %v1140 = vsub.s32 %v1137, %v1139
    %v1141 = vrot.slane %v1133, %v1140
    %v1143 = vunpack.c.l.s4 1934713408
    %v1144 = vunpack.c.0.s8 %v1143
    %v1145 = vlaneseq
    %v1146 = vshrl.u32 %v1145, 7
    %v1147 = vsub.s32 %v1144, %v1146
    %v1148 = vrot.slane %v1134, %v1147
    %v1149 = vcombine.low %v1084, %v1100
    %v1150 = vcombine.high %v1084, %v1100
    %v1152 = vunpack.c.l.s4 1934713408
    %v1153 = vunpack.c.0.s8 %v1152
    %v1154 = vlaneseq
    %v1155 = vshrl.u32 %v1154, 7
    %v1156 = vsub.s32 %v1153, %v1155
    %v1157 = vrot.slane %v1149, %v1156
    %v1159 = vunpack.c.l.s4 1934713408
    %v1160 = vunpack.c.0.s8 %v1159
    %v1161 = vlaneseq
    %v1162 = vshrl.u32 %v1161, 7
    %v1163 = vsub.s32 %v1160, %v1162
    %v1164 = vrot.slane %v1150, %v1163
    %v1165 = vcombine.low %v1109, %v1141
    %v1166 = vcombine.high %v1109, %v1141
    %v1167 = vcombine.low %v1116, %v1148
    %v1168 = vcombine.high %v1116, %v1148
    %v1169 = vcombine.low %v1125, %v1157
    %v1170 = vcombine.high %v1125, %v1157
    %v1171 = vcombine.low %v1132, %v1164
    %v1172 = vcombine.high %v1132, %v1164
    %v1173 = vcombine.low %v1029, %v1031
    %v1174 = vcombine.high %v1029, %v1031
    %v1176 = vunpack.c.l.s4 1983009808
    %v1177 = vunpack.c.0.s8 %v1176
    %v1178 = vlaneseq
    %v1179 = vshrl.u32 %v1178, 7
    %v1180 = vsub.s32 %v1177, %v1179
    %v1181 = vrot.slane %v1173, %v1180
    %v1183 = vunpack.c.l.s4 1983009808
    %v1184 = vunpack.c.0.s8 %v1183
    %v1185 = vlaneseq
    %v1186 = vshrl.u32 %v1185, 7
    %v1187 = vsub.s32 %v1184, %v1186
    %v1188 = vrot.slane %v1174, %v1187
    %v1189 = vcombine.low %v1030, %v1032
    %v1190 = vcombine.high %v1030, %v1032
    %v1192 = vunpack.c.l.s4 1983009808
    %v1193 = vunpack.c.0.s8 %v1192
    %v1194 = vlaneseq
    %v1195 = vshrl.u32 %v1194, 7
    %v1196 = vsub.s32 %v1193, %v1195
    %v1197 = vrot.slane %v1189, %v1196
    %v1199 = vunpack.c.l.s4 1983009808
    %v1200 = vunpack.c.0.s8 %v1199
    %v1201 = vlaneseq
    %v1202 = vshrl.u32 %v1201, 7
    %v1203 = vsub.s32 %v1200, %v1202
    %v1204 = vrot.slane %v1190, %v1203
    %v1205 = vcombine.low %v1033, %v1035
    %v1206 = vcombine.high %v1033, %v1035
    %v1208 = vunpack.c.l.s4 1983009808
    %v1209 = vunpack.c.0.s8 %v1208
    %v1210 = vlaneseq
    %v1211 = vshrl.u32 %v1210, 7
    %v1212 = vsub.s32 %v1209, %v1211
    %v1213 = vrot.slane %v1205, %v1212
    %v1215 = vunpack.c.l.s4 1983009808
    %v1216 = vunpack.c.0.s8 %v1215
    %v1217 = vlaneseq
    %v1218 = vshrl.u32 %v1217, 7
    %v1219 = vsub.s32 %v1216, %v1218
    %v1220 = vrot.slane %v1206, %v1219
    %v1221 = vcombine.low %v1034, %v1036
    %v1222 = vcombine.high %v1034, %v1036
    %v1224 = vunpack.c.l.s4 1983009808
    %v1225 = vunpack.c.0.s8 %v1224
    %v1226 = vlaneseq
    %v1227 = vshrl.u32 %v1226, 7
    %v1228 = vsub.s32 %v1225, %v1227
    %v1229 = vrot.slane %v1221, %v1228
    %v1231 = vunpack.c.l.s4 1983009808
    %v1232 = vunpack.c.0.s8 %v1231
    %v1233 = vlaneseq
    %v1234 = vshrl.u32 %v1233, 7
    %v1235 = vsub.s32 %v1232, %v1234
    %v1236 = vrot.slane %v1222, %v1235
    %v1237 = vcombine.low %v1181, %v1197
    %v1238 = vcombine.high %v1181, %v1197
    %v1240 = vunpack.c.l.s4 1934713408
    %v1241 = vunpack.c.0.s8 %v1240
    %v1242 = vlaneseq
    %v1243 = vshrl.u32 %v1242, 7
    %v1244 = vsub.s32 %v1241, %v1243
    %v1245 = vrot.slane %v1237, %v1244
    %v1247 = vunpack.c.l.s4 1934713408
    %v1248 = vunpack.c.0.s8 %v1247
    %v1249 = vlaneseq
    %v1250 = vshrl.u32 %v1249, 7
    %v1251 = vsub.s32 %v1248, %v1250
    %v1252 = vrot.slane %v1238, %v1251
    %v1253 = vcombine.low %v1188, %v1204
    %v1254 = vcombine.high %v1188, %v1204
    %v1256 = vunpack.c.l.s4 1934713408
    %v1257 = vunpack.c.0.s8 %v1256
    %v1258 = vlaneseq
    %v1259 = vshrl.u32 %v1258, 7
    %v1260 = vsub.s32 %v1257, %v1259
    %v1261 = vrot.slane %v1253, %v1260
    %v1263 = vunpack.c.l.s4 1934713408
    %v1264 = vunpack.c.0.s8 %v1263
    %v1265 = vlaneseq
    %v1266 = vshrl.u32 %v1265, 7
    %v1267 = vsub.s32 %v1264, %v1266
    %v1268 = vrot.slane %v1254, %v1267
    %v1269 = vcombine.low %v1213, %v1229
    %v1270 = vcombine.high %v1213, %v1229
    %v1272 = vunpack.c.l.s4 1934713408
    %v1273 = vunpack.c.0.s8 %v1272
    %v1274 = vlaneseq
    %v1275 = vshrl.u32 %v1274, 7
    %v1276 = vsub.s32 %v1273, %v1275
    %v1277 = vrot.slane %v1269, %v1276
    %v1279 = vunpack.c.l.s4 1934713408
    %v1280 = vunpack.c.0.s8 %v1279
    %v1281 = vlaneseq
    %v1282 = vshrl.u32 %v1281, 7
    %v1283 = vsub.s32 %v1280, %v1282
    %v1284 = vrot.slane %v1270, %v1283
    %v1285 = vcombine.low %v1220, %v1236
    %v1286 = vcombine.high %v1220, %v1236
    %v1288 = vunpack.c.l.s4 1934713408
    %v1289 = vunpack.c.0.s8 %v1288
    %v1290 = vlaneseq
    %v1291 = vshrl.u32 %v1290, 7
    %v1292 = vsub.s32 %v1289, %v1291
    %v1293 = vrot.slane %v1285, %v1292
    %v1295 = vunpack.c.l.s4 1934713408
    %v1296 = vunpack.c.0.s8 %v1295
    %v1297 = vlaneseq
    %v1298 = vshrl.u32 %v1297, 7
    %v1299 = vsub.s32 %v1296, %v1298
    %v1300 = vrot.slane %v1286, %v1299
    %v1301 = vcombine.low %v1245, %v1277
    %v1302 = vcombine.high %v1245, %v1277
    %v1303 = vcombine.low %v1252, %v1284
    %v1304 = vcombine.high %v1252, %v1284
    %v1305 = vcombine.low %v1261, %v1293
    %v1306 = vcombine.high %v1261, %v1293
    %v1307 = vcombine.low %v1268, %v1300
    %v1308 = vcombine.high %v1268, %v1300
    %1309 = vrot.lane.b32.xlu0 %v121, 64
    %v1310 = vpop.permute.xlu0 %1309
    %1311 = vrot.lane.b32.xlu0 %v126, 64
    %v1312 = vpop.permute.xlu0 %1311
    %1313 = vrot.lane.b32.xlu0 %v132, 64
    %v1314 = vpop.permute.xlu0 %1313
    %1315 = vrot.lane.b32.xlu0 %v134, 64
    %v1316 = vpop.permute.xlu0 %1315
    %1317 = vrot.lane.b32.xlu0 %v138, 64
    %v1318 = vpop.permute.xlu0 %1317
    %1319 = vrot.lane.b32.xlu0 %v140, 64
    %v1320 = vpop.permute.xlu0 %1319
    %1321 = vrot.lane.b32.xlu0 %v144, 64
    %v1322 = vpop.permute.xlu0 %1321
    %1323 = vrot.lane.b32.xlu0 %v146, 64
    %v1324 = vpop.permute.xlu0 %1323
    %1325 = vrot.lane.b32.xlu0 %v150, 64
    %v1326 = vpop.permute.xlu0 %1325
    %1327 = vrot.lane.b32.xlu0 %v152, 64
    %v1328 = vpop.permute.xlu0 %1327
    %1329 = vrot.lane.b32.xlu0 %v156, 64
    %v1330 = vpop.permute.xlu0 %1329
    %1331 = vrot.lane.b32.xlu0 %v158, 64
    %v1332 = vpop.permute.xlu0 %1331
    %1333 = vrot.lane.b32.xlu0 %v162, 64
    %v1334 = vpop.permute.xlu0 %1333
    %1335 = vrot.lane.b32.xlu0 %v164, 64
    %v1336 = vpop.permute.xlu0 %1335
    %1337 = vrot.lane.b32.xlu0 %v168, 64
    %v1338 = vpop.permute.xlu0 %1337
    %1339 = vrot.lane.b32.xlu0 %v170, 64
    %v1340 = vpop.permute.xlu0 %1339
    %v1357 = vcombine.low %v1310, %v1318
    %v1358 = vcombine.high %v1310, %v1318
    %v1360 = vunpack.c.l.s4 1983009808
    %v1361 = vunpack.c.0.s8 %v1360
    %v1362 = vlaneseq
    %v1363 = vshrl.u32 %v1362, 7
    %v1364 = vsub.s32 %v1361, %v1363
    %v1365 = vrot.slane %v1357, %v1364
    %v1367 = vunpack.c.l.s4 1983009808
    %v1368 = vunpack.c.0.s8 %v1367
    %v1369 = vlaneseq
    %v1370 = vshrl.u32 %v1369, 7
    %v1371 = vsub.s32 %v1368, %v1370
    %v1372 = vrot.slane %v1358, %v1371
    %v1373 = vcombine.low %v1314, %v1322
    %v1374 = vcombine.high %v1314, %v1322
    %v1376 = vunpack.c.l.s4 1983009808
    %v1377 = vunpack.c.0.s8 %v1376
    %v1378 = vlaneseq
    %v1379 = vshrl.u32 %v1378, 7
    %v1380 = vsub.s32 %v1377, %v1379
    %v1381 = vrot.slane %v1373, %v1380
    %v1383 = vunpack.c.l.s4 1983009808
    %v1384 = vunpack.c.0.s8 %v1383
    %v1385 = vlaneseq
    %v1386 = vshrl.u32 %v1385, 7
    %v1387 = vsub.s32 %v1384, %v1386
    %v1388 = vrot.slane %v1374, %v1387
    %v1389 = vcombine.low %v1326, %v1334
    %v1390 = vcombine.high %v1326, %v1334
    %v1392 = vunpack.c.l.s4 1983009808
    %v1393 = vunpack.c.0.s8 %v1392
    %v1394 = vlaneseq
    %v1395 = vshrl.u32 %v1394, 7
    %v1396 = vsub.s32 %v1393, %v1395
    %v1397 = vrot.slane %v1389, %v1396
    %v1399 = vunpack.c.l.s4 1983009808
    %v1400 = vunpack.c.0.s8 %v1399
    %v1401 = vlaneseq
    %v1402 = vshrl.u32 %v1401, 7
    %v1403 = vsub.s32 %v1400, %v1402
    %v1404 = vrot.slane %v1390, %v1403
    %v1405 = vcombine.low %v1330, %v1338
    %v1406 = vcombine.high %v1330, %v1338
    %v1408 = vunpack.c.l.s4 1983009808
    %v1409 = vunpack.c.0.s8 %v1408
    %v1410 = vlaneseq
    %v1411 = vshrl.u32 %v1410, 7
    %v1412 = vsub.s32 %v1409, %v1411
    %v1413 = vrot.slane %v1405, %v1412
    %v1415 = vunpack.c.l.s4 1983009808
    %v1416 = vunpack.c.0.s8 %v1415
    %v1417 = vlaneseq
    %v1418 = vshrl.u32 %v1417, 7
    %v1419 = vsub.s32 %v1416, %v1418
    %v1420 = vrot.slane %v1406, %v1419
    %v1421 = vcombine.low %v1365, %v1381
    %v1422 = vcombine.high %v1365, %v1381
    %v1424 = vunpack.c.l.s4 1934713408
    %v1425 = vunpack.c.0.s8 %v1424
    %v1426 = vlaneseq
    %v1427 = vshrl.u32 %v1426, 7
    %v1428 = vsub.s32 %v1425, %v1427
    %v1429 = vrot.slane %v1421, %v1428
    %v1431 = vunpack.c.l.s4 1934713408
    %v1432 = vunpack.c.0.s8 %v1431
    %v1433 = vlaneseq
    %v1434 = vshrl.u32 %v1433, 7
    %v1435 = vsub.s32 %v1432, %v1434
    %v1436 = vrot.slane %v1422, %v1435
    %v1437 = vcombine.low %v1372, %v1388
    %v1438 = vcombine.high %v1372, %v1388
    %v1440 = vunpack.c.l.s4 1934713408
    %v1441 = vunpack.c.0.s8 %v1440
    %v1442 = vlaneseq
    %v1443 = vshrl.u32 %v1442, 7
    %v1444 = vsub.s32 %v1441, %v1443
    %v1445 = vrot.slane %v1437, %v1444
    %v1447 = vunpack.c.l.s4 1934713408
    %v1448 = vunpack.c.0.s8 %v1447
    %v1449 = vlaneseq
    %v1450 = vshrl.u32 %v1449, 7
    %v1451 = vsub.s32 %v1448, %v1450
    %v1452 = vrot.slane %v1438, %v1451
    %v1453 = vcombine.low %v1397, %v1413
    %v1454 = vcombine.high %v1397, %v1413
    %v1456 = vunpack.c.l.s4 1934713408
    %v1457 = vunpack.c.0.s8 %v1456
    %v1458 = vlaneseq
    %v1459 = vshrl.u32 %v1458, 7
    %v1460 = vsub.s32 %v1457, %v1459
    %v1461 = vrot.slane %v1453, %v1460
    %v1463 = vunpack.c.l.s4 1934713408
    %v1464 = vunpack.c.0.s8 %v1463
    %v1465 = vlaneseq
    %v1466 = vshrl.u32 %v1465, 7
    %v1467 = vsub.s32 %v1464, %v1466
    %v1468 = vrot.slane %v1454, %v1467
    %v1469 = vcombine.low %v1404, %v1420
    %v1470 = vcombine.high %v1404, %v1420
    %v1472 = vunpack.c.l.s4 1934713408
    %v1473 = vunpack.c.0.s8 %v1472
    %v1474 = vlaneseq
    %v1475 = vshrl.u32 %v1474, 7
    %v1476 = vsub.s32 %v1473, %v1475
    %v1477 = vrot.slane %v1469, %v1476
    %v1479 = vunpack.c.l.s4 1934713408
    %v1480 = vunpack.c.0.s8 %v1479
    %v1481 = vlaneseq
    %v1482 = vshrl.u32 %v1481, 7
    %v1483 = vsub.s32 %v1480, %v1482
    %v1484 = vrot.slane %v1470, %v1483
    %v1485 = vcombine.low %v1429, %v1461
    %v1486 = vcombine.high %v1429, %v1461
    %v1487 = vcombine.low %v1436, %v1468
    %v1488 = vcombine.high %v1436, %v1468
    %v1489 = vcombine.low %v1445, %v1477
    %v1490 = vcombine.high %v1445, %v1477
    %v1491 = vcombine.low %v1452, %v1484
    %v1492 = vcombine.high %v1452, %v1484
    %v1493 = vcombine.low %v1312, %v1320
    %v1494 = vcombine.high %v1312, %v1320
    %v1496 = vunpack.c.l.s4 1983009808
    %v1497 = vunpack.c.0.s8 %v1496
    %v1498 = vlaneseq
    %v1499 = vshrl.u32 %v1498, 7
    %v1500 = vsub.s32 %v1497, %v1499
    %v1501 = vrot.slane %v1493, %v1500
    %v1503 = vunpack.c.l.s4 1983009808
    %v1504 = vunpack.c.0.s8 %v1503
    %v1505 = vlaneseq
    %v1506 = vshrl.u32 %v1505, 7
    %v1507 = vsub.s32 %v1504, %v1506
    %v1508 = vrot.slane %v1494, %v1507
    %v1509 = vcombine.low %v1316, %v1324
    %v1510 = vcombine.high %v1316, %v1324
    %v1512 = vunpack.c.l.s4 1983009808
    %v1513 = vunpack.c.0.s8 %v1512
    %v1514 = vlaneseq
    %v1515 = vshrl.u32 %v1514, 7
    %v1516 = vsub.s32 %v1513, %v1515
    %v1517 = vrot.slane %v1509, %v1516
    %v1519 = vunpack.c.l.s4 1983009808
    %v1520 = vunpack.c.0.s8 %v1519
    %v1521 = vlaneseq
    %v1522 = vshrl.u32 %v1521, 7
    %v1523 = vsub.s32 %v1520, %v1522
    %v1524 = vrot.slane %v1510, %v1523
    %v1525 = vcombine.low %v1328, %v1336
    %v1526 = vcombine.high %v1328, %v1336
    %v1528 = vunpack.c.l.s4 1983009808
    %v1529 = vunpack.c.0.s8 %v1528
    %v1530 = vlaneseq
    %v1531 = vshrl.u32 %v1530, 7
    %v1532 = vsub.s32 %v1529, %v1531
    %v1533 = vrot.slane %v1525, %v1532
    %v1535 = vunpack.c.l.s4 1983009808
    %v1536 = vunpack.c.0.s8 %v1535
    %v1537 = vlaneseq
    %v1538 = vshrl.u32 %v1537, 7
    %v1539 = vsub.s32 %v1536, %v1538
    %v1540 = vrot.slane %v1526, %v1539
    %v1541 = vcombine.low %v1332, %v1340
    %v1542 = vcombine.high %v1332, %v1340
    %v1544 = vunpack.c.l.s4 1983009808
    %v1545 = vunpack.c.0.s8 %v1544
    %v1546 = vlaneseq
    %v1547 = vshrl.u32 %v1546, 7
    %v1548 = vsub.s32 %v1545, %v1547
    %v1549 = vrot.slane %v1541, %v1548
    %v1551 = vunpack.c.l.s4 1983009808
    %v1552 = vunpack.c.0.s8 %v1551
    %v1553 = vlaneseq
    %v1554 = vshrl.u32 %v1553, 7
    %v1555 = vsub.s32 %v1552, %v1554
    %v1556 = vrot.slane %v1542, %v1555
    %v1557 = vcombine.low %v1501, %v1517
    %v1558 = vcombine.high %v1501, %v1517
    %v1560 = vunpack.c.l.s4 1934713408
    %v1561 = vunpack.c.0.s8 %v1560
    %v1562 = vlaneseq
    %v1563 = vshrl.u32 %v1562, 7
    %v1564 = vsub.s32 %v1561, %v1563
    %v1565 = vrot.slane %v1557, %v1564
    %v1567 = vunpack.c.l.s4 1934713408
    %v1568 = vunpack.c.0.s8 %v1567
    %v1569 = vlaneseq
    %v1570 = vshrl.u32 %v1569, 7
    %v1571 = vsub.s32 %v1568, %v1570
    %v1572 = vrot.slane %v1558, %v1571
    %v1573 = vcombine.low %v1508, %v1524
    %v1574 = vcombine.high %v1508, %v1524
    %v1576 = vunpack.c.l.s4 1934713408
    %v1577 = vunpack.c.0.s8 %v1576
    %v1578 = vlaneseq
    %v1579 = vshrl.u32 %v1578, 7
    %v1580 = vsub.s32 %v1577, %v1579
    %v1581 = vrot.slane %v1573, %v1580
    %v1583 = vunpack.c.l.s4 1934713408
    %v1584 = vunpack.c.0.s8 %v1583
    %v1585 = vlaneseq
    %v1586 = vshrl.u32 %v1585, 7
    %v1587 = vsub.s32 %v1584, %v1586
    %v1588 = vrot.slane %v1574, %v1587
    %v1589 = vcombine.low %v1533, %v1549
    %v1590 = vcombine.high %v1533, %v1549
    %v1592 = vunpack.c.l.s4 1934713408
    %v1593 = vunpack.c.0.s8 %v1592
    %v1594 = vlaneseq
    %v1595 = vshrl.u32 %v1594, 7
    %v1596 = vsub.s32 %v1593, %v1595
    %v1597 = vrot.slane %v1589, %v1596
    %v1599 = vunpack.c.l.s4 1934713408
    %v1600 = vunpack.c.0.s8 %v1599
    %v1601 = vlaneseq
    %v1602 = vshrl.u32 %v1601, 7
    %v1603 = vsub.s32 %v1600, %v1602
    %v1604 = vrot.slane %v1590, %v1603
    %v1605 = vcombine.low %v1540, %v1556
    %v1606 = vcombine.high %v1540, %v1556
    %v1608 = vunpack.c.l.s4 1934713408
    %v1609 = vunpack.c.0.s8 %v1608
    %v1610 = vlaneseq
    %v1611 = vshrl.u32 %v1610, 7
    %v1612 = vsub.s32 %v1609, %v1611
    %v1613 = vrot.slane %v1605, %v1612
    %v1615 = vunpack.c.l.s4 1934713408
    %v1616 = vunpack.c.0.s8 %v1615
    %v1617 = vlaneseq
    %v1618 = vshrl.u32 %v1617, 7
    %v1619 = vsub.s32 %v1616, %v1618
    %v1620 = vrot.slane %v1606, %v1619
    %v1621 = vcombine.low %v1565, %v1597
    %v1622 = vcombine.high %v1565, %v1597
    %v1623 = vcombine.low %v1572, %v1604
    %v1624 = vcombine.high %v1572, %v1604
    %v1625 = vcombine.low %v1581, %v1613
    %v1626 = vcombine.high %v1581, %v1613
    %v1627 = vcombine.low %v1588, %v1620
    %v1628 = vcombine.high %v1588, %v1620
    %v1629 = vcombine.low %v1485, %v1487
    %v1630 = vcombine.high %v1485, %v1487
    %v1632 = vunpack.c.l.s4 1983009808
    %v1633 = vunpack.c.0.s8 %v1632
    %v1634 = vlaneseq
    %v1635 = vshrl.u32 %v1634, 7
    %v1636 = vsub.s32 %v1633, %v1635
    %v1637 = vrot.slane %v1629, %v1636
    %v1639 = vunpack.c.l.s4 1983009808
    %v1640 = vunpack.c.0.s8 %v1639
    %v1641 = vlaneseq
    %v1642 = vshrl.u32 %v1641, 7
    %v1643 = vsub.s32 %v1640, %v1642
    %v1644 = vrot.slane %v1630, %v1643
    %v1645 = vcombine.low %v1486, %v1488
    %v1646 = vcombine.high %v1486, %v1488
    %v1648 = vunpack.c.l.s4 1983009808
    %v1649 = vunpack.c.0.s8 %v1648
    %v1650 = vlaneseq
    %v1651 = vshrl.u32 %v1650, 7
    %v1652 = vsub.s32 %v1649, %v1651
    %v1653 = vrot.slane %v1645, %v1652
    %v1655 = vunpack.c.l.s4 1983009808
    %v1656 = vunpack.c.0.s8 %v1655
    %v1657 = vlaneseq
    %v1658 = vshrl.u32 %v1657, 7
    %v1659 = vsub.s32 %v1656, %v1658
    %v1660 = vrot.slane %v1646, %v1659
    %v1661 = vcombine.low %v1489, %v1491
    %v1662 = vcombine.high %v1489, %v1491
    %v1664 = vunpack.c.l.s4 1983009808
    %v1665 = vunpack.c.0.s8 %v1664
    %v1666 = vlaneseq
    %v1667 = vshrl.u32 %v1666, 7
    %v1668 = vsub.s32 %v1665, %v1667
    %v1669 = vrot.slane %v1661, %v1668
    %v1671 = vunpack.c.l.s4 1983009808
    %v1672 = vunpack.c.0.s8 %v1671
    %v1673 = vlaneseq
    %v1674 = vshrl.u32 %v1673, 7
    %v1675 = vsub.s32 %v1672, %v1674
    %v1676 = vrot.slane %v1662, %v1675
    %v1677 = vcombine.low %v1490, %v1492
    %v1678 = vcombine.high %v1490, %v1492
    %v1680 = vunpack.c.l.s4 1983009808
    %v1681 = vunpack.c.0.s8 %v1680
    %v1682 = vlaneseq
    %v1683 = vshrl.u32 %v1682, 7
    %v1684 = vsub.s32 %v1681, %v1683
    %v1685 = vrot.slane %v1677, %v1684
    %v1687 = vunpack.c.l.s4 1983009808
    %v1688 = vunpack.c.0.s8 %v1687
    %v1689 = vlaneseq
    %v1690 = vshrl.u32 %v1689, 7
    %v1691 = vsub.s32 %v1688, %v1690
    %v1692 = vrot.slane %v1678, %v1691
    %v1693 = vcombine.low %v1637, %v1653
    %v1694 = vcombine.high %v1637, %v1653
    %v1696 = vunpack.c.l.s4 1934713408
    %v1697 = vunpack.c.0.s8 %v1696
    %v1698 = vlaneseq
    %v1699 = vshrl.u32 %v1698, 7
    %v1700 = vsub.s32 %v1697, %v1699
    %v1701 = vrot.slane %v1693, %v1700
    %v1703 = vunpack.c.l.s4 1934713408
    %v1704 = vunpack.c.0.s8 %v1703
    %v1705 = vlaneseq
    %v1706 = vshrl.u32 %v1705, 7
    %v1707 = vsub.s32 %v1704, %v1706
    %v1708 = vrot.slane %v1694, %v1707
    %v1709 = vcombine.low %v1644, %v1660
    %v1710 = vcombine.high %v1644, %v1660
    %v1712 = vunpack.c.l.s4 1934713408
    %v1713 = vunpack.c.0.s8 %v1712
    %v1714 = vlaneseq
    %v1715 = vshrl.u32 %v1714, 7
    %v1716 = vsub.s32 %v1713, %v1715
    %v1717 = vrot.slane %v1709, %v1716
    %v1719 = vunpack.c.l.s4 1934713408
    %v1720 = vunpack.c.0.s8 %v1719
    %v1721 = vlaneseq
    %v1722 = vshrl.u32 %v1721, 7
    %v1723 = vsub.s32 %v1720, %v1722
    %v1724 = vrot.slane %v1710, %v1723
    %v1725 = vcombine.low %v1669, %v1685
    %v1726 = vcombine.high %v1669, %v1685
    %v1728 = vunpack.c.l.s4 1934713408
    %v1729 = vunpack.c.0.s8 %v1728
    %v1730 = vlaneseq
    %v1731 = vshrl.u32 %v1730, 7
    %v1732 = vsub.s32 %v1729, %v1731
    %v1733 = vrot.slane %v1725, %v1732
    %v1735 = vunpack.c.l.s4 1934713408
    %v1736 = vunpack.c.0.s8 %v1735
    %v1737 = vlaneseq
    %v1738 = vshrl.u32 %v1737, 7
    %v1739 = vsub.s32 %v1736, %v1738
    %v1740 = vrot.slane %v1726, %v1739
    %v1741 = vcombine.low %v1676, %v1692
    %v1742 = vcombine.high %v1676, %v1692
    %v1744 = vunpack.c.l.s4 1934713408
    %v1745 = vunpack.c.0.s8 %v1744
    %v1746 = vlaneseq
    %v1747 = vshrl.u32 %v1746, 7
    %v1748 = vsub.s32 %v1745, %v1747
    %v1749 = vrot.slane %v1741, %v1748
    %v1751 = vunpack.c.l.s4 1934713408
    %v1752 = vunpack.c.0.s8 %v1751
    %v1753 = vlaneseq
    %v1754 = vshrl.u32 %v1753, 7
    %v1755 = vsub.s32 %v1752, %v1754
    %v1756 = vrot.slane %v1742, %v1755
    %v1757 = vcombine.low %v1701, %v1733
    %v1758 = vcombine.high %v1701, %v1733
    %v1759 = vcombine.low %v1708, %v1740
    %v1760 = vcombine.high %v1708, %v1740
    %v1761 = vcombine.low %v1717, %v1749
    %v1762 = vcombine.high %v1717, %v1749
    %v1763 = vcombine.low %v1724, %v1756
    %v1764 = vcombine.high %v1724, %v1756
    %v1765 = vcombine.low %v1621, %v1623
    %v1766 = vcombine.high %v1621, %v1623
    %v1768 = vunpack.c.l.s4 1983009808
    %v1769 = vunpack.c.0.s8 %v1768
    %v1770 = vlaneseq
    %v1771 = vshrl.u32 %v1770, 7
    %v1772 = vsub.s32 %v1769, %v1771
    %v1773 = vrot.slane %v1765, %v1772
    %v1775 = vunpack.c.l.s4 1983009808
    %v1776 = vunpack.c.0.s8 %v1775
    %v1777 = vlaneseq
    %v1778 = vshrl.u32 %v1777, 7
    %v1779 = vsub.s32 %v1776, %v1778
    %v1780 = vrot.slane %v1766, %v1779
    %v1781 = vcombine.low %v1622, %v1624
    %v1782 = vcombine.high %v1622, %v1624
    %v1784 = vunpack.c.l.s4 1983009808
    %v1785 = vunpack.c.0.s8 %v1784
    %v1786 = vlaneseq
    %v1787 = vshrl.u32 %v1786, 7
    %v1788 = vsub.s32 %v1785, %v1787
    %v1789 = vrot.slane %v1781, %v1788
    %v1791 = vunpack.c.l.s4 1983009808
    %v1792 = vunpack.c.0.s8 %v1791
    %v1793 = vlaneseq
    %v1794 = vshrl.u32 %v1793, 7
    %v1795 = vsub.s32 %v1792, %v1794
    %v1796 = vrot.slane %v1782, %v1795
    %v1797 = vcombine.low %v1625, %v1627
    %v1798 = vcombine.high %v1625, %v1627
    %v1800 = vunpack.c.l.s4 1983009808
    %v1801 = vunpack.c.0.s8 %v1800
    %v1802 = vlaneseq
    %v1803 = vshrl.u32 %v1802, 7
    %v1804 = vsub.s32 %v1801, %v1803
    %v1805 = vrot.slane %v1797, %v1804
    %v1807 = vunpack.c.l.s4 1983009808
    %v1808 = vunpack.c.0.s8 %v1807
    %v1809 = vlaneseq
    %v1810 = vshrl.u32 %v1809, 7
    %v1811 = vsub.s32 %v1808, %v1810
    %v1812 = vrot.slane %v1798, %v1811
    %v1813 = vcombine.low %v1626, %v1628
    %v1814 = vcombine.high %v1626, %v1628
    %v1816 = vunpack.c.l.s4 1983009808
    %v1817 = vunpack.c.0.s8 %v1816
    %v1818 = vlaneseq
    %v1819 = vshrl.u32 %v1818, 7
    %v1820 = vsub.s32 %v1817, %v1819
    %v1821 = vrot.slane %v1813, %v1820
    %v1823 = vunpack.c.l.s4 1983009808
    %v1824 = vunpack.c.0.s8 %v1823
    %v1825 = vlaneseq
    %v1826 = vshrl.u32 %v1825, 7
    %v1827 = vsub.s32 %v1824, %v1826
    %v1828 = vrot.slane %v1814, %v1827
    %v1829 = vcombine.low %v1773, %v1789
    %v1830 = vcombine.high %v1773, %v1789
    %v1832 = vunpack.c.l.s4 1934713408
    %v1833 = vunpack.c.0.s8 %v1832
    %v1834 = vlaneseq
    %v1835 = vshrl.u32 %v1834, 7
    %v1836 = vsub.s32 %v1833, %v1835
    %v1837 = vrot.slane %v1829, %v1836
    %v1839 = vunpack.c.l.s4 1934713408
    %v1840 = vunpack.c.0.s8 %v1839
    %v1841 = vlaneseq
    %v1842 = vshrl.u32 %v1841, 7
    %v1843 = vsub.s32 %v1840, %v1842
    %v1844 = vrot.slane %v1830, %v1843
    %v1845 = vcombine.low %v1780, %v1796
    %v1846 = vcombine.high %v1780, %v1796
    %v1848 = vunpack.c.l.s4 1934713408
    %v1849 = vunpack.c.0.s8 %v1848
    %v1850 = vlaneseq
    %v1851 = vshrl.u32 %v1850, 7
    %v1852 = vsub.s32 %v1849, %v1851
    %v1853 = vrot.slane %v1845, %v1852
    %v1855 = vunpack.c.l.s4 1934713408
    %v1856 = vunpack.c.0.s8 %v1855
    %v1857 = vlaneseq
    %v1858 = vshrl.u32 %v1857, 7
    %v1859 = vsub.s32 %v1856, %v1858
    %v1860 = vrot.slane %v1846, %v1859
    %v1861 = vcombine.low %v1805, %v1821
    %v1862 = vcombine.high %v1805, %v1821
    %v1864 = vunpack.c.l.s4 1934713408
    %v1865 = vunpack.c.0.s8 %v1864
    %v1866 = vlaneseq
    %v1867 = vshrl.u32 %v1866, 7
    %v1868 = vsub.s32 %v1865, %v1867
    %v1869 = vrot.slane %v1861, %v1868
    %v1871 = vunpack.c.l.s4 1934713408
    %v1872 = vunpack.c.0.s8 %v1871
    %v1873 = vlaneseq
    %v1874 = vshrl.u32 %v1873, 7
    %v1875 = vsub.s32 %v1872, %v1874
    %v1876 = vrot.slane %v1862, %v1875
    %v1877 = vcombine.low %v1812, %v1828
    %v1878 = vcombine.high %v1812, %v1828
    %v1880 = vunpack.c.l.s4 1934713408
    %v1881 = vunpack.c.0.s8 %v1880
    %v1882 = vlaneseq
    %v1883 = vshrl.u32 %v1882, 7
    %v1884 = vsub.s32 %v1881, %v1883
    %v1885 = vrot.slane %v1877, %v1884
    %v1887 = vunpack.c.l.s4 1934713408
    %v1888 = vunpack.c.0.s8 %v1887
    %v1889 = vlaneseq
    %v1890 = vshrl.u32 %v1889, 7
    %v1891 = vsub.s32 %v1888, %v1890
    %v1892 = vrot.slane %v1878, %v1891
    %v1893 = vcombine.low %v1837, %v1869
    %v1894 = vcombine.high %v1837, %v1869
    %v1895 = vcombine.low %v1844, %v1876
    %v1896 = vcombine.high %v1844, %v1876
    %v1897 = vcombine.low %v1853, %v1885
    %v1898 = vcombine.high %v1853, %v1885
    %v1899 = vcombine.low %v1860, %v1892
    %v1900 = vcombine.high %v1860, %v1892
    %vm1901 = vcmask 31744
    %v1903 = vsel %vm1901, %v573, 0
    %v1906 = vsel %vm1901, %v1165, 0
    %1908 = vmatprep.subr.mxu0 0.0
    %1909 = vmatpush1.xpose.msra.mxu0 %v1906
    %1910 = vmatprep.subr.mxu0 0.0
    %1911 = vmatpush1.xpose.msra.mxu0 0.0
    %1912 = vmatprep.subr.mxu0 0.0
    %1913 = vmatpush1.xpose.msra.mxu0 0.0
    %1914 = vmatprep.subr.mxu0 0.0
    %1915 = vmatpush1.xpose.msra.mxu0 0.0
    %1916 = vmatprep.subr.mxu0 0.0
    %1917 = vmatpush1.xpose.msra.mxu0 0.0
    %1918 = vmatprep.subr.mxu0 0.0
    %1919 = vmatpush1.xpose.msra.mxu0 0.0
    %1920 = vmatprep.subr.mxu0 0.0
    %1921 = vmatpush1.xpose.msra.mxu0 0.0
    %1922 = vmatprep.subr.mxu0 0.0
    %1923 = vmatpush1.xpose.msra.mxu0 0.0
    %1924 = vmatprep.subr.mxu0 0.0
    %1925 = vmatpush1.xpose.msra.mxu0 0.0
    %1926 = vmatprep.subr.mxu0 0.0
    %1927 = vmatpush1.xpose.msra.mxu0 0.0
    %1928 = vmatprep.subr.mxu0 0.0
    %1929 = vmatpush1.xpose.msra.mxu0 0.0
    %1930 = vmatprep.subr.mxu0 0.0
    %1931 = vmatpush1.xpose.msra.mxu0 0.0
    %1932 = vmatprep.subr.mxu0 0.0
    %1933 = vmatpush1.xpose.msra.mxu0 0.0
    %1934 = vmatprep.subr.mxu0 0.0
    %1935 = vmatpush1.xpose.msra.mxu0 0.0
    %1936 = vmatprep.subr.mxu0 0.0
    %1937 = vmatpush1.xpose.msra.mxu0 0.0
    %1938 = vmatprep.subr.mxu0 0.0
    %1939 = vmatpush1.xpose.msra.mxu0 0.0
    %1940 = vmatprep.subr.mxu0 0.0
    %1941 = vmatpush1.xpose.msra.mxu0 0.0
    %1942 = vmatprep.subr.mxu0 0.0
    %1943 = vmatpush1.xpose.msra.mxu0 0.0
    %1944 = vmatprep.subr.mxu0 0.0
    %1945 = vmatpush1.xpose.msra.mxu0 0.0
    %1946 = vmatprep.subr.mxu0 0.0
    %1947 = vmatpush1.xpose.msra.mxu0 0.0
    %1948 = vmatprep.subr.mxu0 0.0
    %1949 = vmatpush1.xpose.msra.mxu0 0.0
    %1950 = vmatprep.subr.mxu0 0.0
    %1951 = vmatpush1.xpose.msra.mxu0 0.0
    %1952 = vmatprep.subr.mxu0 0.0
    %1953 = vmatpush1.xpose.msra.mxu0 0.0
    %1954 = vmatprep.subr.mxu0 0.0
    %1955 = vmatpush1.xpose.msra.mxu0 0.0
    %1956 = vmatprep.subr.mxu0 0.0
    %1957 = vmatpush1.xpose.msra.mxu0 0.0
    %1958 = vmatprep.subr.mxu0 0.0
    %1959 = vmatpush1.xpose.msra.mxu0 0.0
    %1960 = vmatprep.subr.mxu0 0.0
    %1961 = vmatpush1.xpose.msra.mxu0 0.0
    %1962 = vmatprep.subr.mxu0 0.0
    %1963 = vmatpush1.xpose.msra.mxu0 0.0
    %1964 = vmatprep.subr.mxu0 0.0
    %1965 = vmatpush1.xpose.msra.mxu0 0.0
    %1966 = vmatprep.subr.mxu0 0.0
    %1967 = vmatpush1.xpose.msra.mxu0 0.0
    %1968 = vmatprep.subr.mxu0 0.0
    %1969 = vmatpush1.xpose.msra.mxu0 0.0
    %1970 = vmatprep.subr.mxu0 0.0
    %1971 = vmatpush1.xpose.msra.mxu0 0.0
    %1972 = vmatprep.mubr.f32.mxu0 0.0
    %1973 = vmatmul.mubr.f32.gmra.mrb[0].mxu0 %v1903
    %v1974 = vpop.f32.mrb[0].mxu0
    %v1975 = vadd.f32 0.0, %v1974
    %v1976 = vpop.f32.mrb[0].mxu0
    %1977 = vdwg.mxu0
    %v1979 = vsel %vm1901, %v574, 0
    %v1982 = vsel %vm1901, %v1166, 0
    %1984 = vmatprep.subr.mxu0 0.0
    %1985 = vmatpush1.xpose.msra.mxu0 %v1982
    %1986 = vmatprep.subr.mxu0 0.0
    %1987 = vmatpush1.xpose.msra.mxu0 0.0
    %1988 = vmatprep.subr.mxu0 0.0
    %1989 = vmatpush1.xpose.msra.mxu0 0.0
    %1990 = vmatprep.subr.mxu0 0.0
    %1991 = vmatpush1.xpose.msra.mxu0 0.0
    %1992 = vmatprep.subr.mxu0 0.0
    %1993 = vmatpush1.xpose.msra.mxu0 0.0
    %1994 = vmatprep.subr.mxu0 0.0
    %1995 = vmatpush1.xpose.msra.mxu0 0.0
    %1996 = vmatprep.subr.mxu0 0.0
    %1997 = vmatpush1.xpose.msra.mxu0 0.0
    %1998 = vmatprep.subr.mxu0 0.0
    %1999 = vmatpush1.xpose.msra.mxu0 0.0
    %2000 = vmatprep.subr.mxu0 0.0
    %2001 = vmatpush1.xpose.msra.mxu0 0.0
    %2002 = vmatprep.subr.mxu0 0.0
    %2003 = vmatpush1.xpose.msra.mxu0 0.0
    %2004 = vmatprep.subr.mxu0 0.0
    %2005 = vmatpush1.xpose.msra.mxu0 0.0
    %2006 = vmatprep.subr.mxu0 0.0
    %2007 = vmatpush1.xpose.msra.mxu0 0.0
    %2008 = vmatprep.subr.mxu0 0.0
    %2009 = vmatpush1.xpose.msra.mxu0 0.0
    %2010 = vmatprep.subr.mxu0 0.0
    %2011 = vmatpush1.xpose.msra.mxu0 0.0
    %2012 = vmatprep.subr.mxu0 0.0
    %2013 = vmatpush1.xpose.msra.mxu0 0.0
    %2014 = vmatprep.subr.mxu0 0.0
    %2015 = vmatpush1.xpose.msra.mxu0 0.0
    %2016 = vmatprep.subr.mxu0 0.0
    %2017 = vmatpush1.xpose.msra.mxu0 0.0
    %2018 = vmatprep.subr.mxu0 0.0
    %2019 = vmatpush1.xpose.msra.mxu0 0.0
    %2020 = vmatprep.subr.mxu0 0.0
    %2021 = vmatpush1.xpose.msra.mxu0 0.0
    %2022 = vmatprep.subr.mxu0 0.0
    %2023 = vmatpush1.xpose.msra.mxu0 0.0
    %2024 = vmatprep.subr.mxu0 0.0
    %2025 = vmatpush1.xpose.msra.mxu0 0.0
    %2026 = vmatprep.subr.mxu0 0.0
    %2027 = vmatpush1.xpose.msra.mxu0 0.0
    %2028 = vmatprep.subr.mxu0 0.0
    %2029 = vmatpush1.xpose.msra.mxu0 0.0
    %2030 = vmatprep.subr.mxu0 0.0
    %2031 = vmatpush1.xpose.msra.mxu0 0.0
    %2032 = vmatprep.subr.mxu0 0.0
    %2033 = vmatpush1.xpose.msra.mxu0 0.0
    %2034 = vmatprep.subr.mxu0 0.0
    %2035 = vmatpush1.xpose.msra.mxu0 0.0
    %2036 = vmatprep.subr.mxu0 0.0
    %2037 = vmatpush1.xpose.msra.mxu0 0.0
    %2038 = vmatprep.subr.mxu0 0.0
    %2039 = vmatpush1.xpose.msra.mxu0 0.0
    %2040 = vmatprep.subr.mxu0 0.0
    %2041 = vmatpush1.xpose.msra.mxu0 0.0
    %2042 = vmatprep.subr.mxu0 0.0
    %2043 = vmatpush1.xpose.msra.mxu0 0.0
    %2044 = vmatprep.subr.mxu0 0.0
    %2045 = vmatpush1.xpose.msra.mxu0 0.0
    %2046 = vmatprep.subr.mxu0 0.0
    %2047 = vmatpush1.xpose.msra.mxu0 0.0
    %2048 = vmatprep.mubr.f32.mxu0 0.0
    %2049 = vmatmul.mubr.f32.gmra.mrb[0].mxu0 %v1979
    %v2050 = vpop.f32.mrb[0].mxu0
    %v2051 = vadd.f32 0.0, %v2050
    %v2052 = vpop.f32.mrb[0].mxu0
    %2053 = vdwg.mxu0
    %v2055 = vsel %vm1901, %v575, 0
    %v2058 = vsel %vm1901, %v1167, 0
    %2060 = vmatprep.subr.mxu0 0.0
    %2061 = vmatpush1.xpose.msra.mxu0 %v2058
    %2062 = vmatprep.subr.mxu0 0.0
    %2063 = vmatpush1.xpose.msra.mxu0 0.0
    %2064 = vmatprep.subr.mxu0 0.0
    %2065 = vmatpush1.xpose.msra.mxu0 0.0
    %2066 = vmatprep.subr.mxu0 0.0
    %2067 = vmatpush1.xpose.msra.mxu0 0.0
    %2068 = vmatprep.subr.mxu0 0.0
    %2069 = vmatpush1.xpose.msra.mxu0 0.0
    %2070 = vmatprep.subr.mxu0 0.0
    %2071 = vmatpush1.xpose.msra.mxu0 0.0
    %2072 = vmatprep.subr.mxu0 0.0
    %2073 = vmatpush1.xpose.msra.mxu0 0.0
    %2074 = vmatprep.subr.mxu0 0.0
    %2075 = vmatpush1.xpose.msra.mxu0 0.0
    %2076 = vmatprep.subr.mxu0 0.0
    %2077 = vmatpush1.xpose.msra.mxu0 0.0
    %2078 = vmatprep.subr.mxu0 0.0
    %2079 = vmatpush1.xpose.msra.mxu0 0.0
    %2080 = vmatprep.subr.mxu0 0.0
    %2081 = vmatpush1.xpose.msra.mxu0 0.0
    %2082 = vmatprep.subr.mxu0 0.0
    %2083 = vmatpush1.xpose.msra.mxu0 0.0
    %2084 = vmatprep.subr.mxu0 0.0
    %2085 = vmatpush1.xpose.msra.mxu0 0.0
    %2086 = vmatprep.subr.mxu0 0.0
    %2087 = vmatpush1.xpose.msra.mxu0 0.0
    %2088 = vmatprep.subr.mxu0 0.0
    %2089 = vmatpush1.xpose.msra.mxu0 0.0
    %2090 = vmatprep.subr.mxu0 0.0
    %2091 = vmatpush1.xpose.msra.mxu0 0.0
    %2092 = vmatprep.subr.mxu0 0.0
    %2093 = vmatpush1.xpose.msra.mxu0 0.0
    %2094 = vmatprep.subr.mxu0 0.0
    %2095 = vmatpush1.xpose.msra.mxu0 0.0
    %2096 = vmatprep.subr.mxu0 0.0
    %2097 = vmatpush1.xpose.msra.mxu0 0.0
    %2098 = vmatprep.subr.mxu0 0.0
    %2099 = vmatpush1.xpose.msra.mxu0 0.0
    %2100 = vmatprep.subr.mxu0 0.0
    %2101 = vmatpush1.xpose.msra.mxu0 0.0
    %2102 = vmatprep.subr.mxu0 0.0
    %2103 = vmatpush1.xpose.msra.mxu0 0.0
    %2104 = vmatprep.subr.mxu0 0.0
    %2105 = vmatpush1.xpose.msra.mxu0 0.0
    %2106 = vmatprep.subr.mxu0 0.0
    %2107 = vmatpush1.xpose.msra.mxu0 0.0
    %2108 = vmatprep.subr.mxu0 0.0
    %2109 = vmatpush1.xpose.msra.mxu0 0.0
    %2110 = vmatprep.subr.mxu0 0.0
    %2111 = vmatpush1.xpose.msra.mxu0 0.0
    %2112 = vmatprep.subr.mxu0 0.0
    %2113 = vmatpush1.xpose.msra.mxu0 0.0
    %2114 = vmatprep.subr.mxu0 0.0
    %2115 = vmatpush1.xpose.msra.mxu0 0.0
    %2116 = vmatprep.subr.mxu0 0.0
    %2117 = vmatpush1.xpose.msra.mxu0 0.0
    %2118 = vmatprep.subr.mxu0 0.0
    %2119 = vmatpush1.xpose.msra.mxu0 0.0
    %2120 = vmatprep.subr.mxu0 0.0
    %2121 = vmatpush1.xpose.msra.mxu0 0.0
    %2122 = vmatprep.subr.mxu0 0.0
    %2123 = vmatpush1.xpose.msra.mxu0 0.0
    %2124 = vmatprep.mubr.f32.mxu0 0.0
    %2125 = vmatmul.mubr.f32.gmra.mrb[0].mxu0 %v2055
    %v2126 = vpop.f32.mrb[0].mxu0
    %v2127 = vadd.f32 0.0, %v2126
    %v2128 = vpop.f32.mrb[0].mxu0
    %2129 = vdwg.mxu0
    %v2131 = vsel %vm1901, %v576, 0
    %v2134 = vsel %vm1901, %v1168, 0
    %2136 = vmatprep.subr.mxu0 0.0
    %2137 = vmatpush1.xpose.msra.mxu0 %v2134
    %2138 = vmatprep.subr.mxu0 0.0
    %2139 = vmatpush1.xpose.msra.mxu0 0.0
    %2140 = vmatprep.subr.mxu0 0.0
    %2141 = vmatpush1.xpose.msra.mxu0 0.0
    %2142 = vmatprep.subr.mxu0 0.0
    %2143 = vmatpush1.xpose.msra.mxu0 0.0
    %2144 = vmatprep.subr.mxu0 0.0
    %2145 = vmatpush1.xpose.msra.mxu0 0.0
    %2146 = vmatprep.subr.mxu0 0.0
    %2147 = vmatpush1.xpose.msra.mxu0 0.0
    %2148 = vmatprep.subr.mxu0 0.0
    %2149 = vmatpush1.xpose.msra.mxu0 0.0
    %2150 = vmatprep.subr.mxu0 0.0
    %2151 = vmatpush1.xpose.msra.mxu0 0.0
    %2152 = vmatprep.subr.mxu0 0.0
    %2153 = vmatpush1.xpose.msra.mxu0 0.0
    %2154 = vmatprep.subr.mxu0 0.0
    %2155 = vmatpush1.xpose.msra.mxu0 0.0
    %2156 = vmatprep.subr.mxu0 0.0
    %2157 = vmatpush1.xpose.msra.mxu0 0.0
    %2158 = vmatprep.subr.mxu0 0.0
    %2159 = vmatpush1.xpose.msra.mxu0 0.0
    %2160 = vmatprep.subr.mxu0 0.0
    %2161 = vmatpush1.xpose.msra.mxu0 0.0
    %2162 = vmatprep.subr.mxu0 0.0
    %2163 = vmatpush1.xpose.msra.mxu0 0.0
    %2164 = vmatprep.subr.mxu0 0.0
    %2165 = vmatpush1.xpose.msra.mxu0 0.0
    %2166 = vmatprep.subr.mxu0 0.0
    %2167 = vmatpush1.xpose.msra.mxu0 0.0
    %2168 = vmatprep.subr.mxu0 0.0
    %2169 = vmatpush1.xpose.msra.mxu0 0.0
    %2170 = vmatprep.subr.mxu0 0.0
    %2171 = vmatpush1.xpose.msra.mxu0 0.0
    %2172 = vmatprep.subr.mxu0 0.0
    %2173 = vmatpush1.xpose.msra.mxu0 0.0
    %2174 = vmatprep.subr.mxu0 0.0
    %2175 = vmatpush1.xpose.msra.mxu0 0.0
    %2176 = vmatprep.subr.mxu0 0.0
    %2177 = vmatpush1.xpose.msra.mxu0 0.0
    %2178 = vmatprep.subr.mxu0 0.0
    %2179 = vmatpush1.xpose.msra.mxu0 0.0
    %2180 = vmatprep.subr.mxu0 0.0
    %2181 = vmatpush1.xpose.msra.mxu0 0.0
    %2182 = vmatprep.subr.mxu0 0.0
    %2183 = vmatpush1.xpose.msra.mxu0 0.0
    %2184 = vmatprep.subr.mxu0 0.0
    %2185 = vmatpush1.xpose.msra.mxu0 0.0
    %2186 = vmatprep.subr.mxu0 0.0
    %2187 = vmatpush1.xpose.msra.mxu0 0.0
    %2188 = vmatprep.subr.mxu0 0.0
    %2189 = vmatpush1.xpose.msra.mxu0 0.0
    %2190 = vmatprep.subr.mxu0 0.0
    %2191 = vmatpush1.xpose.msra.mxu0 0.0
    %2192 = vmatprep.subr.mxu0 0.0
    %2193 = vmatpush1.xpose.msra.mxu0 0.0
    %2194 = vmatprep.subr.mxu0 0.0
    %2195 = vmatpush1.xpose.msra.mxu0 0.0
    %2196 = vmatprep.subr.mxu0 0.0
    %2197 = vmatpush1.xpose.msra.mxu0 0.0
    %2198 = vmatprep.subr.mxu0 0.0
    %2199 = vmatpush1.xpose.msra.mxu0 0.0
    %2200 = vmatprep.mubr.f32.mxu0 0.0
    %2201 = vmatmul.mubr.f32.gmra.mrb[0].mxu0 %v2131
    %v2202 = vpop.f32.mrb[0].mxu0
    %v2203 = vadd.f32 0.0, %v2202
    %v2204 = vpop.f32.mrb[0].mxu0
    %2205 = vdwg.mxu0
    %v2207 = vsel %vm1901, %v577, 0
    %v2210 = vsel %vm1901, %v1169, 0
    %2212 = vmatprep.subr.mxu0 0.0
    %2213 = vmatpush1.xpose.msra.mxu0 %v2210
    %2214 = vmatprep.subr.mxu0 0.0
    %2215 = vmatpush1.xpose.msra.mxu0 0.0
    %2216 = vmatprep.subr.mxu0 0.0
    %2217 = vmatpush1.xpose.msra.mxu0 0.0
    %2218 = vmatprep.subr.mxu0 0.0
    %2219 = vmatpush1.xpose.msra.mxu0 0.0
    %2220 = vmatprep.subr.mxu0 0.0
    %2221 = vmatpush1.xpose.msra.mxu0 0.0
    %2222 = vmatprep.subr.mxu0 0.0
    %2223 = vmatpush1.xpose.msra.mxu0 0.0
    %2224 = vmatprep.subr.mxu0 0.0
    %2225 = vmatpush1.xpose.msra.mxu0 0.0
    %2226 = vmatprep.subr.mxu0 0.0
    %2227 = vmatpush1.xpose.msra.mxu0 0.0
    %2228 = vmatprep.subr.mxu0 0.0
    %2229 = vmatpush1.xpose.msra.mxu0 0.0
    %2230 = vmatprep.subr.mxu0 0.0
    %2231 = vmatpush1.xpose.msra.mxu0 0.0
    %2232 = vmatprep.subr.mxu0 0.0
    %2233 = vmatpush1.xpose.msra.mxu0 0.0
    %2234 = vmatprep.subr.mxu0 0.0
    %2235 = vmatpush1.xpose.msra.mxu0 0.0
    %2236 = vmatprep.subr.mxu0 0.0
    %2237 = vmatpush1.xpose.msra.mxu0 0.0
    %2238 = vmatprep.subr.mxu0 0.0
    %2239 = vmatpush1.xpose.msra.mxu0 0.0
    %2240 = vmatprep.subr.mxu0 0.0
    %2241 = vmatpush1.xpose.msra.mxu0 0.0
    %2242 = vmatprep.subr.mxu0 0.0
    %2243 = vmatpush1.xpose.msra.mxu0 0.0
    %2244 = vmatprep.subr.mxu0 0.0
    %2245 = vmatpush1.xpose.msra.mxu0 0.0
    %2246 = vmatprep.subr.mxu0 0.0
    %2247 = vmatpush1.xpose.msra.mxu0 0.0
    %2248 = vmatprep.subr.mxu0 0.0
    %2249 = vmatpush1.xpose.msra.mxu0 0.0
    %2250 = vmatprep.subr.mxu0 0.0
    %2251 = vmatpush1.xpose.msra.mxu0 0.0
    %2252 = vmatprep.subr.mxu0 0.0
    %2253 = vmatpush1.xpose.msra.mxu0 0.0
    %2254 = vmatprep.subr.mxu0 0.0
    %2255 = vmatpush1.xpose.msra.mxu0 0.0
    %2256 = vmatprep.subr.mxu0 0.0
    %2257 = vmatpush1.xpose.msra.mxu0 0.0
    %2258 = vmatprep.subr.mxu0 0.0
    %2259 = vmatpush1.xpose.msra.mxu0 0.0
    %2260 = vmatprep.subr.mxu0 0.0
    %2261 = vmatpush1.xpose.msra.mxu0 0.0
    %2262 = vmatprep.subr.mxu0 0.0
    %2263 = vmatpush1.xpose.msra.mxu0 0.0
    %2264 = vmatprep.subr.mxu0 0.0
    %2265 = vmatpush1.xpose.msra.mxu0 0.0
    %2266 = vmatprep.subr.mxu0 0.0
    %2267 = vmatpush1.xpose.msra.mxu0 0.0
    %2268 = vmatprep.subr.mxu0 0.0
    %2269 = vmatpush1.xpose.msra.mxu0 0.0
    %2270 = vmatprep.subr.mxu0 0.0
    %2271 = vmatpush1.xpose.msra.mxu0 0.0
    %2272 = vmatprep.subr.mxu0 0.0
    %2273 = vmatpush1.xpose.msra.mxu0 0.0
    %2274 = vmatprep.subr.mxu0 0.0
    %2275 = vmatpush1.xpose.msra.mxu0 0.0
    %2276 = vmatprep.mubr.f32.mxu0 0.0
    %2277 = vmatmul.mubr.f32.gmra.mrb[0].mxu0 %v2207
    %v2278 = vpop.f32.mrb[0].mxu0
    %v2279 = vadd.f32 0.0, %v2278
    %v2280 = vpop.f32.mrb[0].mxu0
    %2281 = vdwg.mxu0
    %v2283 = vsel %vm1901, %v578, 0
    %v2286 = vsel %vm1901, %v1170, 0
    %2288 = vmatprep.subr.mxu0 0.0
    %2289 = vmatpush1.xpose.msra.mxu0 %v2286
    %2290 = vmatprep.subr.mxu0 0.0
    %2291 = vmatpush1.xpose.msra.mxu0 0.0
    %2292 = vmatprep.subr.mxu0 0.0
    %2293 = vmatpush1.xpose.msra.mxu0 0.0
    %2294 = vmatprep.subr.mxu0 0.0
    %2295 = vmatpush1.xpose.msra.mxu0 0.0
    %2296 = vmatprep.subr.mxu0 0.0
    %2297 = vmatpush1.xpose.msra.mxu0 0.0
    %2298 = vmatprep.subr.mxu0 0.0
    %2299 = vmatpush1.xpose.msra.mxu0 0.0
    %2300 = vmatprep.subr.mxu0 0.0
    %2301 = vmatpush1.xpose.msra.mxu0 0.0
    %2302 = vmatprep.subr.mxu0 0.0
    %2303 = vmatpush1.xpose.msra.mxu0 0.0
    %2304 = vmatprep.subr.mxu0 0.0
    %2305 = vmatpush1.xpose.msra.mxu0 0.0
    %2306 = vmatprep.subr.mxu0 0.0
    %2307 = vmatpush1.xpose.msra.mxu0 0.0
    %2308 = vmatprep.subr.mxu0 0.0
    %2309 = vmatpush1.xpose.msra.mxu0 0.0
    %2310 = vmatprep.subr.mxu0 0.0
    %2311 = vmatpush1.xpose.msra.mxu0 0.0
    %2312 = vmatprep.subr.mxu0 0.0
    %2313 = vmatpush1.xpose.msra.mxu0 0.0
    %2314 = vmatprep.subr.mxu0 0.0
    %2315 = vmatpush1.xpose.msra.mxu0 0.0
    %2316 = vmatprep.subr.mxu0 0.0
    %2317 = vmatpush1.xpose.msra.mxu0 0.0
    %2318 = vmatprep.subr.mxu0 0.0
    %2319 = vmatpush1.xpose.msra.mxu0 0.0
    %2320 = vmatprep.subr.mxu0 0.0
    %2321 = vmatpush1.xpose.msra.mxu0 0.0
    %2322 = vmatprep.subr.mxu0 0.0
    %2323 = vmatpush1.xpose.msra.mxu0 0.0
    %2324 = vmatprep.subr.mxu0 0.0
    %2325 = vmatpush1.xpose.msra.mxu0 0.0
    %2326 = vmatprep.subr.mxu0 0.0
    %2327 = vmatpush1.xpose.msra.mxu0 0.0
    %2328 = vmatprep.subr.mxu0 0.0
    %2329 = vmatpush1.xpose.msra.mxu0 0.0
    %2330 = vmatprep.subr.mxu0 0.0
    %2331 = vmatpush1.xpose.msra.mxu0 0.0
    %2332 = vmatprep.subr.mxu0 0.0
    %2333 = vmatpush1.xpose.msra.mxu0 0.0
    %2334 = vmatprep.subr.mxu0 0.0
    %2335 = vmatpush1.xpose.msra.mxu0 0.0
    %2336 = vmatprep.subr.mxu0 0.0
    %2337 = vmatpush1.xpose.msra.mxu0 0.0
    %2338 = vmatprep.subr.mxu0 0.0
    %2339 = vmatpush1.xpose.msra.mxu0 0.0
    %2340 = vmatprep.subr.mxu0 0.0
    %2341 = vmatpush1.xpose.msra.mxu0 0.0
    %2342 = vmatprep.subr.mxu0 0.0
    %2343 = vmatpush1.xpose.msra.mxu0 0.0
    %2344 = vmatprep.subr.mxu0 0.0
    %2345 = vmatpush1.xpose.msra.mxu0 0.0
    %2346 = vmatprep.subr.mxu0 0.0
    %2347 = vmatpush1.xpose.msra.mxu0 0.0
    %2348 = vmatprep.subr.mxu0 0.0
    %2349 = vmatpush1.xpose.msra.mxu0 0.0
    %2350 = vmatprep.subr.mxu0 0.0
    %2351 = vmatpush1.xpose.msra.mxu0 0.0
    %2352 = vmatprep.mubr.f32.mxu0 0.0
    %2353 = vmatmul.mubr.f32.gmra.mrb[0].mxu0 %v2283
    %v2354 = vpop.f32.mrb[0].mxu0
    %v2355 = vadd.f32 0.0, %v2354
    %v2356 = vpop.f32.mrb[0].mxu0
    %2357 = vdwg.mxu0
    %v2359 = vsel %vm1901, %v579, 0
    %v2362 = vsel %vm1901, %v1171, 0
    %2364 = vmatprep.subr.mxu0 0.0
    %2365 = vmatpush1.xpose.msra.mxu0 %v2362
    %2366 = vmatprep.subr.mxu0 0.0
    %2367 = vmatpush1.xpose.msra.mxu0 0.0
    %2368 = vmatprep.subr.mxu0 0.0
    %2369 = vmatpush1.xpose.msra.mxu0 0.0
    %2370 = vmatprep.subr.mxu0 0.0
    %2371 = vmatpush1.xpose.msra.mxu0 0.0
    %2372 = vmatprep.subr.mxu0 0.0
    %2373 = vmatpush1.xpose.msra.mxu0 0.0
    %2374 = vmatprep.subr.mxu0 0.0
    %2375 = vmatpush1.xpose.msra.mxu0 0.0
    %2376 = vmatprep.subr.mxu0 0.0
    %2377 = vmatpush1.xpose.msra.mxu0 0.0
    %2378 = vmatprep.subr.mxu0 0.0
    %2379 = vmatpush1.xpose.msra.mxu0 0.0
    %2380 = vmatprep.subr.mxu0 0.0
    %2381 = vmatpush1.xpose.msra.mxu0 0.0
    %2382 = vmatprep.subr.mxu0 0.0
    %2383 = vmatpush1.xpose.msra.mxu0 0.0
    %2384 = vmatprep.subr.mxu0 0.0
    %2385 = vmatpush1.xpose.msra.mxu0 0.0
    %2386 = vmatprep.subr.mxu0 0.0
    %2387 = vmatpush1.xpose.msra.mxu0 0.0
    %2388 = vmatprep.subr.mxu0 0.0
    %2389 = vmatpush1.xpose.msra.mxu0 0.0
    %2390 = vmatprep.subr.mxu0 0.0
    %2391 = vmatpush1.xpose.msra.mxu0 0.0
    %2392 = vmatprep.subr.mxu0 0.0
    %2393 = vmatpush1.xpose.msra.mxu0 0.0
    %2394 = vmatprep.subr.mxu0 0.0
    %2395 = vmatpush1.xpose.msra.mxu0 0.0
    %2396 = vmatprep.subr.mxu0 0.0
    %2397 = vmatpush1.xpose.msra.mxu0 0.0
    %2398 = vmatprep.subr.mxu0 0.0
    %2399 = vmatpush1.xpose.msra.mxu0 0.0
    %2400 = vmatprep.subr.mxu0 0.0
    %2401 = vmatpush1.xpose.msra.mxu0 0.0
    %2402 = vmatprep.subr.mxu0 0.0
    %2403 = vmatpush1.xpose.msra.mxu0 0.0
    %2404 = vmatprep.subr.mxu0 0.0
    %2405 = vmatpush1.xpose.msra.mxu0 0.0
    %2406 = vmatprep.subr.mxu0 0.0
    %2407 = vmatpush1.xpose.msra.mxu0 0.0
    %2408 = vmatprep.subr.mxu0 0.0
    %2409 = vmatpush1.xpose.msra.mxu0 0.0
    %2410 = vmatprep.subr.mxu0 0.0
    %2411 = vmatpush1.xpose.msra.mxu0 0.0
    %2412 = vmatprep.subr.mxu0 0.0
    %2413 = vmatpush1.xpose.msra.mxu0 0.0
    %2414 = vmatprep.subr.mxu0 0.0
    %2415 = vmatpush1.xpose.msra.mxu0 0.0
    %2416 = vmatprep.subr.mxu0 0.0
    %2417 = vmatpush1.xpose.msra.mxu0 0.0
    %2418 = vmatprep.subr.mxu0 0.0
    %2419 = vmatpush1.xpose.msra.mxu0 0.0
    %2420 = vmatprep.subr.mxu0 0.0
    %2421 = vmatpush1.xpose.msra.mxu0 0.0
    %2422 = vmatprep.subr.mxu0 0.0
    %2423 = vmatpush1.xpose.msra.mxu0 0.0
    %2424 = vmatprep.subr.mxu0 0.0
    %2425 = vmatpush1.xpose.msra.mxu0 0.0
    %2426 = vmatprep.subr.mxu0 0.0
    %2427 = vmatpush1.xpose.msra.mxu0 0.0
    %2428 = vmatprep.mubr.f32.mxu0 0.0
    %2429 = vmatmul.mubr.f32.gmra.mrb[0].mxu0 %v2359
    %v2430 = vpop.f32.mrb[0].mxu0
    %v2431 = vadd.f32 0.0, %v2430
    %v2432 = vpop.f32.mrb[0].mxu0
    %2433 = vdwg.mxu0
    %v2435 = vsel %vm1901, %v580, 0
    %v2438 = vsel %vm1901, %v1172, 0
    %2440 = vmatprep.subr.mxu0 0.0
    %2441 = vmatpush1.xpose.msra.mxu0 %v2438
    %2442 = vmatprep.subr.mxu0 0.0
    %2443 = vmatpush1.xpose.msra.mxu0 0.0
    %2444 = vmatprep.subr.mxu0 0.0
    %2445 = vmatpush1.xpose.msra.mxu0 0.0
    %2446 = vmatprep.subr.mxu0 0.0
    %2447 = vmatpush1.xpose.msra.mxu0 0.0
    %2448 = vmatprep.subr.mxu0 0.0
    %2449 = vmatpush1.xpose.msra.mxu0 0.0
    %2450 = vmatprep.subr.mxu0 0.0
    %2451 = vmatpush1.xpose.msra.mxu0 0.0
    %2452 = vmatprep.subr.mxu0 0.0
    %2453 = vmatpush1.xpose.msra.mxu0 0.0
    %2454 = vmatprep.subr.mxu0 0.0
    %2455 = vmatpush1.xpose.msra.mxu0 0.0
    %2456 = vmatprep.subr.mxu0 0.0
    %2457 = vmatpush1.xpose.msra.mxu0 0.0
    %2458 = vmatprep.subr.mxu0 0.0
    %2459 = vmatpush1.xpose.msra.mxu0 0.0
    %2460 = vmatprep.subr.mxu0 0.0
    %2461 = vmatpush1.xpose.msra.mxu0 0.0
    %2462 = vmatprep.subr.mxu0 0.0
    %2463 = vmatpush1.xpose.msra.mxu0 0.0
    %2464 = vmatprep.subr.mxu0 0.0
    %2465 = vmatpush1.xpose.msra.mxu0 0.0
    %2466 = vmatprep.subr.mxu0 0.0
    %2467 = vmatpush1.xpose.msra.mxu0 0.0
    %2468 = vmatprep.subr.mxu0 0.0
    %2469 = vmatpush1.xpose.msra.mxu0 0.0
    %2470 = vmatprep.subr.mxu0 0.0
    %2471 = vmatpush1.xpose.msra.mxu0 0.0
    %2472 = vmatprep.subr.mxu0 0.0
    %2473 = vmatpush1.xpose.msra.mxu0 0.0
    %2474 = vmatprep.subr.mxu0 0.0
    %2475 = vmatpush1.xpose.msra.mxu0 0.0
    %2476 = vmatprep.subr.mxu0 0.0
    %2477 = vmatpush1.xpose.msra.mxu0 0.0
    %2478 = vmatprep.subr.mxu0 0.0
    %2479 = vmatpush1.xpose.msra.mxu0 0.0
    %2480 = vmatprep.subr.mxu0 0.0
    %2481 = vmatpush1.xpose.msra.mxu0 0.0
    %2482 = vmatprep.subr.mxu0 0.0
    %2483 = vmatpush1.xpose.msra.mxu0 0.0
    %2484 = vmatprep.subr.mxu0 0.0
    %2485 = vmatpush1.xpose.msra.mxu0 0.0
    %2486 = vmatprep.subr.mxu0 0.0
    %2487 = vmatpush1.xpose.msra.mxu0 0.0
    %2488 = vmatprep.subr.mxu0 0.0
    %2489 = vmatpush1.xpose.msra.mxu0 0.0
    %2490 = vmatprep.subr.mxu0 0.0
    %2491 = vmatpush1.xpose.msra.mxu0 0.0
    %2492 = vmatprep.subr.mxu0 0.0
    %2493 = vmatpush1.xpose.msra.mxu0 0.0
    %2494 = vmatprep.subr.mxu0 0.0
    %2495 = vmatpush1.xpose.msra.mxu0 0.0
    %2496 = vmatprep.subr.mxu0 0.0
    %2497 = vmatpush1.xpose.msra.mxu0 0.0
    %2498 = vmatprep.subr.mxu0 0.0
    %2499 = vmatpush1.xpose.msra.mxu0 0.0
    %2500 = vmatprep.subr.mxu0 0.0
    %2501 = vmatpush1.xpose.msra.mxu0 0.0
    %2502 = vmatprep.subr.mxu0 0.0
    %2503 = vmatpush1.xpose.msra.mxu0 0.0
    %2504 = vmatprep.mubr.f32.mxu0 0.0
    %2505 = vmatmul.mubr.f32.gmra.mrb[0].mxu0 %v2435
    %v2506 = vpop.f32.mrb[0].mxu0
    %v2507 = vadd.f32 0.0, %v2506
    %v2508 = vpop.f32.mrb[0].mxu0
    %2509 = vdwg.mxu0
    %v2511 = vsel %vm1901, %v709, 0
    %v2514 = vsel %vm1901, %v1301, 0
    %2516 = vmatprep.subr.mxu0 0.0
    %2517 = vmatpush1.xpose.msra.mxu0 %v2514
    %2518 = vmatprep.subr.mxu0 0.0
    %2519 = vmatpush1.xpose.msra.mxu0 0.0
    %2520 = vmatprep.subr.mxu0 0.0
    %2521 = vmatpush1.xpose.msra.mxu0 0.0
    %2522 = vmatprep.subr.mxu0 0.0
    %2523 = vmatpush1.xpose.msra.mxu0 0.0
    %2524 = vmatprep.subr.mxu0 0.0
    %2525 = vmatpush1.xpose.msra.mxu0 0.0
    %2526 = vmatprep.subr.mxu0 0.0
    %2527 = vmatpush1.xpose.msra.mxu0 0.0
    %2528 = vmatprep.subr.mxu0 0.0
    %2529 = vmatpush1.xpose.msra.mxu0 0.0
    %2530 = vmatprep.subr.mxu0 0.0
    %2531 = vmatpush1.xpose.msra.mxu0 0.0
    %2532 = vmatprep.subr.mxu0 0.0
    %2533 = vmatpush1.xpose.msra.mxu0 0.0
    %2534 = vmatprep.subr.mxu0 0.0
    %2535 = vmatpush1.xpose.msra.mxu0 0.0
    %2536 = vmatprep.subr.mxu0 0.0
    %2537 = vmatpush1.xpose.msra.mxu0 0.0
    %2538 = vmatprep.subr.mxu0 0.0
    %2539 = vmatpush1.xpose.msra.mxu0 0.0
    %2540 = vmatprep.subr.mxu0 0.0
    %2541 = vmatpush1.xpose.msra.mxu0 0.0
    %2542 = vmatprep.subr.mxu0 0.0
    %2543 = vmatpush1.xpose.msra.mxu0 0.0
    %2544 = vmatprep.subr.mxu0 0.0
    %2545 = vmatpush1.xpose.msra.mxu0 0.0
    %2546 = vmatprep.subr.mxu0 0.0
    %2547 = vmatpush1.xpose.msra.mxu0 0.0
    %2548 = vmatprep.subr.mxu0 0.0
    %2549 = vmatpush1.xpose.msra.mxu0 0.0
    %2550 = vmatprep.subr.mxu0 0.0
    %2551 = vmatpush1.xpose.msra.mxu0 0.0
    %2552 = vmatprep.subr.mxu0 0.0
    %2553 = vmatpush1.xpose.msra.mxu0 0.0
    %2554 = vmatprep.subr.mxu0 0.0
    %2555 = vmatpush1.xpose.msra.mxu0 0.0
    %2556 = vmatprep.subr.mxu0 0.0
    %2557 = vmatpush1.xpose.msra.mxu0 0.0
    %2558 = vmatprep.subr.mxu0 0.0
    %2559 = vmatpush1.xpose.msra.mxu0 0.0
    %2560 = vmatprep.subr.mxu0 0.0
    %2561 = vmatpush1.xpose.msra.mxu0 0.0
    %2562 = vmatprep.subr.mxu0 0.0
    %2563 = vmatpush1.xpose.msra.mxu0 0.0
    %2564 = vmatprep.subr.mxu0 0.0
    %2565 = vmatpush1.xpose.msra.mxu0 0.0
    %2566 = vmatprep.subr.mxu0 0.0
    %2567 = vmatpush1.xpose.msra.mxu0 0.0
    %2568 = vmatprep.subr.mxu0 0.0
    %2569 = vmatpush1.xpose.msra.mxu0 0.0
    %2570 = vmatprep.subr.mxu0 0.0
    %2571 = vmatpush1.xpose.msra.mxu0 0.0
    %2572 = vmatprep.subr.mxu0 0.0
    %2573 = vmatpush1.xpose.msra.mxu0 0.0
    %2574 = vmatprep.subr.mxu0 0.0
    %2575 = vmatpush1.xpose.msra.mxu0 0.0
    %2576 = vmatprep.subr.mxu0 0.0
    %2577 = vmatpush1.xpose.msra.mxu0 0.0
    %2578 = vmatprep.subr.mxu0 0.0
    %2579 = vmatpush1.xpose.msra.mxu0 0.0
    %2580 = vmatprep.mubr.f32.mxu0 0.0
    %2581 = vmatmul.mubr.f32.gmra.mrb[0].mxu0 %v2511
    %v2582 = vpop.f32.mrb[0].mxu0
    %v2583 = vadd.f32 0.0, %v2582
    %v2584 = vpop.f32.mrb[0].mxu0
    %2585 = vdwg.mxu0
    %v2587 = vsel %vm1901, %v710, 0
    %v2590 = vsel %vm1901, %v1302, 0
    %2592 = vmatprep.subr.mxu0 0.0
    %2593 = vmatpush1.xpose.msra.mxu0 %v2590
    %2594 = vmatprep.subr.mxu0 0.0
    %2595 = vmatpush1.xpose.msra.mxu0 0.0
    %2596 = vmatprep.subr.mxu0 0.0
    %2597 = vmatpush1.xpose.msra.mxu0 0.0
    %2598 = vmatprep.subr.mxu0 0.0
    %2599 = vmatpush1.xpose.msra.mxu0 0.0
    %2600 = vmatprep.subr.mxu0 0.0
    %2601 = vmatpush1.xpose.msra.mxu0 0.0
    %2602 = vmatprep.subr.mxu0 0.0
    %2603 = vmatpush1.xpose.msra.mxu0 0.0
    %2604 = vmatprep.subr.mxu0 0.0
    %2605 = vmatpush1.xpose.msra.mxu0 0.0
    %2606 = vmatprep.subr.mxu0 0.0
    %2607 = vmatpush1.xpose.msra.mxu0 0.0
    %2608 = vmatprep.subr.mxu0 0.0
    %2609 = vmatpush1.xpose.msra.mxu0 0.0
    %2610 = vmatprep.subr.mxu0 0.0
    %2611 = vmatpush1.xpose.msra.mxu0 0.0
    %2612 = vmatprep.subr.mxu0 0.0
    %2613 = vmatpush1.xpose.msra.mxu0 0.0
    %2614 = vmatprep.subr.mxu0 0.0
    %2615 = vmatpush1.xpose.msra.mxu0 0.0
    %2616 = vmatprep.subr.mxu0 0.0
    %2617 = vmatpush1.xpose.msra.mxu0 0.0
    %2618 = vmatprep.subr.mxu0 0.0
    %2619 = vmatpush1.xpose.msra.mxu0 0.0
    %2620 = vmatprep.subr.mxu0 0.0
    %2621 = vmatpush1.xpose.msra.mxu0 0.0
    %2622 = vmatprep.subr.mxu0 0.0
    %2623 = vmatpush1.xpose.msra.mxu0 0.0
    %2624 = vmatprep.subr.mxu0 0.0
    %2625 = vmatpush1.xpose.msra.mxu0 0.0
    %2626 = vmatprep.subr.mxu0 0.0
    %2627 = vmatpush1.xpose.msra.mxu0 0.0
    %2628 = vmatprep.subr.mxu0 0.0
    %2629 = vmatpush1.xpose.msra.mxu0 0.0
    %2630 = vmatprep.subr.mxu0 0.0
    %2631 = vmatpush1.xpose.msra.mxu0 0.0
    %2632 = vmatprep.subr.mxu0 0.0
    %2633 = vmatpush1.xpose.msra.mxu0 0.0
    %2634 = vmatprep.subr.mxu0 0.0
    %2635 = vmatpush1.xpose.msra.mxu0 0.0
    %2636 = vmatprep.subr.mxu0 0.0
    %2637 = vmatpush1.xpose.msra.mxu0 0.0
    %2638 = vmatprep.subr.mxu0 0.0
    %2639 = vmatpush1.xpose.msra.mxu0 0.0
    %2640 = vmatprep.subr.mxu0 0.0
    %2641 = vmatpush1.xpose.msra.mxu0 0.0
    %2642 = vmatprep.subr.mxu0 0.0
    %2643 = vmatpush1.xpose.msra.mxu0 0.0
    %2644 = vmatprep.subr.mxu0 0.0
    %2645 = vmatpush1.xpose.msra.mxu0 0.0
    %2646 = vmatprep.subr.mxu0 0.0
    %2647 = vmatpush1.xpose.msra.mxu0 0.0
    %2648 = vmatprep.subr.mxu0 0.0
    %2649 = vmatpush1.xpose.msra.mxu0 0.0
    %2650 = vmatprep.subr.mxu0 0.0
    %2651 = vmatpush1.xpose.msra.mxu0 0.0
    %2652 = vmatprep.subr.mxu0 0.0
    %2653 = vmatpush1.xpose.msra.mxu0 0.0
    %2654 = vmatprep.subr.mxu0 0.0
    %2655 = vmatpush1.xpose.msra.mxu0 0.0
    %2656 = vmatprep.mubr.f32.mxu0 0.0
    %2657 = vmatmul.mubr.f32.gmra.mrb[0].mxu0 %v2587
    %v2658 = vpop.f32.mrb[0].mxu0
    %v2659 = vadd.f32 0.0, %v2658
    %v2660 = vpop.f32.mrb[0].mxu0
    %2661 = vdwg.mxu0
    %v2663 = vsel %vm1901, %v711, 0
    %v2666 = vsel %vm1901, %v1303, 0
    %2668 = vmatprep.subr.mxu0 0.0
    %2669 = vmatpush1.xpose.msra.mxu0 %v2666
    %2670 = vmatprep.subr.mxu0 0.0
    %2671 = vmatpush1.xpose.msra.mxu0 0.0
    %2672 = vmatprep.subr.mxu0 0.0
    %2673 = vmatpush1.xpose.msra.mxu0 0.0
    %2674 = vmatprep.subr.mxu0 0.0
    %2675 = vmatpush1.xpose.msra.mxu0 0.0
    %2676 = vmatprep.subr.mxu0 0.0
    %2677 = vmatpush1.xpose.msra.mxu0 0.0
    %2678 = vmatprep.subr.mxu0 0.0
    %2679 = vmatpush1.xpose.msra.mxu0 0.0
    %2680 = vmatprep.subr.mxu0 0.0
    %2681 = vmatpush1.xpose.msra.mxu0 0.0
    %2682 = vmatprep.subr.mxu0 0.0
    %2683 = vmatpush1.xpose.msra.mxu0 0.0
    %2684 = vmatprep.subr.mxu0 0.0
    %2685 = vmatpush1.xpose.msra.mxu0 0.0
    %2686 = vmatprep.subr.mxu0 0.0
    %2687 = vmatpush1.xpose.msra.mxu0 0.0
    %2688 = vmatprep.subr.mxu0 0.0
    %2689 = vmatpush1.xpose.msra.mxu0 0.0
    %2690 = vmatprep.subr.mxu0 0.0
    %2691 = vmatpush1.xpose.msra.mxu0 0.0
    %2692 = vmatprep.subr.mxu0 0.0
    %2693 = vmatpush1.xpose.msra.mxu0 0.0
    %2694 = vmatprep.subr.mxu0 0.0
    %2695 = vmatpush1.xpose.msra.mxu0 0.0
    %2696 = vmatprep.subr.mxu0 0.0
    %2697 = vmatpush1.xpose.msra.mxu0 0.0
    %2698 = vmatprep.subr.mxu0 0.0
    %2699 = vmatpush1.xpose.msra.mxu0 0.0
    %2700 = vmatprep.subr.mxu0 0.0
    %2701 = vmatpush1.xpose.msra.mxu0 0.0
    %2702 = vmatprep.subr.mxu0 0.0
    %2703 = vmatpush1.xpose.msra.mxu0 0.0
    %2704 = vmatprep.subr.mxu0 0.0
    %2705 = vmatpush1.xpose.msra.mxu0 0.0
    %2706 = vmatprep.subr.mxu0 0.0
    %2707 = vmatpush1.xpose.msra.mxu0 0.0
    %2708 = vmatprep.subr.mxu0 0.0
    %2709 = vmatpush1.xpose.msra.mxu0 0.0
    %2710 = vmatprep.subr.mxu0 0.0
    %2711 = vmatpush1.xpose.msra.mxu0 0.0
    %2712 = vmatprep.subr.mxu0 0.0
    %2713 = vmatpush1.xpose.msra.mxu0 0.0
    %2714 = vmatprep.subr.mxu0 0.0
    %2715 = vmatpush1.xpose.msra.mxu0 0.0
    %2716 = vmatprep.subr.mxu0 0.0
    %2717 = vmatpush1.xpose.msra.mxu0 0.0
    %2718 = vmatprep.subr.mxu0 0.0
    %2719 = vmatpush1.xpose.msra.mxu0 0.0
    %2720 = vmatprep.subr.mxu0 0.0
    %2721 = vmatpush1.xpose.msra.mxu0 0.0
    %2722 = vmatprep.subr.mxu0 0.0
    %2723 = vmatpush1.xpose.msra.mxu0 0.0
    %2724 = vmatprep.subr.mxu0 0.0
    %2725 = vmatpush1.xpose.msra.mxu0 0.0
    %2726 = vmatprep.subr.mxu0 0.0
    %2727 = vmatpush1.xpose.msra.mxu0 0.0
    %2728 = vmatprep.subr.mxu0 0.0
    %2729 = vmatpush1.xpose.msra.mxu0 0.0
    %2730 = vmatprep.subr.mxu0 0.0
    %2731 = vmatpush1.xpose.msra.mxu0 0.0
    %2732 = vmatprep.mubr.f32.mxu0 0.0
    %2733 = vmatmul.mubr.f32.gmra.mrb[0].mxu0 %v2663
    %v2734 = vpop.f32.mrb[0].mxu0
    %v2735 = vadd.f32 0.0, %v2734
    %v2736 = vpop.f32.mrb[0].mxu0
    %2737 = vdwg.mxu0
    %v2739 = vsel %vm1901, %v712, 0
    %v2742 = vsel %vm1901, %v1304, 0
    %2744 = vmatprep.subr.mxu0 0.0
    %2745 = vmatpush1.xpose.msra.mxu0 %v2742
    %2746 = vmatprep.subr.mxu0 0.0
    %2747 = vmatpush1.xpose.msra.mxu0 0.0
    %2748 = vmatprep.subr.mxu0 0.0
    %2749 = vmatpush1.xpose.msra.mxu0 0.0
    %2750 = vmatprep.subr.mxu0 0.0
    %2751 = vmatpush1.xpose.msra.mxu0 0.0
    %2752 = vmatprep.subr.mxu0 0.0
    %2753 = vmatpush1.xpose.msra.mxu0 0.0
    %2754 = vmatprep.subr.mxu0 0.0
    %2755 = vmatpush1.xpose.msra.mxu0 0.0
    %2756 = vmatprep.subr.mxu0 0.0
    %2757 = vmatpush1.xpose.msra.mxu0 0.0
    %2758 = vmatprep.subr.mxu0 0.0
    %2759 = vmatpush1.xpose.msra.mxu0 0.0
    %2760 = vmatprep.subr.mxu0 0.0
    %2761 = vmatpush1.xpose.msra.mxu0 0.0
    %2762 = vmatprep.subr.mxu0 0.0
    %2763 = vmatpush1.xpose.msra.mxu0 0.0
    %2764 = vmatprep.subr.mxu0 0.0
    %2765 = vmatpush1.xpose.msra.mxu0 0.0
    %2766 = vmatprep.subr.mxu0 0.0
    %2767 = vmatpush1.xpose.msra.mxu0 0.0
    %2768 = vmatprep.subr.mxu0 0.0
    %2769 = vmatpush1.xpose.msra.mxu0 0.0
    %2770 = vmatprep.subr.mxu0 0.0
    %2771 = vmatpush1.xpose.msra.mxu0 0.0
    %2772 = vmatprep.subr.mxu0 0.0
    %2773 = vmatpush1.xpose.msra.mxu0 0.0
    %2774 = vmatprep.subr.mxu0 0.0
    %2775 = vmatpush1.xpose.msra.mxu0 0.0
    %2776 = vmatprep.subr.mxu0 0.0
    %2777 = vmatpush1.xpose.msra.mxu0 0.0
    %2778 = vmatprep.subr.mxu0 0.0
    %2779 = vmatpush1.xpose.msra.mxu0 0.0
    %2780 = vmatprep.subr.mxu0 0.0
    %2781 = vmatpush1.xpose.msra.mxu0 0.0
    %2782 = vmatprep.subr.mxu0 0.0
    %2783 = vmatpush1.xpose.msra.mxu0 0.0
    %2784 = vmatprep.subr.mxu0 0.0
    %2785 = vmatpush1.xpose.msra.mxu0 0.0
    %2786 = vmatprep.subr.mxu0 0.0
    %2787 = vmatpush1.xpose.msra.mxu0 0.0
    %2788 = vmatprep.subr.mxu0 0.0
    %2789 = vmatpush1.xpose.msra.mxu0 0.0
    %2790 = vmatprep.subr.mxu0 0.0
    %2791 = vmatpush1.xpose.msra.mxu0 0.0
    %2792 = vmatprep.subr.mxu0 0.0
    %2793 = vmatpush1.xpose.msra.mxu0 0.0
    %2794 = vmatprep.subr.mxu0 0.0
    %2795 = vmatpush1.xpose.msra.mxu0 0.0
    %2796 = vmatprep.subr.mxu0 0.0
    %2797 = vmatpush1.xpose.msra.mxu0 0.0
    %2798 = vmatprep.subr.mxu0 0.0
    %2799 = vmatpush1.xpose.msra.mxu0 0.0
    %2800 = vmatprep.subr.mxu0 0.0
    %2801 = vmatpush1.xpose.msra.mxu0 0.0
    %2802 = vmatprep.subr.mxu0 0.0
    %2803 = vmatpush1.xpose.msra.mxu0 0.0
    %2804 = vmatprep.subr.mxu0 0.0
    %2805 = vmatpush1.xpose.msra.mxu0 0.0
    %2806 = vmatprep.subr.mxu0 0.0
    %2807 = vmatpush1.xpose.msra.mxu0 0.0
    %2808 = vmatprep.mubr.f32.mxu0 0.0
    %2809 = vmatmul.mubr.f32.gmra.mrb[0].mxu0 %v2739
    %v2810 = vpop.f32.mrb[0].mxu0
    %v2811 = vadd.f32 0.0, %v2810
    %v2812 = vpop.f32.mrb[0].mxu0
    %2813 = vdwg.mxu0
    %v2815 = vsel %vm1901, %v713, 0
    %v2818 = vsel %vm1901, %v1305, 0
    %2820 = vmatprep.subr.mxu0 0.0
    %2821 = vmatpush1.xpose.msra.mxu0 %v2818
    %2822 = vmatprep.subr.mxu0 0.0
    %2823 = vmatpush1.xpose.msra.mxu0 0.0
    %2824 = vmatprep.subr.mxu0 0.0
    %2825 = vmatpush1.xpose.msra.mxu0 0.0
    %2826 = vmatprep.subr.mxu0 0.0
    %2827 = vmatpush1.xpose.msra.mxu0 0.0
    %2828 = vmatprep.subr.mxu0 0.0
    %2829 = vmatpush1.xpose.msra.mxu0 0.0
    %2830 = vmatprep.subr.mxu0 0.0
    %2831 = vmatpush1.xpose.msra.mxu0 0.0
    %2832 = vmatprep.subr.mxu0 0.0
    %2833 = vmatpush1.xpose.msra.mxu0 0.0
    %2834 = vmatprep.subr.mxu0 0.0
    %2835 = vmatpush1.xpose.msra.mxu0 0.0
    %2836 = vmatprep.subr.mxu0 0.0
    %2837 = vmatpush1.xpose.msra.mxu0 0.0
    %2838 = vmatprep.subr.mxu0 0.0
    %2839 = vmatpush1.xpose.msra.mxu0 0.0
    %2840 = vmatprep.subr.mxu0 0.0
    %2841 = vmatpush1.xpose.msra.mxu0 0.0
    %2842 = vmatprep.subr.mxu0 0.0
    %2843 = vmatpush1.xpose.msra.mxu0 0.0
    %2844 = vmatprep.subr.mxu0 0.0
    %2845 = vmatpush1.xpose.msra.mxu0 0.0
    %2846 = vmatprep.subr.mxu0 0.0
    %2847 = vmatpush1.xpose.msra.mxu0 0.0
    %2848 = vmatprep.subr.mxu0 0.0
    %2849 = vmatpush1.xpose.msra.mxu0 0.0
    %2850 = vmatprep.subr.mxu0 0.0
    %2851 = vmatpush1.xpose.msra.mxu0 0.0
    %2852 = vmatprep.subr.mxu0 0.0
    %2853 = vmatpush1.xpose.msra.mxu0 0.0
    %2854 = vmatprep.subr.mxu0 0.0
    %2855 = vmatpush1.xpose.msra.mxu0 0.0
    %2856 = vmatprep.subr.mxu0 0.0
    %2857 = vmatpush1.xpose.msra.mxu0 0.0
    %2858 = vmatprep.subr.mxu0 0.0
    %2859 = vmatpush1.xpose.msra.mxu0 0.0
    %2860 = vmatprep.subr.mxu0 0.0
    %2861 = vmatpush1.xpose.msra.mxu0 0.0
    %2862 = vmatprep.subr.mxu0 0.0
    %2863 = vmatpush1.xpose.msra.mxu0 0.0
    %2864 = vmatprep.subr.mxu0 0.0
    %2865 = vmatpush1.xpose.msra.mxu0 0.0
    %2866 = vmatprep.subr.mxu0 0.0
    %2867 = vmatpush1.xpose.msra.mxu0 0.0
    %2868 = vmatprep.subr.mxu0 0.0
    %2869 = vmatpush1.xpose.msra.mxu0 0.0
    %2870 = vmatprep.subr.mxu0 0.0
    %2871 = vmatpush1.xpose.msra.mxu0 0.0
    %2872 = vmatprep.subr.mxu0 0.0
    %2873 = vmatpush1.xpose.msra.mxu0 0.0
    %2874 = vmatprep.subr.mxu0 0.0
    %2875 = vmatpush1.xpose.msra.mxu0 0.0
    %2876 = vmatprep.subr.mxu0 0.0
    %2877 = vmatpush1.xpose.msra.mxu0 0.0
    %2878 = vmatprep.subr.mxu0 0.0
    %2879 = vmatpush1.xpose.msra.mxu0 0.0
    %2880 = vmatprep.subr.mxu0 0.0
    %2881 = vmatpush1.xpose.msra.mxu0 0.0
    %2882 = vmatprep.subr.mxu0 0.0
    %2883 = vmatpush1.xpose.msra.mxu0 0.0
    %2884 = vmatprep.mubr.f32.mxu0 0.0
    %2885 = vmatmul.mubr.f32.gmra.mrb[0].mxu0 %v2815
    %v2886 = vpop.f32.mrb[0].mxu0
    %v2887 = vadd.f32 0.0, %v2886
    %v2888 = vpop.f32.mrb[0].mxu0
    %2889 = vdwg.mxu0
    %v2891 = vsel %vm1901, %v714, 0
    %v2894 = vsel %vm1901, %v1306, 0
    %2896 = vmatprep.subr.mxu0 0.0
    %2897 = vmatpush1.xpose.msra.mxu0 %v2894
    %2898 = vmatprep.subr.mxu0 0.0
    %2899 = vmatpush1.xpose.msra.mxu0 0.0
    %2900 = vmatprep.subr.mxu0 0.0
    %2901 = vmatpush1.xpose.msra.mxu0 0.0
    %2902 = vmatprep.subr.mxu0 0.0
    %2903 = vmatpush1.xpose.msra.mxu0 0.0
    %2904 = vmatprep.subr.mxu0 0.0
    %2905 = vmatpush1.xpose.msra.mxu0 0.0
    %2906 = vmatprep.subr.mxu0 0.0
    %2907 = vmatpush1.xpose.msra.mxu0 0.0
    %2908 = vmatprep.subr.mxu0 0.0
    %2909 = vmatpush1.xpose.msra.mxu0 0.0
    %2910 = vmatprep.subr.mxu0 0.0
    %2911 = vmatpush1.xpose.msra.mxu0 0.0
    %2912 = vmatprep.subr.mxu0 0.0
    %2913 = vmatpush1.xpose.msra.mxu0 0.0
    %2914 = vmatprep.subr.mxu0 0.0
    %2915 = vmatpush1.xpose.msra.mxu0 0.0
    %2916 = vmatprep.subr.mxu0 0.0
    %2917 = vmatpush1.xpose.msra.mxu0 0.0
    %2918 = vmatprep.subr.mxu0 0.0
    %2919 = vmatpush1.xpose.msra.mxu0 0.0
    %2920 = vmatprep.subr.mxu0 0.0
    %2921 = vmatpush1.xpose.msra.mxu0 0.0
    %2922 = vmatprep.subr.mxu0 0.0
    %2923 = vmatpush1.xpose.msra.mxu0 0.0
    %2924 = vmatprep.subr.mxu0 0.0
    %2925 = vmatpush1.xpose.msra.mxu0 0.0
    %2926 = vmatprep.subr.mxu0 0.0
    %2927 = vmatpush1.xpose.msra.mxu0 0.0
    %2928 = vmatprep.subr.mxu0 0.0
    %2929 = vmatpush1.xpose.msra.mxu0 0.0
    %2930 = vmatprep.subr.mxu0 0.0
    %2931 = vmatpush1.xpose.msra.mxu0 0.0
    %2932 = vmatprep.subr.mxu0 0.0
    %2933 = vmatpush1.xpose.msra.mxu0 0.0
    %2934 = vmatprep.subr.mxu0 0.0
    %2935 = vmatpush1.xpose.msra.mxu0 0.0
    %2936 = vmatprep.subr.mxu0 0.0
    %2937 = vmatpush1.xpose.msra.mxu0 0.0
    %2938 = vmatprep.subr.mxu0 0.0
    %2939 = vmatpush1.xpose.msra.mxu0 0.0
    %2940 = vmatprep.subr.mxu0 0.0
    %2941 = vmatpush1.xpose.msra.mxu0 0.0
    %2942 = vmatprep.subr.mxu0 0.0
    %2943 = vmatpush1.xpose.msra.mxu0 0.0
    %2944 = vmatprep.subr.mxu0 0.0
    %2945 = vmatpush1.xpose.msra.mxu0 0.0
    %2946 = vmatprep.subr.mxu0 0.0
    %2947 = vmatpush1.xpose.msra.mxu0 0.0
    %2948 = vmatprep.subr.mxu0 0.0
    %2949 = vmatpush1.xpose.msra.mxu0 0.0
    %2950 = vmatprep.subr.mxu0 0.0
    %2951 = vmatpush1.xpose.msra.mxu0 0.0
    %2952 = vmatprep.subr.mxu0 0.0
    %2953 = vmatpush1.xpose.msra.mxu0 0.0
    %2954 = vmatprep.subr.mxu0 0.0
    %2955 = vmatpush1.xpose.msra.mxu0 0.0
    %2956 = vmatprep.subr.mxu0 0.0
    %2957 = vmatpush1.xpose.msra.mxu0 0.0
    %2958 = vmatprep.subr.mxu0 0.0
    %2959 = vmatpush1.xpose.msra.mxu0 0.0
    %2960 = vmatprep.mubr.f32.mxu0 0.0
    %2961 = vmatmul.mubr.f32.gmra.mrb[0].mxu0 %v2891
    %v2962 = vpop.f32.mrb[0].mxu0
    %v2963 = vadd.f32 0.0, %v2962
    %v2964 = vpop.f32.mrb[0].mxu0
    %2965 = vdwg.mxu0
    %v2967 = vsel %vm1901, %v715, 0
    %v2970 = vsel %vm1901, %v1307, 0
    %2972 = vmatprep.subr.mxu0 0.0
    %2973 = vmatpush1.xpose.msra.mxu0 %v2970
    %2974 = vmatprep.subr.mxu0 0.0
    %2975 = vmatpush1.xpose.msra.mxu0 0.0
    %2976 = vmatprep.subr.mxu0 0.0
    %2977 = vmatpush1.xpose.msra.mxu0 0.0
    %2978 = vmatprep.subr.mxu0 0.0
    %2979 = vmatpush1.xpose.msra.mxu0 0.0
    %2980 = vmatprep.subr.mxu0 0.0
    %2981 = vmatpush1.xpose.msra.mxu0 0.0
    %2982 = vmatprep.subr.mxu0 0.0
    %2983 = vmatpush1.xpose.msra.mxu0 0.0
    %2984 = vmatprep.subr.mxu0 0.0
    %2985 = vmatpush1.xpose.msra.mxu0 0.0
    %2986 = vmatprep.subr.mxu0 0.0
    %2987 = vmatpush1.xpose.msra.mxu0 0.0
    %2988 = vmatprep.subr.mxu0 0.0
    %2989 = vmatpush1.xpose.msra.mxu0 0.0
    %2990 = vmatprep.subr.mxu0 0.0
    %2991 = vmatpush1.xpose.msra.mxu0 0.0
    %2992 = vmatprep.subr.mxu0 0.0
    %2993 = vmatpush1.xpose.msra.mxu0 0.0
    %2994 = vmatprep.subr.mxu0 0.0
    %2995 = vmatpush1.xpose.msra.mxu0 0.0
    %2996 = vmatprep.subr.mxu0 0.0
    %2997 = vmatpush1.xpose.msra.mxu0 0.0
    %2998 = vmatprep.subr.mxu0 0.0
    %2999 = vmatpush1.xpose.msra.mxu0 0.0
    %3000 = vmatprep.subr.mxu0 0.0
    %3001 = vmatpush1.xpose.msra.mxu0 0.0
    %3002 = vmatprep.subr.mxu0 0.0
    %3003 = vmatpush1.xpose.msra.mxu0 0.0
    %3004 = vmatprep.subr.mxu0 0.0
    %3005 = vmatpush1.xpose.msra.mxu0 0.0
    %3006 = vmatprep.subr.mxu0 0.0
    %3007 = vmatpush1.xpose.msra.mxu0 0.0
    %3008 = vmatprep.subr.mxu0 0.0
    %3009 = vmatpush1.xpose.msra.mxu0 0.0
    %3010 = vmatprep.subr.mxu0 0.0
    %3011 = vmatpush1.xpose.msra.mxu0 0.0
    %3012 = vmatprep.subr.mxu0 0.0
    %3013 = vmatpush1.xpose.msra.mxu0 0.0
    %3014 = vmatprep.subr.mxu0 0.0
    %3015 = vmatpush1.xpose.msra.mxu0 0.0
    %3016 = vmatprep.subr.mxu0 0.0
    %3017 = vmatpush1.xpose.msra.mxu0 0.0
    %3018 = vmatprep.subr.mxu0 0.0
    %3019 = vmatpush1.xpose.msra.mxu0 0.0
    %3020 = vmatprep.subr.mxu0 0.0
    %3021 = vmatpush1.xpose.msra.mxu0 0.0
    %3022 = vmatprep.subr.mxu0 0.0
    %3023 = vmatpush1.xpose.msra.mxu0 0.0
    %3024 = vmatprep.subr.mxu0 0.0
    %3025 = vmatpush1.xpose.msra.mxu0 0.0
    %3026 = vmatprep.subr.mxu0 0.0
    %3027 = vmatpush1.xpose.msra.mxu0 0.0
    %3028 = vmatprep.subr.mxu0 0.0
    %3029 = vmatpush1.xpose.msra.mxu0 0.0
    %3030 = vmatprep.subr.mxu0 0.0
    %3031 = vmatpush1.xpose.msra.mxu0 0.0
    %3032 = vmatprep.subr.mxu0 0.0
    %3033 = vmatpush1.xpose.msra.mxu0 0.0
    %3034 = vmatprep.subr.mxu0 0.0
    %3035 = vmatpush1.xpose.msra.mxu0 0.0
    %3036 = vmatprep.mubr.f32.mxu0 0.0
    %3037 = vmatmul.mubr.f32.gmra.mrb[0].mxu0 %v2967
    %v3038 = vpop.f32.mrb[0].mxu0
    %v3039 = vadd.f32 0.0, %v3038
    %v3040 = vpop.f32.mrb[0].mxu0
    %3041 = vdwg.mxu0
    %v3043 = vsel %vm1901, %v716, 0
    %v3046 = vsel %vm1901, %v1308, 0
    %3048 = vmatprep.subr.mxu0 0.0
    %3049 = vmatpush1.xpose.msra.mxu0 %v3046
    %3050 = vmatprep.subr.mxu0 0.0
    %3051 = vmatpush1.xpose.msra.mxu0 0.0
    %3052 = vmatprep.subr.mxu0 0.0
    %3053 = vmatpush1.xpose.msra.mxu0 0.0
    %3054 = vmatprep.subr.mxu0 0.0
    %3055 = vmatpush1.xpose.msra.mxu0 0.0
    %3056 = vmatprep.subr.mxu0 0.0
    %3057 = vmatpush1.xpose.msra.mxu0 0.0
    %3058 = vmatprep.subr.mxu0 0.0
    %3059 = vmatpush1.xpose.msra.mxu0 0.0
    %3060 = vmatprep.subr.mxu0 0.0
    %3061 = vmatpush1.xpose.msra.mxu0 0.0
    %3062 = vmatprep.subr.mxu0 0.0
    %3063 = vmatpush1.xpose.msra.mxu0 0.0
    %3064 = vmatprep.subr.mxu0 0.0
    %3065 = vmatpush1.xpose.msra.mxu0 0.0
    %3066 = vmatprep.subr.mxu0 0.0
    %3067 = vmatpush1.xpose.msra.mxu0 0.0
    %3068 = vmatprep.subr.mxu0 0.0
    %3069 = vmatpush1.xpose.msra.mxu0 0.0
    %3070 = vmatprep.subr.mxu0 0.0
    %3071 = vmatpush1.xpose.msra.mxu0 0.0
    %3072 = vmatprep.subr.mxu0 0.0
    %3073 = vmatpush1.xpose.msra.mxu0 0.0
    %3074 = vmatprep.subr.mxu0 0.0
    %3075 = vmatpush1.xpose.msra.mxu0 0.0
    %3076 = vmatprep.subr.mxu0 0.0
    %3077 = vmatpush1.xpose.msra.mxu0 0.0
    %3078 = vmatprep.subr.mxu0 0.0
    %3079 = vmatpush1.xpose.msra.mxu0 0.0
    %3080 = vmatprep.subr.mxu0 0.0
    %3081 = vmatpush1.xpose.msra.mxu0 0.0
    %3082 = vmatprep.subr.mxu0 0.0
    %3083 = vmatpush1.xpose.msra.mxu0 0.0
    %3084 = vmatprep.subr.mxu0 0.0
    %3085 = vmatpush1.xpose.msra.mxu0 0.0
    %3086 = vmatprep.subr.mxu0 0.0
    %3087 = vmatpush1.xpose.msra.mxu0 0.0
    %3088 = vmatprep.subr.mxu0 0.0
    %3089 = vmatpush1.xpose.msra.mxu0 0.0
    %3090 = vmatprep.subr.mxu0 0.0
    %3091 = vmatpush1.xpose.msra.mxu0 0.0
    %3092 = vmatprep.subr.mxu0 0.0
    %3093 = vmatpush1.xpose.msra.mxu0 0.0
    %3094 = vmatprep.subr.mxu0 0.0
    %3095 = vmatpush1.xpose.msra.mxu0 0.0
    %3096 = vmatprep.subr.mxu0 0.0
    %3097 = vmatpush1.xpose.msra.mxu0 0.0
    %3098 = vmatprep.subr.mxu0 0.0
    %3099 = vmatpush1.xpose.msra.mxu0 0.0
    %3100 = vmatprep.subr.mxu0 0.0
    %3101 = vmatpush1.xpose.msra.mxu0 0.0
    %3102 = vmatprep.subr.mxu0 0.0
    %3103 = vmatpush1.xpose.msra.mxu0 0.0
    %3104 = vmatprep.subr.mxu0 0.0
    %3105 = vmatpush1.xpose.msra.mxu0 0.0
    %3106 = vmatprep.subr.mxu0 0.0
    %3107 = vmatpush1.xpose.msra.mxu0 0.0
    %3108 = vmatprep.subr.mxu0 0.0
    %3109 = vmatpush1.xpose.msra.mxu0 0.0
    %3110 = vmatprep.subr.mxu0 0.0
    %3111 = vmatpush1.xpose.msra.mxu0 0.0
    %3112 = vmatprep.mubr.f32.mxu0 0.0
    %3113 = vmatmul.mubr.f32.gmra.mrb[0].mxu0 %v3043
    %v3114 = vpop.f32.mrb[0].mxu0
    %v3115 = vadd.f32 0.0, %v3114
    %v3116 = vpop.f32.mrb[0].mxu0
    %3117 = vdwg.mxu0
    %v3118 = vmul.f32 %v1975, 0.5
    %v3119 = vmul.f32 %v2051, 0.5
    %v3120 = vmul.f32 %v2127, 0.5
    %v3121 = vmul.f32 %v2203, 0.5
    %v3122 = vmul.f32 %v2279, 0.5
    %v3123 = vmul.f32 %v2355, 0.5
    %v3124 = vmul.f32 %v2431, 0.5
    %v3125 = vmul.f32 %v2507, 0.5
    %v3126 = vmul.f32 %v2583, 0.5
    %v3127 = vmul.f32 %v2659, 0.5
    %v3128 = vmul.f32 %v2735, 0.5
    %v3129 = vmul.f32 %v2811, 0.5
    %v3130 = vmul.f32 %v2887, 0.5
    %v3131 = vmul.f32 %v2963, 0.5
    %v3132 = vmul.f32 %v3039, 0.5
    %v3133 = vmul.f32 %v3115, 0.5
    %vm3134 = vcmask 64512
    %v3135 = vsel %vm3134, %v3118, -inf
    %3136 = vmax.xlane.f32.xlu0 %v3135
    %v3137 = vpop.xlane.xlu0 %3136
    %v3138 = vsel %vm3134, %v3119, -inf
    %3139 = vmax.xlane.f32.xlu0 %v3138
    %v3140 = vpop.xlane.xlu0 %3139
    %v3141 = vsel %vm3134, %v3120, -inf
    %3142 = vmax.xlane.f32.xlu0 %v3141
    %v3143 = vpop.xlane.xlu0 %3142
    %v3144 = vsel %vm3134, %v3121, -inf
    %3145 = vmax.xlane.f32.xlu0 %v3144
    %v3146 = vpop.xlane.xlu0 %3145
    %v3147 = vsel %vm3134, %v3122, -inf
    %3148 = vmax.xlane.f32.xlu0 %v3147
    %v3149 = vpop.xlane.xlu0 %3148
    %v3150 = vsel %vm3134, %v3123, -inf
    %3151 = vmax.xlane.f32.xlu0 %v3150
    %v3152 = vpop.xlane.xlu0 %3151
    %v3153 = vsel %vm3134, %v3124, -inf
    %3154 = vmax.xlane.f32.xlu0 %v3153
    %v3155 = vpop.xlane.xlu0 %3154
    %v3156 = vsel %vm3134, %v3125, -inf
    %3157 = vmax.xlane.f32.xlu0 %v3156
    %v3158 = vpop.xlane.xlu0 %3157
    %v3159 = vsel %vm3134, %v3126, -inf
    %3160 = vmax.xlane.f32.xlu0 %v3159
    %v3161 = vpop.xlane.xlu0 %3160
    %v3162 = vsel %vm3134, %v3127, -inf
    %3163 = vmax.xlane.f32.xlu0 %v3162
    %v3164 = vpop.xlane.xlu0 %3163
    %v3165 = vsel %vm3134, %v3128, -inf
    %3166 = vmax.xlane.f32.xlu0 %v3165
    %v3167 = vpop.xlane.xlu0 %3166
    %v3168 = vsel %vm3134, %v3129, -inf
    %3169 = vmax.xlane.f32.xlu0 %v3168
    %v3170 = vpop.xlane.xlu0 %3169
    %v3171 = vsel %vm3134, %v3130, -inf
    %3172 = vmax.xlane.f32.xlu0 %v3171
    %v3173 = vpop.xlane.xlu0 %3172
    %v3174 = vsel %vm3134, %v3131, -inf
    %3175 = vmax.xlane.f32.xlu0 %v3174
    %v3176 = vpop.xlane.xlu0 %3175
    %v3177 = vsel %vm3134, %v3132, -inf
    %3178 = vmax.xlane.f32.xlu0 %v3177
    %v3179 = vpop.xlane.xlu0 %3178
    %v3180 = vsel %vm3134, %v3133, -inf
    %3181 = vmax.xlane.f32.xlu0 %v3180
    %v3182 = vpop.xlane.xlu0 %3181
    %v3183 = vsub.f32 %v3118, %v3137
    %v3184 = vsub.f32 %v3119, %v3140
    %v3185 = vsub.f32 %v3120, %v3143
    %v3186 = vsub.f32 %v3121, %v3146
    %v3187 = vsub.f32 %v3122, %v3149
    %v3188 = vsub.f32 %v3123, %v3152
    %v3189 = vsub.f32 %v3124, %v3155
    %v3190 = vsub.f32 %v3125, %v3158
    %v3191 = vsub.f32 %v3126, %v3161
    %v3192 = vsub.f32 %v3127, %v3164
    %v3193 = vsub.f32 %v3128, %v3167
    %v3194 = vsub.f32 %v3129, %v3170
    %v3195 = vsub.f32 %v3130, %v3173
    %v3196 = vsub.f32 %v3131, %v3176
    %v3197 = vsub.f32 %v3132, %v3179
    %v3198 = vsub.f32 %v3133, %v3182
    %v3199 = vmul.f32 %v3183, 1.442695
    %v3200 = vpow.pop %v3199
    %v3201 = vmul.f32 %v3184, 1.442695
    %v3202 = vpow.pop %v3201
    %v3203 = vmul.f32 %v3185, 1.442695
    %v3204 = vpow.pop %v3203
    %v3205 = vmul.f32 %v3186, 1.442695
    %v3206 = vpow.pop %v3205
    %v3207 = vmul.f32 %v3187, 1.442695
    %v3208 = vpow.pop %v3207
    %v3209 = vmul.f32 %v3188, 1.442695
    %v3210 = vpow.pop %v3209
    %v3211 = vmul.f32 %v3189, 1.442695
    %v3212 = vpow.pop %v3211
    %v3213 = vmul.f32 %v3190, 1.442695
    %v3214 = vpow.pop %v3213
    %v3215 = vmul.f32 %v3191, 1.442695
    %v3216 = vpow.pop %v3215
    %v3217 = vmul.f32 %v3192, 1.442695
    %v3218 = vpow.pop %v3217
    %v3219 = vmul.f32 %v3193, 1.442695
    %v3220 = vpow.pop %v3219
    %v3221 = vmul.f32 %v3194, 1.442695
    %v3222 = vpow.pop %v3221
    %v3223 = vmul.f32 %v3195, 1.442695
    %v3224 = vpow.pop %v3223
    %v3225 = vmul.f32 %v3196, 1.442695
    %v3226 = vpow.pop %v3225
    %v3227 = vmul.f32 %v3197, 1.442695
    %v3228 = vpow.pop %v3227
    %v3229 = vmul.f32 %v3198, 1.442695
    %v3230 = vpow.pop %v3229
    %v3231 = vsel %vm3134, %v3200, 0.0
    %3232 = vadd.xlane.f32.xlu0 %v3231
    %v3233 = vpop.xlane.xlu0 %3232
    %v3234 = vsel %vm3134, %v3202, 0.0
    %3235 = vadd.xlane.f32.xlu0 %v3234
    %v3236 = vpop.xlane.xlu0 %3235
    %v3237 = vsel %vm3134, %v3204, 0.0
    %3238 = vadd.xlane.f32.xlu0 %v3237
    %v3239 = vpop.xlane.xlu0 %3238
    %v3240 = vsel %vm3134, %v3206, 0.0
    %3241 = vadd.xlane.f32.xlu0 %v3240
    %v3242 = vpop.xlane.xlu0 %3241
    %v3243 = vsel %vm3134, %v3208, 0.0
    %3244 = vadd.xlane.f32.xlu0 %v3243
    %v3245 = vpop.xlane.xlu0 %3244
    %v3246 = vsel %vm3134, %v3210, 0.0
    %3247 = vadd.xlane.f32.xlu0 %v3246
    %v3248 = vpop.xlane.xlu0 %3247
    %v3249 = vsel %vm3134, %v3212, 0.0
    %3250 = vadd.xlane.f32.xlu0 %v3249
    %v3251 = vpop.xlane.xlu0 %3250
    %v3252 = vsel %vm3134, %v3214, 0.0
    %3253 = vadd.xlane.f32.xlu0 %v3252
    %v3254 = vpop.xlane.xlu0 %3253
    %v3255 = vsel %vm3134, %v3216, 0.0
    %3256 = vadd.xlane.f32.xlu0 %v3255
    %v3257 = vpop.xlane.xlu0 %3256
    %v3258 = vsel %vm3134, %v3218, 0.0
    %3259 = vadd.xlane.f32.xlu0 %v3258
    %v3260 = vpop.xlane.xlu0 %3259
    %v3261 = vsel %vm3134, %v3220, 0.0
    %3262 = vadd.xlane.f32.xlu0 %v3261
    %v3263 = vpop.xlane.xlu0 %3262
    %v3264 = vsel %vm3134, %v3222, 0.0
    %3265 = vadd.xlane.f32.xlu0 %v3264
    %v3266 = vpop.xlane.xlu0 %3265
    %v3267 = vsel %vm3134, %v3224, 0.0
    %3268 = vadd.xlane.f32.xlu0 %v3267
    %v3269 = vpop.xlane.xlu0 %3268
    %v3270 = vsel %vm3134, %v3226, 0.0
    %3271 = vadd.xlane.f32.xlu0 %v3270
    %v3272 = vpop.xlane.xlu0 %3271
    %v3273 = vsel %vm3134, %v3228, 0.0
    %3274 = vadd.xlane.f32.xlu0 %v3273
    %v3275 = vpop.xlane.xlu0 %3274
    %v3276 = vsel %vm3134, %v3230, 0.0
    %3277 = vadd.xlane.f32.xlu0 %v3276
    %v3278 = vpop.xlane.xlu0 %3277
    %v3279 = vrcp.pop %v3233
    %v3280 = vrcp.pop %v3236
    %v3281 = vrcp.pop %v3239
    %v3282 = vrcp.pop %v3242
    %v3283 = vrcp.pop %v3245
    %v3284 = vrcp.pop %v3248
    %v3285 = vrcp.pop %v3251
    %v3286 = vrcp.pop %v3254
    %v3287 = vrcp.pop %v3257
    %v3288 = vrcp.pop %v3260
    %v3289 = vrcp.pop %v3263
    %v3290 = vrcp.pop %v3266
    %v3291 = vrcp.pop %v3269
    %v3292 = vrcp.pop %v3272
    %v3293 = vrcp.pop %v3275
    %v3294 = vrcp.pop %v3278
    %v3295 = vmul.f32 %v3200, %v3279
    %v3296 = vmul.f32 %v3202, %v3280
    %v3297 = vmul.f32 %v3204, %v3281
    %v3298 = vmul.f32 %v3206, %v3282
    %v3299 = vmul.f32 %v3208, %v3283
    %v3300 = vmul.f32 %v3210, %v3284
    %v3301 = vmul.f32 %v3212, %v3285
    %v3302 = vmul.f32 %v3214, %v3286
    %v3303 = vmul.f32 %v3216, %v3287
    %v3304 = vmul.f32 %v3218, %v3288
    %v3305 = vmul.f32 %v3220, %v3289
    %v3306 = vmul.f32 %v3222, %v3290
    %v3307 = vmul.f32 %v3224, %v3291
    %v3308 = vmul.f32 %v3226, %v3292
    %v3309 = vmul.f32 %v3228, %v3293
    %v3310 = vmul.f32 %v3230, %v3294
    %v3312 = vsel %vm3134, %v3295, 0
    %3314 = vmatprep.subr.mxu0 0.0
    %3315 = vmatpush1.msra.mxu0 %v1757
    %3316 = vmatprep.subr.mxu0 0.0
    %3317 = vmatpush1.msra.mxu0 0.0
    %3318 = vmatprep.subr.mxu0 0.0
    %3319 = vmatpush1.msra.mxu0 0.0
    %3320 = vmatprep.subr.mxu0 0.0
    %3321 = vmatpush1.msra.mxu0 0.0
    %3322 = vmatprep.subr.mxu0 0.0
    %3323 = vmatpush1.msra.mxu0 0.0
    %3324 = vmatprep.subr.mxu0 0.0
    %3325 = vmatpush1.msra.mxu0 0.0
    %3326 = vmatprep.subr.mxu0 0.0
    %3327 = vmatpush1.msra.mxu0 0.0
    %3328 = vmatprep.subr.mxu0 0.0
    %3329 = vmatpush1.msra.mxu0 0.0
    %3330 = vmatprep.subr.mxu0 0.0
    %3331 = vmatpush1.msra.mxu0 0.0
    %3332 = vmatprep.subr.mxu0 0.0
    %3333 = vmatpush1.msra.mxu0 0.0
    %3334 = vmatprep.subr.mxu0 0.0
    %3335 = vmatpush1.msra.mxu0 0.0
    %3336 = vmatprep.subr.mxu0 0.0
    %3337 = vmatpush1.msra.mxu0 0.0
    %3338 = vmatprep.subr.mxu0 0.0
    %3339 = vmatpush1.msra.mxu0 0.0
    %3340 = vmatprep.subr.mxu0 0.0
    %3341 = vmatpush1.msra.mxu0 0.0
    %3342 = vmatprep.subr.mxu0 0.0
    %3343 = vmatpush1.msra.mxu0 0.0
    %3344 = vmatprep.subr.mxu0 0.0
    %3345 = vmatpush1.msra.mxu0 0.0
    %3346 = vmatprep.subr.mxu0 0.0
    %3347 = vmatpush1.msra.mxu0 0.0
    %3348 = vmatprep.subr.mxu0 0.0
    %3349 = vmatpush1.msra.mxu0 0.0
    %3350 = vmatprep.subr.mxu0 0.0
    %3351 = vmatpush1.msra.mxu0 0.0
    %3352 = vmatprep.subr.mxu0 0.0
    %3353 = vmatpush1.msra.mxu0 0.0
    %3354 = vmatprep.subr.mxu0 0.0
    %3355 = vmatpush1.msra.mxu0 0.0
    %3356 = vmatprep.subr.mxu0 0.0
    %3357 = vmatpush1.msra.mxu0 0.0
    %3358 = vmatprep.subr.mxu0 0.0
    %3359 = vmatpush1.msra.mxu0 0.0
    %3360 = vmatprep.subr.mxu0 0.0
    %3361 = vmatpush1.msra.mxu0 0.0
    %3362 = vmatprep.subr.mxu0 0.0
    %3363 = vmatpush1.msra.mxu0 0.0
    %3364 = vmatprep.subr.mxu0 0.0
    %3365 = vmatpush1.msra.mxu0 0.0
    %3366 = vmatprep.subr.mxu0 0.0
    %3367 = vmatpush1.msra.mxu0 0.0
    %3368 = vmatprep.subr.mxu0 0.0
    %3369 = vmatpush1.msra.mxu0 0.0
    %3370 = vmatprep.subr.mxu0 0.0
    %3371 = vmatpush1.msra.mxu0 0.0
    %3372 = vmatprep.subr.mxu0 0.0
    %3373 = vmatpush1.msra.mxu0 0.0
    %3374 = vmatprep.subr.mxu0 0.0
    %3375 = vmatpush1.msra.mxu0 0.0
    %3376 = vmatprep.subr.mxu0 0.0
    %3377 = vmatpush1.msra.mxu0 0.0
    %3378 = vmatprep.mubr.f32.mxu0 0.0
    %3379 = vmatmul.mubr.f32.gmra.mrb[0].mxu0 %v3312
    %v3380 = vpop.f32.mrb[0].mxu0
    %v3381 = vadd.f32 0.0, %v3380
    %v3382 = vpop.f32.mrb[0].mxu0
    %3383 = vdwg.mxu0
    %v3385 = vsel %vm3134, %v3296, 0
    %3387 = vmatprep.subr.mxu0 0.0
    %3388 = vmatpush1.msra.mxu0 %v1758
    %3389 = vmatprep.subr.mxu0 0.0
    %3390 = vmatpush1.msra.mxu0 0.0
    %3391 = vmatprep.subr.mxu0 0.0
    %3392 = vmatpush1.msra.mxu0 0.0
    %3393 = vmatprep.subr.mxu0 0.0
    %3394 = vmatpush1.msra.mxu0 0.0
    %3395 = vmatprep.subr.mxu0 0.0
    %3396 = vmatpush1.msra.mxu0 0.0
    %3397 = vmatprep.subr.mxu0 0.0
    %3398 = vmatpush1.msra.mxu0 0.0
    %3399 = vmatprep.subr.mxu0 0.0
    %3400 = vmatpush1.msra.mxu0 0.0
    %3401 = vmatprep.subr.mxu0 0.0
    %3402 = vmatpush1.msra.mxu0 0.0
    %3403 = vmatprep.subr.mxu0 0.0
    %3404 = vmatpush1.msra.mxu0 0.0
    %3405 = vmatprep.subr.mxu0 0.0
    %3406 = vmatpush1.msra.mxu0 0.0
    %3407 = vmatprep.subr.mxu0 0.0
    %3408 = vmatpush1.msra.mxu0 0.0
    %3409 = vmatprep.subr.mxu0 0.0
    %3410 = vmatpush1.msra.mxu0 0.0
    %3411 = vmatprep.subr.mxu0 0.0
    %3412 = vmatpush1.msra.mxu0 0.0
    %3413 = vmatprep.subr.mxu0 0.0
    %3414 = vmatpush1.msra.mxu0 0.0
    %3415 = vmatprep.subr.mxu0 0.0
    %3416 = vmatpush1.msra.mxu0 0.0
    %3417 = vmatprep.subr.mxu0 0.0
    %3418 = vmatpush1.msra.mxu0 0.0
    %3419 = vmatprep.subr.mxu0 0.0
    %3420 = vmatpush1.msra.mxu0 0.0
    %3421 = vmatprep.subr.mxu0 0.0
    %3422 = vmatpush1.msra.mxu0 0.0
    %3423 = vmatprep.subr.mxu0 0.0
    %3424 = vmatpush1.msra.mxu0 0.0
    %3425 = vmatprep.subr.mxu0 0.0
    %3426 = vmatpush1.msra.mxu0 0.0
    %3427 = vmatprep.subr.mxu0 0.0
    %3428 = vmatpush1.msra.mxu0 0.0
    %3429 = vmatprep.subr.mxu0 0.0
    %3430 = vmatpush1.msra.mxu0 0.0
    %3431 = vmatprep.subr.mxu0 0.0
    %3432 = vmatpush1.msra.mxu0 0.0
    %3433 = vmatprep.subr.mxu0 0.0
    %3434 = vmatpush1.msra.mxu0 0.0
    %3435 = vmatprep.subr.mxu0 0.0
    %3436 = vmatpush1.msra.mxu0 0.0
    %3437 = vmatprep.subr.mxu0 0.0
    %3438 = vmatpush1.msra.mxu0 0.0
    %3439 = vmatprep.subr.mxu0 0.0
    %3440 = vmatpush1.msra.mxu0 0.0
    %3441 = vmatprep.subr.mxu0 0.0
    %3442 = vmatpush1.msra.mxu0 0.0
    %3443 = vmatprep.subr.mxu0 0.0
    %3444 = vmatpush1.msra.mxu0 0.0
    %3445 = vmatprep.subr.mxu0 0.0
    %3446 = vmatpush1.msra.mxu0 0.0
    %3447 = vmatprep.subr.mxu0 0.0
    %3448 = vmatpush1.msra.mxu0 0.0
    %3449 = vmatprep.subr.mxu0 0.0
    %3450 = vmatpush1.msra.mxu0 0.0
    %3451 = vmatprep.mubr.f32.mxu0 0.0
    %3452 = vmatmul.mubr.f32.gmra.mrb[0].mxu0 %v3385
    %v3453 = vpop.f32.mrb[0].mxu0
    %v3454 = vadd.f32 0.0, %v3453
    %v3455 = vpop.f32.mrb[0].mxu0
    %3456 = vdwg.mxu0
    %v3458 = vsel %vm3134, %v3297, 0
    %3460 = vmatprep.subr.mxu0 0.0
    %3461 = vmatpush1.msra.mxu0 %v1759
    %3462 = vmatprep.subr.mxu0 0.0
    %3463 = vmatpush1.msra.mxu0 0.0
    %3464 = vmatprep.subr.mxu0 0.0
    %3465 = vmatpush1.msra.mxu0 0.0
    %3466 = vmatprep.subr.mxu0 0.0
    %3467 = vmatpush1.msra.mxu0 0.0
    %3468 = vmatprep.subr.mxu0 0.0
    %3469 = vmatpush1.msra.mxu0 0.0
    %3470 = vmatprep.subr.mxu0 0.0
    %3471 = vmatpush1.msra.mxu0 0.0
    %3472 = vmatprep.subr.mxu0 0.0
    %3473 = vmatpush1.msra.mxu0 0.0
    %3474 = vmatprep.subr.mxu0 0.0
    %3475 = vmatpush1.msra.mxu0 0.0
    %3476 = vmatprep.subr.mxu0 0.0
    %3477 = vmatpush1.msra.mxu0 0.0
    %3478 = vmatprep.subr.mxu0 0.0
    %3479 = vmatpush1.msra.mxu0 0.0
    %3480 = vmatprep.subr.mxu0 0.0
    %3481 = vmatpush1.msra.mxu0 0.0
    %3482 = vmatprep.subr.mxu0 0.0
    %3483 = vmatpush1.msra.mxu0 0.0
    %3484 = vmatprep.subr.mxu0 0.0
    %3485 = vmatpush1.msra.mxu0 0.0
    %3486 = vmatprep.subr.mxu0 0.0
    %3487 = vmatpush1.msra.mxu0 0.0
    %3488 = vmatprep.subr.mxu0 0.0
    %3489 = vmatpush1.msra.mxu0 0.0
    %3490 = vmatprep.subr.mxu0 0.0
    %3491 = vmatpush1.msra.mxu0 0.0
    %3492 = vmatprep.subr.mxu0 0.0
    %3493 = vmatpush1.msra.mxu0 0.0
    %3494 = vmatprep.subr.mxu0 0.0
    %3495 = vmatpush1.msra.mxu0 0.0
    %3496 = vmatprep.subr.mxu0 0.0
    %3497 = vmatpush1.msra.mxu0 0.0
    %3498 = vmatprep.subr.mxu0 0.0
    %3499 = vmatpush1.msra.mxu0 0.0
    %3500 = vmatprep.subr.mxu0 0.0
    %3501 = vmatpush1.msra.mxu0 0.0
    %3502 = vmatprep.subr.mxu0 0.0
    %3503 = vmatpush1.msra.mxu0 0.0
    %3504 = vmatprep.subr.mxu0 0.0
    %3505 = vmatpush1.msra.mxu0 0.0
    %3506 = vmatprep.subr.mxu0 0.0
    %3507 = vmatpush1.msra.mxu0 0.0
    %3508 = vmatprep.subr.mxu0 0.0
    %3509 = vmatpush1.msra.mxu0 0.0
    %3510 = vmatprep.subr.mxu0 0.0
    %3511 = vmatpush1.msra.mxu0 0.0
    %3512 = vmatprep.subr.mxu0 0.0
    %3513 = vmatpush1.msra.mxu0 0.0
    %3514 = vmatprep.subr.mxu0 0.0
    %3515 = vmatpush1.msra.mxu0 0.0
    %3516 = vmatprep.subr.mxu0 0.0
    %3517 = vmatpush1.msra.mxu0 0.0
    %3518 = vmatprep.subr.mxu0 0.0
    %3519 = vmatpush1.msra.mxu0 0.0
    %3520 = vmatprep.subr.mxu0 0.0
    %3521 = vmatpush1.msra.mxu0 0.0
    %3522 = vmatprep.subr.mxu0 0.0
    %3523 = vmatpush1.msra.mxu0 0.0
    %3524 = vmatprep.mubr.f32.mxu0 0.0
    %3525 = vmatmul.mubr.f32.gmra.mrb[0].mxu0 %v3458
    %v3526 = vpop.f32.mrb[0].mxu0
    %v3527 = vadd.f32 0.0, %v3526
    %v3528 = vpop.f32.mrb[0].mxu0
    %3529 = vdwg.mxu0
    %v3531 = vsel %vm3134, %v3298, 0
    %3533 = vmatprep.subr.mxu0 0.0
    %3534 = vmatpush1.msra.mxu0 %v1760
    %3535 = vmatprep.subr.mxu0 0.0
    %3536 = vmatpush1.msra.mxu0 0.0
    %3537 = vmatprep.subr.mxu0 0.0
    %3538 = vmatpush1.msra.mxu0 0.0
    %3539 = vmatprep.subr.mxu0 0.0
    %3540 = vmatpush1.msra.mxu0 0.0
    %3541 = vmatprep.subr.mxu0 0.0
    %3542 = vmatpush1.msra.mxu0 0.0
    %3543 = vmatprep.subr.mxu0 0.0
    %3544 = vmatpush1.msra.mxu0 0.0
    %3545 = vmatprep.subr.mxu0 0.0
    %3546 = vmatpush1.msra.mxu0 0.0
    %3547 = vmatprep.subr.mxu0 0.0
    %3548 = vmatpush1.msra.mxu0 0.0
    %3549 = vmatprep.subr.mxu0 0.0
    %3550 = vmatpush1.msra.mxu0 0.0
    %3551 = vmatprep.subr.mxu0 0.0
    %3552 = vmatpush1.msra.mxu0 0.0
    %3553 = vmatprep.subr.mxu0 0.0
    %3554 = vmatpush1.msra.mxu0 0.0
    %3555 = vmatprep.subr.mxu0 0.0
    %3556 = vmatpush1.msra.mxu0 0.0
    %3557 = vmatprep.subr.mxu0 0.0
    %3558 = vmatpush1.msra.mxu0 0.0
    %3559 = vmatprep.subr.mxu0 0.0
    %3560 = vmatpush1.msra.mxu0 0.0
    %3561 = vmatprep.subr.mxu0 0.0
    %3562 = vmatpush1.msra.mxu0 0.0
    %3563 = vmatprep.subr.mxu0 0.0
    %3564 = vmatpush1.msra.mxu0 0.0
    %3565 = vmatprep.subr.mxu0 0.0
    %3566 = vmatpush1.msra.mxu0 0.0
    %3567 = vmatprep.subr.mxu0 0.0
    %3568 = vmatpush1.msra.mxu0 0.0
    %3569 = vmatprep.subr.mxu0 0.0
    %3570 = vmatpush1.msra.mxu0 0.0
    %3571 = vmatprep.subr.mxu0 0.0
    %3572 = vmatpush1.msra.mxu0 0.0
    %3573 = vmatprep.subr.mxu0 0.0
    %3574 = vmatpush1.msra.mxu0 0.0
    %3575 = vmatprep.subr.mxu0 0.0
    %3576 = vmatpush1.msra.mxu0 0.0
    %3577 = vmatprep.subr.mxu0 0.0
    %3578 = vmatpush1.msra.mxu0 0.0
    %3579 = vmatprep.subr.mxu0 0.0
    %3580 = vmatpush1.msra.mxu0 0.0
    %3581 = vmatprep.subr.mxu0 0.0
    %3582 = vmatpush1.msra.mxu0 0.0
    %3583 = vmatprep.subr.mxu0 0.0
    %3584 = vmatpush1.msra.mxu0 0.0
    %3585 = vmatprep.subr.mxu0 0.0
    %3586 = vmatpush1.msra.mxu0 0.0
    %3587 = vmatprep.subr.mxu0 0.0
    %3588 = vmatpush1.msra.mxu0 0.0
    %3589 = vmatprep.subr.mxu0 0.0
    %3590 = vmatpush1.msra.mxu0 0.0
    %3591 = vmatprep.subr.mxu0 0.0
    %3592 = vmatpush1.msra.mxu0 0.0
    %3593 = vmatprep.subr.mxu0 0.0
    %3594 = vmatpush1.msra.mxu0 0.0
    %3595 = vmatprep.subr.mxu0 0.0
    %3596 = vmatpush1.msra.mxu0 0.0
    %3597 = vmatprep.mubr.f32.mxu0 0.0
    %3598 = vmatmul.mubr.f32.gmra.mrb[0].mxu0 %v3531
    %v3599 = vpop.f32.mrb[0].mxu0
    %v3600 = vadd.f32 0.0, %v3599
    %v3601 = vpop.f32.mrb[0].mxu0
    %3602 = vdwg.mxu0
    %v3604 = vsel %vm3134, %v3299, 0
    %3606 = vmatprep.subr.mxu0 0.0
    %3607 = vmatpush1.msra.mxu0 %v1761
    %3608 = vmatprep.subr.mxu0 0.0
    %3609 = vmatpush1.msra.mxu0 0.0
    %3610 = vmatprep.subr.mxu0 0.0
    %3611 = vmatpush1.msra.mxu0 0.0
    %3612 = vmatprep.subr.mxu0 0.0
    %3613 = vmatpush1.msra.mxu0 0.0
    %3614 = vmatprep.subr.mxu0 0.0
    %3615 = vmatpush1.msra.mxu0 0.0
    %3616 = vmatprep.subr.mxu0 0.0
    %3617 = vmatpush1.msra.mxu0 0.0
    %3618 = vmatprep.subr.mxu0 0.0
    %3619 = vmatpush1.msra.mxu0 0.0
    %3620 = vmatprep.subr.mxu0 0.0
    %3621 = vmatpush1.msra.mxu0 0.0
    %3622 = vmatprep.subr.mxu0 0.0
    %3623 = vmatpush1.msra.mxu0 0.0
    %3624 = vmatprep.subr.mxu0 0.0
    %3625 = vmatpush1.msra.mxu0 0.0
    %3626 = vmatprep.subr.mxu0 0.0
    %3627 = vmatpush1.msra.mxu0 0.0
    %3628 = vmatprep.subr.mxu0 0.0
    %3629 = vmatpush1.msra.mxu0 0.0
    %3630 = vmatprep.subr.mxu0 0.0
    %3631 = vmatpush1.msra.mxu0 0.0
    %3632 = vmatprep.subr.mxu0 0.0
    %3633 = vmatpush1.msra.mxu0 0.0
    %3634 = vmatprep.subr.mxu0 0.0
    %3635 = vmatpush1.msra.mxu0 0.0
    %3636 = vmatprep.subr.mxu0 0.0
    %3637 = vmatpush1.msra.mxu0 0.0
    %3638 = vmatprep.subr.mxu0 0.0
    %3639 = vmatpush1.msra.mxu0 0.0
    %3640 = vmatprep.subr.mxu0 0.0
    %3641 = vmatpush1.msra.mxu0 0.0
    %3642 = vmatprep.subr.mxu0 0.0
    %3643 = vmatpush1.msra.mxu0 0.0
    %3644 = vmatprep.subr.mxu0 0.0
    %3645 = vmatpush1.msra.mxu0 0.0
    %3646 = vmatprep.subr.mxu0 0.0
    %3647 = vmatpush1.msra.mxu0 0.0
    %3648 = vmatprep.subr.mxu0 0.0
    %3649 = vmatpush1.msra.mxu0 0.0
    %3650 = vmatprep.subr.mxu0 0.0
    %3651 = vmatpush1.msra.mxu0 0.0
    %3652 = vmatprep.subr.mxu0 0.0
    %3653 = vmatpush1.msra.mxu0 0.0
    %3654 = vmatprep.subr.mxu0 0.0
    %3655 = vmatpush1.msra.mxu0 0.0
    %3656 = vmatprep.subr.mxu0 0.0
    %3657 = vmatpush1.msra.mxu0 0.0
    %3658 = vmatprep.subr.mxu0 0.0
    %3659 = vmatpush1.msra.mxu0 0.0
    %3660 = vmatprep.subr.mxu0 0.0
    %3661 = vmatpush1.msra.mxu0 0.0
    %3662 = vmatprep.subr.mxu0 0.0
    %3663 = vmatpush1.msra.mxu0 0.0
    %3664 = vmatprep.subr.mxu0 0.0
    %3665 = vmatpush1.msra.mxu0 0.0
    %3666 = vmatprep.subr.mxu0 0.0
    %3667 = vmatpush1.msra.mxu0 0.0
    %3668 = vmatprep.subr.mxu0 0.0
    %3669 = vmatpush1.msra.mxu0 0.0
    %3670 = vmatprep.mubr.f32.mxu0 0.0
    %3671 = vmatmul.mubr.f32.gmra.mrb[0].mxu0 %v3604
    %v3672 = vpop.f32.mrb[0].mxu0
    %v3673 = vadd.f32 0.0, %v3672
    %v3674 = vpop.f32.mrb[0].mxu0
    %3675 = vdwg.mxu0
    %v3677 = vsel %vm3134, %v3300, 0
    %3679 = vmatprep.subr.mxu0 0.0
    %3680 = vmatpush1.msra.mxu0 %v1762
    %3681 = vmatprep.subr.mxu0 0.0
    %3682 = vmatpush1.msra.mxu0 0.0
    %3683 = vmatprep.subr.mxu0 0.0
    %3684 = vmatpush1.msra.mxu0 0.0
    %3685 = vmatprep.subr.mxu0 0.0
    %3686 = vmatpush1.msra.mxu0 0.0
    %3687 = vmatprep.subr.mxu0 0.0
    %3688 = vmatpush1.msra.mxu0 0.0
    %3689 = vmatprep.subr.mxu0 0.0
    %3690 = vmatpush1.msra.mxu0 0.0
    %3691 = vmatprep.subr.mxu0 0.0
    %3692 = vmatpush1.msra.mxu0 0.0
    %3693 = vmatprep.subr.mxu0 0.0
    %3694 = vmatpush1.msra.mxu0 0.0
    %3695 = vmatprep.subr.mxu0 0.0
    %3696 = vmatpush1.msra.mxu0 0.0
    %3697 = vmatprep.subr.mxu0 0.0
    %3698 = vmatpush1.msra.mxu0 0.0
    %3699 = vmatprep.subr.mxu0 0.0
    %3700 = vmatpush1.msra.mxu0 0.0
    %3701 = vmatprep.subr.mxu0 0.0
    %3702 = vmatpush1.msra.mxu0 0.0
    %3703 = vmatprep.subr.mxu0 0.0
    %3704 = vmatpush1.msra.mxu0 0.0
    %3705 = vmatprep.subr.mxu0 0.0
    %3706 = vmatpush1.msra.mxu0 0.0
    %3707 = vmatprep.subr.mxu0 0.0
    %3708 = vmatpush1.msra.mxu0 0.0
    %3709 = vmatprep.subr.mxu0 0.0
    %3710 = vmatpush1.msra.mxu0 0.0
    %3711 = vmatprep.subr.mxu0 0.0
    %3712 = vmatpush1.msra.mxu0 0.0
    %3713 = vmatprep.subr.mxu0 0.0
    %3714 = vmatpush1.msra.mxu0 0.0
    %3715 = vmatprep.subr.mxu0 0.0
    %3716 = vmatpush1.msra.mxu0 0.0
    %3717 = vmatprep.subr.mxu0 0.0
    %3718 = vmatpush1.msra.mxu0 0.0
    %3719 = vmatprep.subr.mxu0 0.0
    %3720 = vmatpush1.msra.mxu0 0.0
    %3721 = vmatprep.subr.mxu0 0.0
    %3722 = vmatpush1.msra.mxu0 0.0
    %3723 = vmatprep.subr.mxu0 0.0
    %3724 = vmatpush1.msra.mxu0 0.0
    %3725 = vmatprep.subr.mxu0 0.0
    %3726 = vmatpush1.msra.mxu0 0.0
    %3727 = vmatprep.subr.mxu0 0.0
    %3728 = vmatpush1.msra.mxu0 0.0
    %3729 = vmatprep.subr.mxu0 0.0
    %3730 = vmatpush1.msra.mxu0 0.0
    %3731 = vmatprep.subr.mxu0 0.0
    %3732 = vmatpush1.msra.mxu0 0.0
    %3733 = vmatprep.subr.mxu0 0.0
    %3734 = vmatpush1.msra.mxu0 0.0
    %3735 = vmatprep.subr.mxu0 0.0
    %3736 = vmatpush1.msra.mxu0 0.0
    %3737 = vmatprep.subr.mxu0 0.0
    %3738 = vmatpush1.msra.mxu0 0.0
    %3739 = vmatprep.subr.mxu0 0.0
    %3740 = vmatpush1.msra.mxu0 0.0
    %3741 = vmatprep.subr.mxu0 0.0
    %3742 = vmatpush1.msra.mxu0 0.0
    %3743 = vmatprep.mubr.f32.mxu0 0.0
    %3744 = vmatmul.mubr.f32.gmra.mrb[0].mxu0 %v3677
    %v3745 = vpop.f32.mrb[0].mxu0
    %v3746 = vadd.f32 0.0, %v3745
    %v3747 = vpop.f32.mrb[0].mxu0
    %3748 = vdwg.mxu0
    %v3750 = vsel %vm3134, %v3301, 0
    %3752 = vmatprep.subr.mxu0 0.0
    %3753 = vmatpush1.msra.mxu0 %v1763
    %3754 = vmatprep.subr.mxu0 0.0
    %3755 = vmatpush1.msra.mxu0 0.0
    %3756 = vmatprep.subr.mxu0 0.0
    %3757 = vmatpush1.msra.mxu0 0.0
    %3758 = vmatprep.subr.mxu0 0.0
    %3759 = vmatpush1.msra.mxu0 0.0
    %3760 = vmatprep.subr.mxu0 0.0
    %3761 = vmatpush1.msra.mxu0 0.0
    %3762 = vmatprep.subr.mxu0 0.0
    %3763 = vmatpush1.msra.mxu0 0.0
    %3764 = vmatprep.subr.mxu0 0.0
    %3765 = vmatpush1.msra.mxu0 0.0
    %3766 = vmatprep.subr.mxu0 0.0
    %3767 = vmatpush1.msra.mxu0 0.0
    %3768 = vmatprep.subr.mxu0 0.0
    %3769 = vmatpush1.msra.mxu0 0.0
    %3770 = vmatprep.subr.mxu0 0.0
    %3771 = vmatpush1.msra.mxu0 0.0
    %3772 = vmatprep.subr.mxu0 0.0
    %3773 = vmatpush1.msra.mxu0 0.0
    %3774 = vmatprep.subr.mxu0 0.0
    %3775 = vmatpush1.msra.mxu0 0.0
    %3776 = vmatprep.subr.mxu0 0.0
    %3777 = vmatpush1.msra.mxu0 0.0
    %3778 = vmatprep.subr.mxu0 0.0
    %3779 = vmatpush1.msra.mxu0 0.0
    %3780 = vmatprep.subr.mxu0 0.0
    %3781 = vmatpush1.msra.mxu0 0.0
    %3782 = vmatprep.subr.mxu0 0.0
    %3783 = vmatpush1.msra.mxu0 0.0
    %3784 = vmatprep.subr.mxu0 0.0
    %3785 = vmatpush1.msra.mxu0 0.0
    %3786 = vmatprep.subr.mxu0 0.0
    %3787 = vmatpush1.msra.mxu0 0.0
    %3788 = vmatprep.subr.mxu0 0.0
    %3789 = vmatpush1.msra.mxu0 0.0
    %3790 = vmatprep.subr.mxu0 0.0
    %3791 = vmatpush1.msra.mxu0 0.0
    %3792 = vmatprep.subr.mxu0 0.0
    %3793 = vmatpush1.msra.mxu0 0.0
    %3794 = vmatprep.subr.mxu0 0.0
    %3795 = vmatpush1.msra.mxu0 0.0
    %3796 = vmatprep.subr.mxu0 0.0
    %3797 = vmatpush1.msra.mxu0 0.0
    %3798 = vmatprep.subr.mxu0 0.0
    %3799 = vmatpush1.msra.mxu0 0.0
    %3800 = vmatprep.subr.mxu0 0.0
    %3801 = vmatpush1.msra.mxu0 0.0
    %3802 = vmatprep.subr.mxu0 0.0
    %3803 = vmatpush1.msra.mxu0 0.0
    %3804 = vmatprep.subr.mxu0 0.0
    %3805 = vmatpush1.msra.mxu0 0.0
    %3806 = vmatprep.subr.mxu0 0.0
    %3807 = vmatpush1.msra.mxu0 0.0
    %3808 = vmatprep.subr.mxu0 0.0
    %3809 = vmatpush1.msra.mxu0 0.0
    %3810 = vmatprep.subr.mxu0 0.0
    %3811 = vmatpush1.msra.mxu0 0.0
    %3812 = vmatprep.subr.mxu0 0.0
    %3813 = vmatpush1.msra.mxu0 0.0
    %3814 = vmatprep.subr.mxu0 0.0
    %3815 = vmatpush1.msra.mxu0 0.0
    %3816 = vmatprep.mubr.f32.mxu0 0.0
    %3817 = vmatmul.mubr.f32.gmra.mrb[0].mxu0 %v3750
    %v3818 = vpop.f32.mrb[0].mxu0
    %v3819 = vadd.f32 0.0, %v3818
    %v3820 = vpop.f32.mrb[0].mxu0
    %3821 = vdwg.mxu0
    %v3823 = vsel %vm3134, %v3302, 0
    %3825 = vmatprep.subr.mxu0 0.0
    %3826 = vmatpush1.msra.mxu0 %v1764
    %3827 = vmatprep.subr.mxu0 0.0
    %3828 = vmatpush1.msra.mxu0 0.0
    %3829 = vmatprep.subr.mxu0 0.0
    %3830 = vmatpush1.msra.mxu0 0.0
    %3831 = vmatprep.subr.mxu0 0.0
    %3832 = vmatpush1.msra.mxu0 0.0
    %3833 = vmatprep.subr.mxu0 0.0
    %3834 = vmatpush1.msra.mxu0 0.0
    %3835 = vmatprep.subr.mxu0 0.0
    %3836 = vmatpush1.msra.mxu0 0.0
    %3837 = vmatprep.subr.mxu0 0.0
    %3838 = vmatpush1.msra.mxu0 0.0
    %3839 = vmatprep.subr.mxu0 0.0
    %3840 = vmatpush1.msra.mxu0 0.0
    %3841 = vmatprep.subr.mxu0 0.0
    %3842 = vmatpush1.msra.mxu0 0.0
    %3843 = vmatprep.subr.mxu0 0.0
    %3844 = vmatpush1.msra.mxu0 0.0
    %3845 = vmatprep.subr.mxu0 0.0
    %3846 = vmatpush1.msra.mxu0 0.0
    %3847 = vmatprep.subr.mxu0 0.0
    %3848 = vmatpush1.msra.mxu0 0.0
    %3849 = vmatprep.subr.mxu0 0.0
    %3850 = vmatpush1.msra.mxu0 0.0
    %3851 = vmatprep.subr.mxu0 0.0
    %3852 = vmatpush1.msra.mxu0 0.0
    %3853 = vmatprep.subr.mxu0 0.0
    %3854 = vmatpush1.msra.mxu0 0.0
    %3855 = vmatprep.subr.mxu0 0.0
    %3856 = vmatpush1.msra.mxu0 0.0
    %3857 = vmatprep.subr.mxu0 0.0
    %3858 = vmatpush1.msra.mxu0 0.0
    %3859 = vmatprep.subr.mxu0 0.0
    %3860 = vmatpush1.msra.mxu0 0.0
    %3861 = vmatprep.subr.mxu0 0.0
    %3862 = vmatpush1.msra.mxu0 0.0
    %3863 = vmatprep.subr.mxu0 0.0
    %3864 = vmatpush1.msra.mxu0 0.0
    %3865 = vmatprep.subr.mxu0 0.0
    %3866 = vmatpush1.msra.mxu0 0.0
    %3867 = vmatprep.subr.mxu0 0.0
    %3868 = vmatpush1.msra.mxu0 0.0
    %3869 = vmatprep.subr.mxu0 0.0
    %3870 = vmatpush1.msra.mxu0 0.0
    %3871 = vmatprep.subr.mxu0 0.0
    %3872 = vmatpush1.msra.mxu0 0.0
    %3873 = vmatprep.subr.mxu0 0.0
    %3874 = vmatpush1.msra.mxu0 0.0
    %3875 = vmatprep.subr.mxu0 0.0
    %3876 = vmatpush1.msra.mxu0 0.0
    %3877 = vmatprep.subr.mxu0 0.0
    %3878 = vmatpush1.msra.mxu0 0.0
    %3879 = vmatprep.subr.mxu0 0.0
    %3880 = vmatpush1.msra.mxu0 0.0
    %3881 = vmatprep.subr.mxu0 0.0
    %3882 = vmatpush1.msra.mxu0 0.0
    %3883 = vmatprep.subr.mxu0 0.0
    %3884 = vmatpush1.msra.mxu0 0.0
    %3885 = vmatprep.subr.mxu0 0.0
    %3886 = vmatpush1.msra.mxu0 0.0
    %3887 = vmatprep.subr.mxu0 0.0
    %3888 = vmatpush1.msra.mxu0 0.0
    %3889 = vmatprep.mubr.f32.mxu0 0.0
    %3890 = vmatmul.mubr.f32.gmra.mrb[0].mxu0 %v3823
    %v3891 = vpop.f32.mrb[0].mxu0
    %v3892 = vadd.f32 0.0, %v3891
    %v3893 = vpop.f32.mrb[0].mxu0
    %3894 = vdwg.mxu0
    %v3896 = vsel %vm3134, %v3303, 0
    %3898 = vmatprep.subr.mxu0 0.0
    %3899 = vmatpush1.msra.mxu0 %v1893
    %3900 = vmatprep.subr.mxu0 0.0
    %3901 = vmatpush1.msra.mxu0 0.0
    %3902 = vmatprep.subr.mxu0 0.0
    %3903 = vmatpush1.msra.mxu0 0.0
    %3904 = vmatprep.subr.mxu0 0.0
    %3905 = vmatpush1.msra.mxu0 0.0
    %3906 = vmatprep.subr.mxu0 0.0
    %3907 = vmatpush1.msra.mxu0 0.0
    %3908 = vmatprep.subr.mxu0 0.0
    %3909 = vmatpush1.msra.mxu0 0.0
    %3910 = vmatprep.subr.mxu0 0.0
    %3911 = vmatpush1.msra.mxu0 0.0
    %3912 = vmatprep.subr.mxu0 0.0
    %3913 = vmatpush1.msra.mxu0 0.0
    %3914 = vmatprep.subr.mxu0 0.0
    %3915 = vmatpush1.msra.mxu0 0.0
    %3916 = vmatprep.subr.mxu0 0.0
    %3917 = vmatpush1.msra.mxu0 0.0
    %3918 = vmatprep.subr.mxu0 0.0
    %3919 = vmatpush1.msra.mxu0 0.0
    %3920 = vmatprep.subr.mxu0 0.0
    %3921 = vmatpush1.msra.mxu0 0.0
    %3922 = vmatprep.subr.mxu0 0.0
    %3923 = vmatpush1.msra.mxu0 0.0
    %3924 = vmatprep.subr.mxu0 0.0
    %3925 = vmatpush1.msra.mxu0 0.0
    %3926 = vmatprep.subr.mxu0 0.0
    %3927 = vmatpush1.msra.mxu0 0.0
    %3928 = vmatprep.subr.mxu0 0.0
    %3929 = vmatpush1.msra.mxu0 0.0
    %3930 = vmatprep.subr.mxu0 0.0
    %3931 = vmatpush1.msra.mxu0 0.0
    %3932 = vmatprep.subr.mxu0 0.0
    %3933 = vmatpush1.msra.mxu0 0.0
    %3934 = vmatprep.subr.mxu0 0.0
    %3935 = vmatpush1.msra.mxu0 0.0
    %3936 = vmatprep.subr.mxu0 0.0
    %3937 = vmatpush1.msra.mxu0 0.0
    %3938 = vmatprep.subr.mxu0 0.0
    %3939 = vmatpush1.msra.mxu0 0.0
    %3940 = vmatprep.subr.mxu0 0.0
    %3941 = vmatpush1.msra.mxu0 0.0
    %3942 = vmatprep.subr.mxu0 0.0
    %3943 = vmatpush1.msra.mxu0 0.0
    %3944 = vmatprep.subr.mxu0 0.0
    %3945 = vmatpush1.msra.mxu0 0.0
    %3946 = vmatprep.subr.mxu0 0.0
    %3947 = vmatpush1.msra.mxu0 0.0
    %3948 = vmatprep.subr.mxu0 0.0
    %3949 = vmatpush1.msra.mxu0 0.0
    %3950 = vmatprep.subr.mxu0 0.0
    %3951 = vmatpush1.msra.mxu0 0.0
    %3952 = vmatprep.subr.mxu0 0.0
    %3953 = vmatpush1.msra.mxu0 0.0
    %3954 = vmatprep.subr.mxu0 0.0
    %3955 = vmatpush1.msra.mxu0 0.0
    %3956 = vmatprep.subr.mxu0 0.0
    %3957 = vmatpush1.msra.mxu0 0.0
    %3958 = vmatprep.subr.mxu0 0.0
    %3959 = vmatpush1.msra.mxu0 0.0
    %3960 = vmatprep.subr.mxu0 0.0
    %3961 = vmatpush1.msra.mxu0 0.0
    %3962 = vmatprep.mubr.f32.mxu0 0.0
    %3963 = vmatmul.mubr.f32.gmra.mrb[0].mxu0 %v3896
    %v3964 = vpop.f32.mrb[0].mxu0
    %v3965 = vadd.f32 0.0, %v3964
    %v3966 = vpop.f32.mrb[0].mxu0
    %3967 = vdwg.mxu0
    %v3969 = vsel %vm3134, %v3304, 0
    %3971 = vmatprep.subr.mxu0 0.0
    %3972 = vmatpush1.msra.mxu0 %v1894
    %3973 = vmatprep.subr.mxu0 0.0
    %3974 = vmatpush1.msra.mxu0 0.0
    %3975 = vmatprep.subr.mxu0 0.0
    %3976 = vmatpush1.msra.mxu0 0.0
    %3977 = vmatprep.subr.mxu0 0.0
    %3978 = vmatpush1.msra.mxu0 0.0
    %3979 = vmatprep.subr.mxu0 0.0
    %3980 = vmatpush1.msra.mxu0 0.0
    %3981 = vmatprep.subr.mxu0 0.0
    %3982 = vmatpush1.msra.mxu0 0.0
    %3983 = vmatprep.subr.mxu0 0.0
    %3984 = vmatpush1.msra.mxu0 0.0
    %3985 = vmatprep.subr.mxu0 0.0
    %3986 = vmatpush1.msra.mxu0 0.0
    %3987 = vmatprep.subr.mxu0 0.0
    %3988 = vmatpush1.msra.mxu0 0.0
    %3989 = vmatprep.subr.mxu0 0.0
    %3990 = vmatpush1.msra.mxu0 0.0
    %3991 = vmatprep.subr.mxu0 0.0
    %3992 = vmatpush1.msra.mxu0 0.0
    %3993 = vmatprep.subr.mxu0 0.0
    %3994 = vmatpush1.msra.mxu0 0.0
    %3995 = vmatprep.subr.mxu0 0.0
    %3996 = vmatpush1.msra.mxu0 0.0
    %3997 = vmatprep.subr.mxu0 0.0
    %3998 = vmatpush1.msra.mxu0 0.0
    %3999 = vmatprep.subr.mxu0 0.0
    %4000 = vmatpush1.msra.mxu0 0.0
    %4001 = vmatprep.subr.mxu0 0.0
    %4002 = vmatpush1.msra.mxu0 0.0
    %4003 = vmatprep.subr.mxu0 0.0
    %4004 = vmatpush1.msra.mxu0 0.0
    %4005 = vmatprep.subr.mxu0 0.0
    %4006 = vmatpush1.msra.mxu0 0.0
    %4007 = vmatprep.subr.mxu0 0.0
    %4008 = vmatpush1.msra.mxu0 0.0
    %4009 = vmatprep.subr.mxu0 0.0
    %4010 = vmatpush1.msra.mxu0 0.0
    %4011 = vmatprep.subr.mxu0 0.0
    %4012 = vmatpush1.msra.mxu0 0.0
    %4013 = vmatprep.subr.mxu0 0.0
    %4014 = vmatpush1.msra.mxu0 0.0
    %4015 = vmatprep.subr.mxu0 0.0
    %4016 = vmatpush1.msra.mxu0 0.0
    %4017 = vmatprep.subr.mxu0 0.0
    %4018 = vmatpush1.msra.mxu0 0.0
    %4019 = vmatprep.subr.mxu0 0.0
    %4020 = vmatpush1.msra.mxu0 0.0
    %4021 = vmatprep.subr.mxu0 0.0
    %4022 = vmatpush1.msra.mxu0 0.0
    %4023 = vmatprep.subr.mxu0 0.0
    %4024 = vmatpush1.msra.mxu0 0.0
    %4025 = vmatprep.subr.mxu0 0.0
    %4026 = vmatpush1.msra.mxu0 0.0
    %4027 = vmatprep.subr.mxu0 0.0
    %4028 = vmatpush1.msra.mxu0 0.0
    %4029 = vmatprep.subr.mxu0 0.0
    %4030 = vmatpush1.msra.mxu0 0.0
    %4031 = vmatprep.subr.mxu0 0.0
    %4032 = vmatpush1.msra.mxu0 0.0
    %4033 = vmatprep.subr.mxu0 0.0
    %4034 = vmatpush1.msra.mxu0 0.0
    %4035 = vmatprep.mubr.f32.mxu0 0.0
    %4036 = vmatmul.mubr.f32.gmra.mrb[0].mxu0 %v3969
    %v4037 = vpop.f32.mrb[0].mxu0
    %v4038 = vadd.f32 0.0, %v4037
    %v4039 = vpop.f32.mrb[0].mxu0
    %4040 = vdwg.mxu0
    %v4042 = vsel %vm3134, %v3305, 0
    %4044 = vmatprep.subr.mxu0 0.0
    %4045 = vmatpush1.msra.mxu0 %v1895
    %4046 = vmatprep.subr.mxu0 0.0
    %4047 = vmatpush1.msra.mxu0 0.0
    %4048 = vmatprep.subr.mxu0 0.0
    %4049 = vmatpush1.msra.mxu0 0.0
    %4050 = vmatprep.subr.mxu0 0.0
    %4051 = vmatpush1.msra.mxu0 0.0
    %4052 = vmatprep.subr.mxu0 0.0
    %4053 = vmatpush1.msra.mxu0 0.0
    %4054 = vmatprep.subr.mxu0 0.0
    %4055 = vmatpush1.msra.mxu0 0.0
    %4056 = vmatprep.subr.mxu0 0.0
    %4057 = vmatpush1.msra.mxu0 0.0
    %4058 = vmatprep.subr.mxu0 0.0
    %4059 = vmatpush1.msra.mxu0 0.0
    %4060 = vmatprep.subr.mxu0 0.0
    %4061 = vmatpush1.msra.mxu0 0.0
    %4062 = vmatprep.subr.mxu0 0.0
    %4063 = vmatpush1.msra.mxu0 0.0
    %4064 = vmatprep.subr.mxu0 0.0
    %4065 = vmatpush1.msra.mxu0 0.0
    %4066 = vmatprep.subr.mxu0 0.0
    %4067 = vmatpush1.msra.mxu0 0.0
    %4068 = vmatprep.subr.mxu0 0.0
    %4069 = vmatpush1.msra.mxu0 0.0
    %4070 = vmatprep.subr.mxu0 0.0
    %4071 = vmatpush1.msra.mxu0 0.0
    %4072 = vmatprep.subr.mxu0 0.0
    %4073 = vmatpush1.msra.mxu0 0.0
    %4074 = vmatprep.subr.mxu0 0.0
    %4075 = vmatpush1.msra.mxu0 0.0
    %4076 = vmatprep.subr.mxu0 0.0
    %4077 = vmatpush1.msra.mxu0 0.0
    %4078 = vmatprep.subr.mxu0 0.0
    %4079 = vmatpush1.msra.mxu0 0.0
    %4080 = vmatprep.subr.mxu0 0.0
    %4081 = vmatpush1.msra.mxu0 0.0
    %4082 = vmatprep.subr.mxu0 0.0
    %4083 = vmatpush1.msra.mxu0 0.0
    %4084 = vmatprep.subr.mxu0 0.0
    %4085 = vmatpush1.msra.mxu0 0.0
    %4086 = vmatprep.subr.mxu0 0.0
    %4087 = vmatpush1.msra.mxu0 0.0
    %4088 = vmatprep.subr.mxu0 0.0
    %4089 = vmatpush1.msra.mxu0 0.0
    %4090 = vmatprep.subr.mxu0 0.0
    %4091 = vmatpush1.msra.mxu0 0.0
    %4092 = vmatprep.subr.mxu0 0.0
    %4093 = vmatpush1.msra.mxu0 0.0
    %4094 = vmatprep.subr.mxu0 0.0
    %4095 = vmatpush1.msra.mxu0 0.0
    %4096 = vmatprep.subr.mxu0 0.0
    %4097 = vmatpush1.msra.mxu0 0.0
    %4098 = vmatprep.subr.mxu0 0.0
    %4099 = vmatpush1.msra.mxu0 0.0
    %4100 = vmatprep.subr.mxu0 0.0
    %4101 = vmatpush1.msra.mxu0 0.0
    %4102 = vmatprep.subr.mxu0 0.0
    %4103 = vmatpush1.msra.mxu0 0.0
    %4104 = vmatprep.subr.mxu0 0.0
    %4105 = vmatpush1.msra.mxu0 0.0
    %4106 = vmatprep.subr.mxu0 0.0
    %4107 = vmatpush1.msra.mxu0 0.0
    %4108 = vmatprep.mubr.f32.mxu0 0.0
    %4109 = vmatmul.mubr.f32.gmra.mrb[0].mxu0 %v4042
    %v4110 = vpop.f32.mrb[0].mxu0
    %v4111 = vadd.f32 0.0, %v4110
    %v4112 = vpop.f32.mrb[0].mxu0
    %4113 = vdwg.mxu0
    %v4115 = vsel %vm3134, %v3306, 0
    %4117 = vmatprep.subr.mxu0 0.0
    %4118 = vmatpush1.msra.mxu0 %v1896
    %4119 = vmatprep.subr.mxu0 0.0
    %4120 = vmatpush1.msra.mxu0 0.0
    %4121 = vmatprep.subr.mxu0 0.0
    %4122 = vmatpush1.msra.mxu0 0.0
    %4123 = vmatprep.subr.mxu0 0.0
    %4124 = vmatpush1.msra.mxu0 0.0
    %4125 = vmatprep.subr.mxu0 0.0
    %4126 = vmatpush1.msra.mxu0 0.0
    %4127 = vmatprep.subr.mxu0 0.0
    %4128 = vmatpush1.msra.mxu0 0.0
    %4129 = vmatprep.subr.mxu0 0.0
    %4130 = vmatpush1.msra.mxu0 0.0
    %4131 = vmatprep.subr.mxu0 0.0
    %4132 = vmatpush1.msra.mxu0 0.0
    %4133 = vmatprep.subr.mxu0 0.0
    %4134 = vmatpush1.msra.mxu0 0.0
    %4135 = vmatprep.subr.mxu0 0.0
    %4136 = vmatpush1.msra.mxu0 0.0
    %4137 = vmatprep.subr.mxu0 0.0
    %4138 = vmatpush1.msra.mxu0 0.0
    %4139 = vmatprep.subr.mxu0 0.0
    %4140 = vmatpush1.msra.mxu0 0.0
    %4141 = vmatprep.subr.mxu0 0.0
    %4142 = vmatpush1.msra.mxu0 0.0
    %4143 = vmatprep.subr.mxu0 0.0
    %4144 = vmatpush1.msra.mxu0 0.0
    %4145 = vmatprep.subr.mxu0 0.0
    %4146 = vmatpush1.msra.mxu0 0.0
    %4147 = vmatprep.subr.mxu0 0.0
    %4148 = vmatpush1.msra.mxu0 0.0
    %4149 = vmatprep.subr.mxu0 0.0
    %4150 = vmatpush1.msra.mxu0 0.0
    %4151 = vmatprep.subr.mxu0 0.0
    %4152 = vmatpush1.msra.mxu0 0.0
    %4153 = vmatprep.subr.mxu0 0.0
    %4154 = vmatpush1.msra.mxu0 0.0
    %4155 = vmatprep.subr.mxu0 0.0
    %4156 = vmatpush1.msra.mxu0 0.0
    %4157 = vmatprep.subr.mxu0 0.0
    %4158 = vmatpush1.msra.mxu0 0.0
    %4159 = vmatprep.subr.mxu0 0.0
    %4160 = vmatpush1.msra.mxu0 0.0
    %4161 = vmatprep.subr.mxu0 0.0
    %4162 = vmatpush1.msra.mxu0 0.0
    %4163 = vmatprep.subr.mxu0 0.0
    %4164 = vmatpush1.msra.mxu0 0.0
    %4165 = vmatprep.subr.mxu0 0.0
    %4166 = vmatpush1.msra.mxu0 0.0
    %4167 = vmatprep.subr.mxu0 0.0
    %4168 = vmatpush1.msra.mxu0 0.0
    %4169 = vmatprep.subr.mxu0 0.0
    %4170 = vmatpush1.msra.mxu0 0.0
    %4171 = vmatprep.subr.mxu0 0.0
    %4172 = vmatpush1.msra.mxu0 0.0
    %4173 = vmatprep.subr.mxu0 0.0
    %4174 = vmatpush1.msra.mxu0 0.0
    %4175 = vmatprep.subr.mxu0 0.0
    %4176 = vmatpush1.msra.mxu0 0.0
    %4177 = vmatprep.subr.mxu0 0.0
    %4178 = vmatpush1.msra.mxu0 0.0
    %4179 = vmatprep.subr.mxu0 0.0
    %4180 = vmatpush1.msra.mxu0 0.0
    %4181 = vmatprep.mubr.f32.mxu0 0.0
    %4182 = vmatmul.mubr.f32.gmra.mrb[0].mxu0 %v4115
    %v4183 = vpop.f32.mrb[0].mxu0
    %v4184 = vadd.f32 0.0, %v4183
    %v4185 = vpop.f32.mrb[0].mxu0
    %4186 = vdwg.mxu0
    %v4188 = vsel %vm3134, %v3307, 0
    %4190 = vmatprep.subr.mxu0 0.0
    %4191 = vmatpush1.msra.mxu0 %v1897
    %4192 = vmatprep.subr.mxu0 0.0
    %4193 = vmatpush1.msra.mxu0 0.0
    %4194 = vmatprep.subr.mxu0 0.0
    %4195 = vmatpush1.msra.mxu0 0.0
    %4196 = vmatprep.subr.mxu0 0.0
    %4197 = vmatpush1.msra.mxu0 0.0
    %4198 = vmatprep.subr.mxu0 0.0
    %4199 = vmatpush1.msra.mxu0 0.0
    %4200 = vmatprep.subr.mxu0 0.0
    %4201 = vmatpush1.msra.mxu0 0.0
    %4202 = vmatprep.subr.mxu0 0.0
    %4203 = vmatpush1.msra.mxu0 0.0
    %4204 = vmatprep.subr.mxu0 0.0
    %4205 = vmatpush1.msra.mxu0 0.0
    %4206 = vmatprep.subr.mxu0 0.0
    %4207 = vmatpush1.msra.mxu0 0.0
    %4208 = vmatprep.subr.mxu0 0.0
    %4209 = vmatpush1.msra.mxu0 0.0
    %4210 = vmatprep.subr.mxu0 0.0
    %4211 = vmatpush1.msra.mxu0 0.0
    %4212 = vmatprep.subr.mxu0 0.0
    %4213 = vmatpush1.msra.mxu0 0.0
    %4214 = vmatprep.subr.mxu0 0.0
    %4215 = vmatpush1.msra.mxu0 0.0
    %4216 = vmatprep.subr.mxu0 0.0
    %4217 = vmatpush1.msra.mxu0 0.0
    %4218 = vmatprep.subr.mxu0 0.0
    %4219 = vmatpush1.msra.mxu0 0.0
    %4220 = vmatprep.subr.mxu0 0.0
    %4221 = vmatpush1.msra.mxu0 0.0
    %4222 = vmatprep.subr.mxu0 0.0
    %4223 = vmatpush1.msra.mxu0 0.0
    %4224 = vmatprep.subr.mxu0 0.0
    %4225 = vmatpush1.msra.mxu0 0.0
    %4226 = vmatprep.subr.mxu0 0.0
    %4227 = vmatpush1.msra.mxu0 0.0
    %4228 = vmatprep.subr.mxu0 0.0
    %4229 = vmatpush1.msra.mxu0 0.0
    %4230 = vmatprep.subr.mxu0 0.0
    %4231 = vmatpush1.msra.mxu0 0.0
    %4232 = vmatprep.subr.mxu0 0.0
    %4233 = vmatpush1.msra.mxu0 0.0
    %4234 = vmatprep.subr.mxu0 0.0
    %4235 = vmatpush1.msra.mxu0 0.0
    %4236 = vmatprep.subr.mxu0 0.0
    %4237 = vmatpush1.msra.mxu0 0.0
    %4238 = vmatprep.subr.mxu0 0.0
    %4239 = vmatpush1.msra.mxu0 0.0
    %4240 = vmatprep.subr.mxu0 0.0
    %4241 = vmatpush1.msra.mxu0 0.0
    %4242 = vmatprep.subr.mxu0 0.0
    %4243 = vmatpush1.msra.mxu0 0.0
    %4244 = vmatprep.subr.mxu0 0.0
    %4245 = vmatpush1.msra.mxu0 0.0
    %4246 = vmatprep.subr.mxu0 0.0
    %4247 = vmatpush1.msra.mxu0 0.0
    %4248 = vmatprep.subr.mxu0 0.0
    %4249 = vmatpush1.msra.mxu0 0.0
    %4250 = vmatprep.subr.mxu0 0.0
    %4251 = vmatpush1.msra.mxu0 0.0
    %4252 = vmatprep.subr.mxu0 0.0
    %4253 = vmatpush1.msra.mxu0 0.0
    %4254 = vmatprep.mubr.f32.mxu0 0.0
    %4255 = vmatmul.mubr.f32.gmra.mrb[0].mxu0 %v4188
    %v4256 = vpop.f32.mrb[0].mxu0
    %v4257 = vadd.f32 0.0, %v4256
    %v4258 = vpop.f32.mrb[0].mxu0
    %4259 = vdwg.mxu0
    %v4261 = vsel %vm3134, %v3308, 0
    %4263 = vmatprep.subr.mxu0 0.0
    %4264 = vmatpush1.msra.mxu0 %v1898
    %4265 = vmatprep.subr.mxu0 0.0
    %4266 = vmatpush1.msra.mxu0 0.0
    %4267 = vmatprep.subr.mxu0 0.0
    %4268 = vmatpush1.msra.mxu0 0.0
    %4269 = vmatprep.subr.mxu0 0.0
    %4270 = vmatpush1.msra.mxu0 0.0
    %4271 = vmatprep.subr.mxu0 0.0
    %4272 = vmatpush1.msra.mxu0 0.0
    %4273 = vmatprep.subr.mxu0 0.0
    %4274 = vmatpush1.msra.mxu0 0.0
    %4275 = vmatprep.subr.mxu0 0.0
    %4276 = vmatpush1.msra.mxu0 0.0
    %4277 = vmatprep.subr.mxu0 0.0
    %4278 = vmatpush1.msra.mxu0 0.0
    %4279 = vmatprep.subr.mxu0 0.0
    %4280 = vmatpush1.msra.mxu0 0.0
    %4281 = vmatprep.subr.mxu0 0.0
    %4282 = vmatpush1.msra.mxu0 0.0
    %4283 = vmatprep.subr.mxu0 0.0
    %4284 = vmatpush1.msra.mxu0 0.0
    %4285 = vmatprep.subr.mxu0 0.0
    %4286 = vmatpush1.msra.mxu0 0.0
    %4287 = vmatprep.subr.mxu0 0.0
    %4288 = vmatpush1.msra.mxu0 0.0
    %4289 = vmatprep.subr.mxu0 0.0
    %4290 = vmatpush1.msra.mxu0 0.0
    %4291 = vmatprep.subr.mxu0 0.0
    %4292 = vmatpush1.msra.mxu0 0.0
    %4293 = vmatprep.subr.mxu0 0.0
    %4294 = vmatpush1.msra.mxu0 0.0
    %4295 = vmatprep.subr.mxu0 0.0
    %4296 = vmatpush1.msra.mxu0 0.0
    %4297 = vmatprep.subr.mxu0 0.0
    %4298 = vmatpush1.msra.mxu0 0.0
    %4299 = vmatprep.subr.mxu0 0.0
    %4300 = vmatpush1.msra.mxu0 0.0
    %4301 = vmatprep.subr.mxu0 0.0
    %4302 = vmatpush1.msra.mxu0 0.0
    %4303 = vmatprep.subr.mxu0 0.0
    %4304 = vmatpush1.msra.mxu0 0.0
    %4305 = vmatprep.subr.mxu0 0.0
    %4306 = vmatpush1.msra.mxu0 0.0
    %4307 = vmatprep.subr.mxu0 0.0
    %4308 = vmatpush1.msra.mxu0 0.0
    %4309 = vmatprep.subr.mxu0 0.0
    %4310 = vmatpush1.msra.mxu0 0.0
    %4311 = vmatprep.subr.mxu0 0.0
    %4312 = vmatpush1.msra.mxu0 0.0
    %4313 = vmatprep.subr.mxu0 0.0
    %4314 = vmatpush1.msra.mxu0 0.0
    %4315 = vmatprep.subr.mxu0 0.0
    %4316 = vmatpush1.msra.mxu0 0.0
    %4317 = vmatprep.subr.mxu0 0.0
    %4318 = vmatpush1.msra.mxu0 0.0
    %4319 = vmatprep.subr.mxu0 0.0
    %4320 = vmatpush1.msra.mxu0 0.0
    %4321 = vmatprep.subr.mxu0 0.0
    %4322 = vmatpush1.msra.mxu0 0.0
    %4323 = vmatprep.subr.mxu0 0.0
    %4324 = vmatpush1.msra.mxu0 0.0
    %4325 = vmatprep.subr.mxu0 0.0
    %4326 = vmatpush1.msra.mxu0 0.0
    %4327 = vmatprep.mubr.f32.mxu0 0.0
    %4328 = vmatmul.mubr.f32.gmra.mrb[0].mxu0 %v4261
    %v4329 = vpop.f32.mrb[0].mxu0
    %v4330 = vadd.f32 0.0, %v4329
    %v4331 = vpop.f32.mrb[0].mxu0
    %4332 = vdwg.mxu0
    %v4334 = vsel %vm3134, %v3309, 0
    %4336 = vmatprep.subr.mxu0 0.0
    %4337 = vmatpush1.msra.mxu0 %v1899
    %4338 = vmatprep.subr.mxu0 0.0
    %4339 = vmatpush1.msra.mxu0 0.0
    %4340 = vmatprep.subr.mxu0 0.0
    %4341 = vmatpush1.msra.mxu0 0.0
    %4342 = vmatprep.subr.mxu0 0.0
    %4343 = vmatpush1.msra.mxu0 0.0
    %4344 = vmatprep.subr.mxu0 0.0
    %4345 = vmatpush1.msra.mxu0 0.0
    %4346 = vmatprep.subr.mxu0 0.0
    %4347 = vmatpush1.msra.mxu0 0.0
    %4348 = vmatprep.subr.mxu0 0.0
    %4349 = vmatpush1.msra.mxu0 0.0
    %4350 = vmatprep.subr.mxu0 0.0
    %4351 = vmatpush1.msra.mxu0 0.0
    %4352 = vmatprep.subr.mxu0 0.0
    %4353 = vmatpush1.msra.mxu0 0.0
    %4354 = vmatprep.subr.mxu0 0.0
    %4355 = vmatpush1.msra.mxu0 0.0
    %4356 = vmatprep.subr.mxu0 0.0
    %4357 = vmatpush1.msra.mxu0 0.0
    %4358 = vmatprep.subr.mxu0 0.0
    %4359 = vmatpush1.msra.mxu0 0.0
    %4360 = vmatprep.subr.mxu0 0.0
    %4361 = vmatpush1.msra.mxu0 0.0
    %4362 = vmatprep.subr.mxu0 0.0
    %4363 = vmatpush1.msra.mxu0 0.0
    %4364 = vmatprep.subr.mxu0 0.0
    %4365 = vmatpush1.msra.mxu0 0.0
    %4366 = vmatprep.subr.mxu0 0.0
    %4367 = vmatpush1.msra.mxu0 0.0
    %4368 = vmatprep.subr.mxu0 0.0
    %4369 = vmatpush1.msra.mxu0 0.0
    %4370 = vmatprep.subr.mxu0 0.0
    %4371 = vmatpush1.msra.mxu0 0.0
    %4372 = vmatprep.subr.mxu0 0.0
    %4373 = vmatpush1.msra.mxu0 0.0
    %4374 = vmatprep.subr.mxu0 0.0
    %4375 = vmatpush1.msra.mxu0 0.0
    %4376 = vmatprep.subr.mxu0 0.0
    %4377 = vmatpush1.msra.mxu0 0.0
    %4378 = vmatprep.subr.mxu0 0.0
    %4379 = vmatpush1.msra.mxu0 0.0
    %4380 = vmatprep.subr.mxu0 0.0
    %4381 = vmatpush1.msra.mxu0 0.0
    %4382 = vmatprep.subr.mxu0 0.0
    %4383 = vmatpush1.msra.mxu0 0.0
    %4384 = vmatprep.subr.mxu0 0.0
    %4385 = vmatpush1.msra.mxu0 0.0
    %4386 = vmatprep.subr.mxu0 0.0
    %4387 = vmatpush1.msra.mxu0 0.0
    %4388 = vmatprep.subr.mxu0 0.0
    %4389 = vmatpush1.msra.mxu0 0.0
    %4390 = vmatprep.subr.mxu0 0.0
    %4391 = vmatpush1.msra.mxu0 0.0
    %4392 = vmatprep.subr.mxu0 0.0
    %4393 = vmatpush1.msra.mxu0 0.0
    %4394 = vmatprep.subr.mxu0 0.0
    %4395 = vmatpush1.msra.mxu0 0.0
    %4396 = vmatprep.subr.mxu0 0.0
    %4397 = vmatpush1.msra.mxu0 0.0
    %4398 = vmatprep.subr.mxu0 0.0
    %4399 = vmatpush1.msra.mxu0 0.0
    %4400 = vmatprep.mubr.f32.mxu0 0.0
    %4401 = vmatmul.mubr.f32.gmra.mrb[0].mxu0 %v4334
    %v4402 = vpop.f32.mrb[0].mxu0
    %v4403 = vadd.f32 0.0, %v4402
    %v4404 = vpop.f32.mrb[0].mxu0
    %4405 = vdwg.mxu0
    %v4407 = vsel %vm3134, %v3310, 0
    %4409 = vmatprep.subr.mxu0 0.0
    %4410 = vmatpush1.msra.mxu0 %v1900
    %4411 = vmatprep.subr.mxu0 0.0
    %4412 = vmatpush1.msra.mxu0 0.0
    %4413 = vmatprep.subr.mxu0 0.0
    %4414 = vmatpush1.msra.mxu0 0.0
    %4415 = vmatprep.subr.mxu0 0.0
    %4416 = vmatpush1.msra.mxu0 0.0
    %4417 = vmatprep.subr.mxu0 0.0
    %4418 = vmatpush1.msra.mxu0 0.0
    %4419 = vmatprep.subr.mxu0 0.0
    %4420 = vmatpush1.msra.mxu0 0.0
    %4421 = vmatprep.subr.mxu0 0.0
    %4422 = vmatpush1.msra.mxu0 0.0
    %4423 = vmatprep.subr.mxu0 0.0
    %4424 = vmatpush1.msra.mxu0 0.0
    %4425 = vmatprep.subr.mxu0 0.0
    %4426 = vmatpush1.msra.mxu0 0.0
    %4427 = vmatprep.subr.mxu0 0.0
    %4428 = vmatpush1.msra.mxu0 0.0
    %4429 = vmatprep.subr.mxu0 0.0
    %4430 = vmatpush1.msra.mxu0 0.0
    %4431 = vmatprep.subr.mxu0 0.0
    %4432 = vmatpush1.msra.mxu0 0.0
    %4433 = vmatprep.subr.mxu0 0.0
    %4434 = vmatpush1.msra.mxu0 0.0
    %4435 = vmatprep.subr.mxu0 0.0
    %4436 = vmatpush1.msra.mxu0 0.0
    %4437 = vmatprep.subr.mxu0 0.0
    %4438 = vmatpush1.msra.mxu0 0.0
    %4439 = vmatprep.subr.mxu0 0.0
    %4440 = vmatpush1.msra.mxu0 0.0
    %4441 = vmatprep.subr.mxu0 0.0
    %4442 = vmatpush1.msra.mxu0 0.0
    %4443 = vmatprep.subr.mxu0 0.0
    %4444 = vmatpush1.msra.mxu0 0.0
    %4445 = vmatprep.subr.mxu0 0.0
    %4446 = vmatpush1.msra.mxu0 0.0
    %4447 = vmatprep.subr.mxu0 0.0
    %4448 = vmatpush1.msra.mxu0 0.0
    %4449 = vmatprep.subr.mxu0 0.0
    %4450 = vmatpush1.msra.mxu0 0.0
    %4451 = vmatprep.subr.mxu0 0.0
    %4452 = vmatpush1.msra.mxu0 0.0
    %4453 = vmatprep.subr.mxu0 0.0
    %4454 = vmatpush1.msra.mxu0 0.0
    %4455 = vmatprep.subr.mxu0 0.0
    %4456 = vmatpush1.msra.mxu0 0.0
    %4457 = vmatprep.subr.mxu0 0.0
    %4458 = vmatpush1.msra.mxu0 0.0
    %4459 = vmatprep.subr.mxu0 0.0
    %4460 = vmatpush1.msra.mxu0 0.0
    %4461 = vmatprep.subr.mxu0 0.0
    %4462 = vmatpush1.msra.mxu0 0.0
    %4463 = vmatprep.subr.mxu0 0.0
    %4464 = vmatpush1.msra.mxu0 0.0
    %4465 = vmatprep.subr.mxu0 0.0
    %4466 = vmatpush1.msra.mxu0 0.0
    %4467 = vmatprep.subr.mxu0 0.0
    %4468 = vmatpush1.msra.mxu0 0.0
    %4469 = vmatprep.subr.mxu0 0.0
    %4470 = vmatpush1.msra.mxu0 0.0
    %4471 = vmatprep.subr.mxu0 0.0
    %4472 = vmatpush1.msra.mxu0 0.0
    %4473 = vmatprep.mubr.f32.mxu0 0.0
    %4474 = vmatmul.mubr.f32.gmra.mrb[0].mxu0 %v4407
    %v4475 = vpop.f32.mrb[0].mxu0
    %v4476 = vadd.f32 0.0, %v4475
    %v4477 = vpop.f32.mrb[0].mxu0
    %4478 = vdwg.mxu0
    %v4479 = vcombine.low %v3381, %v3527
    %v4480 = vcombine.high %v3381, %v3527
    %v4482 = vunpack.c.l.s4 1983009808
    %v4483 = vunpack.c.0.s8 %v4482
    %v4484 = vlaneseq
    %v4485 = vshrl.u32 %v4484, 7
    %v4486 = vsub.s32 %v4483, %v4485
    %v4487 = vrot.slane %v4479, %v4486
    %v4489 = vunpack.c.l.s4 1983009808
    %v4490 = vunpack.c.0.s8 %v4489
    %v4491 = vlaneseq
    %v4492 = vshrl.u32 %v4491, 7
    %v4493 = vsub.s32 %v4490, %v4492
    %v4494 = vrot.slane %v4480, %v4493
    %v4495 = vcombine.low %v3454, %v3600
    %v4496 = vcombine.high %v3454, %v3600
    %v4498 = vunpack.c.l.s4 1983009808
    %v4499 = vunpack.c.0.s8 %v4498
    %v4500 = vlaneseq
    %v4501 = vshrl.u32 %v4500, 7
    %v4502 = vsub.s32 %v4499, %v4501
    %v4503 = vrot.slane %v4495, %v4502
    %v4505 = vunpack.c.l.s4 1983009808
    %v4506 = vunpack.c.0.s8 %v4505
    %v4507 = vlaneseq
    %v4508 = vshrl.u32 %v4507, 7
    %v4509 = vsub.s32 %v4506, %v4508
    %v4510 = vrot.slane %v4496, %v4509
    %v4511 = vcombine.low %v3673, %v3819
    %v4512 = vcombine.high %v3673, %v3819
    %v4514 = vunpack.c.l.s4 1983009808
    %v4515 = vunpack.c.0.s8 %v4514
    %v4516 = vlaneseq
    %v4517 = vshrl.u32 %v4516, 7
    %v4518 = vsub.s32 %v4515, %v4517
    %v4519 = vrot.slane %v4511, %v4518
    %v4521 = vunpack.c.l.s4 1983009808
    %v4522 = vunpack.c.0.s8 %v4521
    %v4523 = vlaneseq
    %v4524 = vshrl.u32 %v4523, 7
    %v4525 = vsub.s32 %v4522, %v4524
    %v4526 = vrot.slane %v4512, %v4525
    %v4527 = vcombine.low %v3746, %v3892
    %v4528 = vcombine.high %v3746, %v3892
    %v4530 = vunpack.c.l.s4 1983009808
    %v4531 = vunpack.c.0.s8 %v4530
    %v4532 = vlaneseq
    %v4533 = vshrl.u32 %v4532, 7
    %v4534 = vsub.s32 %v4531, %v4533
    %v4535 = vrot.slane %v4527, %v4534
    %v4537 = vunpack.c.l.s4 1983009808
    %v4538 = vunpack.c.0.s8 %v4537
    %v4539 = vlaneseq
    %v4540 = vshrl.u32 %v4539, 7
    %v4541 = vsub.s32 %v4538, %v4540
    %v4542 = vrot.slane %v4528, %v4541
    %v4543 = vcombine.low %v4487, %v4503
    %v4544 = vcombine.high %v4487, %v4503
    %v4546 = vunpack.c.l.s4 1934713408
    %v4547 = vunpack.c.0.s8 %v4546
    %v4548 = vlaneseq
    %v4549 = vshrl.u32 %v4548, 7
    %v4550 = vsub.s32 %v4547, %v4549
    %v4551 = vrot.slane %v4543, %v4550
    %v4553 = vunpack.c.l.s4 1934713408
    %v4554 = vunpack.c.0.s8 %v4553
    %v4555 = vlaneseq
    %v4556 = vshrl.u32 %v4555, 7
    %v4557 = vsub.s32 %v4554, %v4556
    %v4558 = vrot.slane %v4544, %v4557
    %v4559 = vcombine.low %v4494, %v4510
    %v4560 = vcombine.high %v4494, %v4510
    %v4562 = vunpack.c.l.s4 1934713408
    %v4563 = vunpack.c.0.s8 %v4562
    %v4564 = vlaneseq
    %v4565 = vshrl.u32 %v4564, 7
    %v4566 = vsub.s32 %v4563, %v4565
    %v4567 = vrot.slane %v4559, %v4566
    %v4569 = vunpack.c.l.s4 1934713408
    %v4570 = vunpack.c.0.s8 %v4569
    %v4571 = vlaneseq
    %v4572 = vshrl.u32 %v4571, 7
    %v4573 = vsub.s32 %v4570, %v4572
    %v4574 = vrot.slane %v4560, %v4573
    %v4575 = vcombine.low %v4519, %v4535
    %v4576 = vcombine.high %v4519, %v4535
    %v4578 = vunpack.c.l.s4 1934713408
    %v4579 = vunpack.c.0.s8 %v4578
    %v4580 = vlaneseq
    %v4581 = vshrl.u32 %v4580, 7
    %v4582 = vsub.s32 %v4579, %v4581
    %v4583 = vrot.slane %v4575, %v4582
    %v4585 = vunpack.c.l.s4 1934713408
    %v4586 = vunpack.c.0.s8 %v4585
    %v4587 = vlaneseq
    %v4588 = vshrl.u32 %v4587, 7
    %v4589 = vsub.s32 %v4586, %v4588
    %v4590 = vrot.slane %v4576, %v4589
    %v4591 = vcombine.low %v4526, %v4542
    %v4592 = vcombine.high %v4526, %v4542
    %v4594 = vunpack.c.l.s4 1934713408
    %v4595 = vunpack.c.0.s8 %v4594
    %v4596 = vlaneseq
    %v4597 = vshrl.u32 %v4596, 7
    %v4598 = vsub.s32 %v4595, %v4597
    %v4599 = vrot.slane %v4591, %v4598
    %v4601 = vunpack.c.l.s4 1934713408
    %v4602 = vunpack.c.0.s8 %v4601
    %v4603 = vlaneseq
    %v4604 = vshrl.u32 %v4603, 7
    %v4605 = vsub.s32 %v4602, %v4604
    %v4606 = vrot.slane %v4592, %v4605
    %v4607 = vcombine.low %v4551, %v4583
    %v4608 = vcombine.high %v4551, %v4583
    %v4609 = vcombine.low %v4558, %v4590
    %v4610 = vcombine.high %v4558, %v4590
    %v4611 = vcombine.low %v4567, %v4599
    %v4612 = vcombine.high %v4567, %v4599
    %v4613 = vcombine.low %v4574, %v4606
    %v4614 = vcombine.high %v4574, %v4606
    %v4615 = vcombine.low %v3965, %v4111
    %v4616 = vcombine.high %v3965, %v4111
    %v4618 = vunpack.c.l.s4 1983009808
    %v4619 = vunpack.c.0.s8 %v4618
    %v4620 = vlaneseq
    %v4621 = vshrl.u32 %v4620, 7
    %v4622 = vsub.s32 %v4619, %v4621
    %v4623 = vrot.slane %v4615, %v4622
    %v4625 = vunpack.c.l.s4 1983009808
    %v4626 = vunpack.c.0.s8 %v4625
    %v4627 = vlaneseq
    %v4628 = vshrl.u32 %v4627, 7
    %v4629 = vsub.s32 %v4626, %v4628
    %v4630 = vrot.slane %v4616, %v4629
    %v4631 = vcombine.low %v4038, %v4184
    %v4632 = vcombine.high %v4038, %v4184
    %v4634 = vunpack.c.l.s4 1983009808
    %v4635 = vunpack.c.0.s8 %v4634
    %v4636 = vlaneseq
    %v4637 = vshrl.u32 %v4636, 7
    %v4638 = vsub.s32 %v4635, %v4637
    %v4639 = vrot.slane %v4631, %v4638
    %v4641 = vunpack.c.l.s4 1983009808
    %v4642 = vunpack.c.0.s8 %v4641
    %v4643 = vlaneseq
    %v4644 = vshrl.u32 %v4643, 7
    %v4645 = vsub.s32 %v4642, %v4644
    %v4646 = vrot.slane %v4632, %v4645
    %v4647 = vcombine.low %v4257, %v4403
    %v4648 = vcombine.high %v4257, %v4403
    %v4650 = vunpack.c.l.s4 1983009808
    %v4651 = vunpack.c.0.s8 %v4650
    %v4652 = vlaneseq
    %v4653 = vshrl.u32 %v4652, 7
    %v4654 = vsub.s32 %v4651, %v4653
    %v4655 = vrot.slane %v4647, %v4654
    %v4657 = vunpack.c.l.s4 1983009808
    %v4658 = vunpack.c.0.s8 %v4657
    %v4659 = vlaneseq
    %v4660 = vshrl.u32 %v4659, 7
    %v4661 = vsub.s32 %v4658, %v4660
    %v4662 = vrot.slane %v4648, %v4661
    %v4663 = vcombine.low %v4330, %v4476
    %v4664 = vcombine.high %v4330, %v4476
    %v4666 = vunpack.c.l.s4 1983009808
    %v4667 = vunpack.c.0.s8 %v4666
    %v4668 = vlaneseq
    %v4669 = vshrl.u32 %v4668, 7
    %v4670 = vsub.s32 %v4667, %v4669
    %v4671 = vrot.slane %v4663, %v4670
    %v4673 = vunpack.c.l.s4 1983009808
    %v4674 = vunpack.c.0.s8 %v4673
    %v4675 = vlaneseq
    %v4676 = vshrl.u32 %v4675, 7
    %v4677 = vsub.s32 %v4674, %v4676
    %v4678 = vrot.slane %v4664, %v4677
    %v4679 = vcombine.low %v4623, %v4639
    %v4680 = vcombine.high %v4623, %v4639
    %v4682 = vunpack.c.l.s4 1934713408
    %v4683 = vunpack.c.0.s8 %v4682
    %v4684 = vlaneseq
    %v4685 = vshrl.u32 %v4684, 7
    %v4686 = vsub.s32 %v4683, %v4685
    %v4687 = vrot.slane %v4679, %v4686
    %v4689 = vunpack.c.l.s4 1934713408
    %v4690 = vunpack.c.0.s8 %v4689
    %v4691 = vlaneseq
    %v4692 = vshrl.u32 %v4691, 7
    %v4693 = vsub.s32 %v4690, %v4692
    %v4694 = vrot.slane %v4680, %v4693
    %v4695 = vcombine.low %v4630, %v4646
    %v4696 = vcombine.high %v4630, %v4646
    %v4698 = vunpack.c.l.s4 1934713408
    %v4699 = vunpack.c.0.s8 %v4698
    %v4700 = vlaneseq
    %v4701 = vshrl.u32 %v4700, 7
    %v4702 = vsub.s32 %v4699, %v4701
    %v4703 = vrot.slane %v4695, %v4702
    %v4705 = vunpack.c.l.s4 1934713408
    %v4706 = vunpack.c.0.s8 %v4705
    %v4707 = vlaneseq
    %v4708 = vshrl.u32 %v4707, 7
    %v4709 = vsub.s32 %v4706, %v4708
    %v4710 = vrot.slane %v4696, %v4709
    %v4711 = vcombine.low %v4655, %v4671
    %v4712 = vcombine.high %v4655, %v4671
    %v4714 = vunpack.c.l.s4 1934713408
    %v4715 = vunpack.c.0.s8 %v4714
    %v4716 = vlaneseq
    %v4717 = vshrl.u32 %v4716, 7
    %v4718 = vsub.s32 %v4715, %v4717
    %v4719 = vrot.slane %v4711, %v4718
    %v4721 = vunpack.c.l.s4 1934713408
    %v4722 = vunpack.c.0.s8 %v4721
    %v4723 = vlaneseq
    %v4724 = vshrl.u32 %v4723, 7
    %v4725 = vsub.s32 %v4722, %v4724
    %v4726 = vrot.slane %v4712, %v4725
    %v4727 = vcombine.low %v4662, %v4678
    %v4728 = vcombine.high %v4662, %v4678
    %v4730 = vunpack.c.l.s4 1934713408
    %v4731 = vunpack.c.0.s8 %v4730
    %v4732 = vlaneseq
    %v4733 = vshrl.u32 %v4732, 7
    %v4734 = vsub.s32 %v4731, %v4733
    %v4735 = vrot.slane %v4727, %v4734
    %v4737 = vunpack.c.l.s4 1934713408
    %v4738 = vunpack.c.0.s8 %v4737
    %v4739 = vlaneseq
    %v4740 = vshrl.u32 %v4739, 7
    %v4741 = vsub.s32 %v4738, %v4740
    %v4742 = vrot.slane %v4728, %v4741
    %v4743 = vcombine.low %v4687, %v4719
    %v4744 = vcombine.high %v4687, %v4719
    %v4745 = vcombine.low %v4694, %v4726
    %v4746 = vcombine.high %v4694, %v4726
    %v4747 = vcombine.low %v4703, %v4735
    %v4748 = vcombine.high %v4703, %v4735
    %v4749 = vcombine.low %v4710, %v4742
    %v4750 = vcombine.high %v4710, %v4742
    %v4751 = vcombine.low %v4607, %v4609
    %v4752 = vcombine.high %v4607, %v4609
    %v4754 = vunpack.c.l.s4 1983009808
    %v4755 = vunpack.c.0.s8 %v4754
    %v4756 = vlaneseq
    %v4757 = vshrl.u32 %v4756, 7
    %v4758 = vsub.s32 %v4755, %v4757
    %v4759 = vrot.slane %v4751, %v4758
    %v4761 = vunpack.c.l.s4 1983009808
    %v4762 = vunpack.c.0.s8 %v4761
    %v4763 = vlaneseq
    %v4764 = vshrl.u32 %v4763, 7
    %v4765 = vsub.s32 %v4762, %v4764
    %v4766 = vrot.slane %v4752, %v4765
    %v4767 = vcombine.low %v4608, %v4610
    %v4768 = vcombine.high %v4608, %v4610
    %v4770 = vunpack.c.l.s4 1983009808
    %v4771 = vunpack.c.0.s8 %v4770
    %v4772 = vlaneseq
    %v4773 = vshrl.u32 %v4772, 7
    %v4774 = vsub.s32 %v4771, %v4773
    %v4775 = vrot.slane %v4767, %v4774
    %v4777 = vunpack.c.l.s4 1983009808
    %v4778 = vunpack.c.0.s8 %v4777
    %v4779 = vlaneseq
    %v4780 = vshrl.u32 %v4779, 7
    %v4781 = vsub.s32 %v4778, %v4780
    %v4782 = vrot.slane %v4768, %v4781
    %v4783 = vcombine.low %v4611, %v4613
    %v4784 = vcombine.high %v4611, %v4613
    %v4786 = vunpack.c.l.s4 1983009808
    %v4787 = vunpack.c.0.s8 %v4786
    %v4788 = vlaneseq
    %v4789 = vshrl.u32 %v4788, 7
    %v4790 = vsub.s32 %v4787, %v4789
    %v4791 = vrot.slane %v4783, %v4790
    %v4793 = vunpack.c.l.s4 1983009808
    %v4794 = vunpack.c.0.s8 %v4793
    %v4795 = vlaneseq
    %v4796 = vshrl.u32 %v4795, 7
    %v4797 = vsub.s32 %v4794, %v4796
    %v4798 = vrot.slane %v4784, %v4797
    %v4799 = vcombine.low %v4612, %v4614
    %v4800 = vcombine.high %v4612, %v4614
    %v4802 = vunpack.c.l.s4 1983009808
    %v4803 = vunpack.c.0.s8 %v4802
    %v4804 = vlaneseq
    %v4805 = vshrl.u32 %v4804, 7
    %v4806 = vsub.s32 %v4803, %v4805
    %v4807 = vrot.slane %v4799, %v4806
    %v4809 = vunpack.c.l.s4 1983009808
    %v4810 = vunpack.c.0.s8 %v4809
    %v4811 = vlaneseq
    %v4812 = vshrl.u32 %v4811, 7
    %v4813 = vsub.s32 %v4810, %v4812
    %v4814 = vrot.slane %v4800, %v4813
    %v4815 = vcombine.low %v4759, %v4775
    %v4816 = vcombine.high %v4759, %v4775
    %v4818 = vunpack.c.l.s4 1934713408
    %v4819 = vunpack.c.0.s8 %v4818
    %v4820 = vlaneseq
    %v4821 = vshrl.u32 %v4820, 7
    %v4822 = vsub.s32 %v4819, %v4821
    %v4823 = vrot.slane %v4815, %v4822
    %v4825 = vunpack.c.l.s4 1934713408
    %v4826 = vunpack.c.0.s8 %v4825
    %v4827 = vlaneseq
    %v4828 = vshrl.u32 %v4827, 7
    %v4829 = vsub.s32 %v4826, %v4828
    %v4830 = vrot.slane %v4816, %v4829
    %v4831 = vcombine.low %v4766, %v4782
    %v4832 = vcombine.high %v4766, %v4782
    %v4834 = vunpack.c.l.s4 1934713408
    %v4835 = vunpack.c.0.s8 %v4834
    %v4836 = vlaneseq
    %v4837 = vshrl.u32 %v4836, 7
    %v4838 = vsub.s32 %v4835, %v4837
    %v4839 = vrot.slane %v4831, %v4838
    %v4841 = vunpack.c.l.s4 1934713408
    %v4842 = vunpack.c.0.s8 %v4841
    %v4843 = vlaneseq
    %v4844 = vshrl.u32 %v4843, 7
    %v4845 = vsub.s32 %v4842, %v4844
    %v4846 = vrot.slane %v4832, %v4845
    %v4847 = vcombine.low %v4791, %v4807
    %v4848 = vcombine.high %v4791, %v4807
    %v4850 = vunpack.c.l.s4 1934713408
    %v4851 = vunpack.c.0.s8 %v4850
    %v4852 = vlaneseq
    %v4853 = vshrl.u32 %v4852, 7
    %v4854 = vsub.s32 %v4851, %v4853
    %v4855 = vrot.slane %v4847, %v4854
    %v4857 = vunpack.c.l.s4 1934713408
    %v4858 = vunpack.c.0.s8 %v4857
    %v4859 = vlaneseq
    %v4860 = vshrl.u32 %v4859, 7
    %v4861 = vsub.s32 %v4858, %v4860
    %v4862 = vrot.slane %v4848, %v4861
    %v4863 = vcombine.low %v4798, %v4814
    %v4864 = vcombine.high %v4798, %v4814
    %v4866 = vunpack.c.l.s4 1934713408
    %v4867 = vunpack.c.0.s8 %v4866
    %v4868 = vlaneseq
    %v4869 = vshrl.u32 %v4868, 7
    %v4870 = vsub.s32 %v4867, %v4869
    %v4871 = vrot.slane %v4863, %v4870
    %v4873 = vunpack.c.l.s4 1934713408
    %v4874 = vunpack.c.0.s8 %v4873
    %v4875 = vlaneseq
    %v4876 = vshrl.u32 %v4875, 7
    %v4877 = vsub.s32 %v4874, %v4876
    %v4878 = vrot.slane %v4864, %v4877
    %v4879 = vcombine.low %v4823, %v4855
    %v4880 = vcombine.high %v4823, %v4855
    %v4881 = vcombine.low %v4830, %v4862
    %v4882 = vcombine.high %v4830, %v4862
    %v4883 = vcombine.low %v4839, %v4871
    %v4884 = vcombine.high %v4839, %v4871
    %v4885 = vcombine.low %v4846, %v4878
    %v4886 = vcombine.high %v4846, %v4878
    %v4887 = vcombine.low %v4743, %v4745
    %v4888 = vcombine.high %v4743, %v4745
    %v4890 = vunpack.c.l.s4 1983009808
    %v4891 = vunpack.c.0.s8 %v4890
    %v4892 = vlaneseq
    %v4893 = vshrl.u32 %v4892, 7
    %v4894 = vsub.s32 %v4891, %v4893
    %v4895 = vrot.slane %v4887, %v4894
    %v4897 = vunpack.c.l.s4 1983009808
    %v4898 = vunpack.c.0.s8 %v4897
    %v4899 = vlaneseq
    %v4900 = vshrl.u32 %v4899, 7
    %v4901 = vsub.s32 %v4898, %v4900
    %v4902 = vrot.slane %v4888, %v4901
    %v4903 = vcombine.low %v4744, %v4746
    %v4904 = vcombine.high %v4744, %v4746
    %v4906 = vunpack.c.l.s4 1983009808
    %v4907 = vunpack.c.0.s8 %v4906
    %v4908 = vlaneseq
    %v4909 = vshrl.u32 %v4908, 7
    %v4910 = vsub.s32 %v4907, %v4909
    %v4911 = vrot.slane %v4903, %v4910
    %v4913 = vunpack.c.l.s4 1983009808
    %v4914 = vunpack.c.0.s8 %v4913
    %v4915 = vlaneseq
    %v4916 = vshrl.u32 %v4915, 7
    %v4917 = vsub.s32 %v4914, %v4916
    %v4918 = vrot.slane %v4904, %v4917
    %v4919 = vcombine.low %v4747, %v4749
    %v4920 = vcombine.high %v4747, %v4749
    %v4922 = vunpack.c.l.s4 1983009808
    %v4923 = vunpack.c.0.s8 %v4922
    %v4924 = vlaneseq
    %v4925 = vshrl.u32 %v4924, 7
    %v4926 = vsub.s32 %v4923, %v4925
    %v4927 = vrot.slane %v4919, %v4926
    %v4929 = vunpack.c.l.s4 1983009808
    %v4930 = vunpack.c.0.s8 %v4929
    %v4931 = vlaneseq
    %v4932 = vshrl.u32 %v4931, 7
    %v4933 = vsub.s32 %v4930, %v4932
    %v4934 = vrot.slane %v4920, %v4933
    %v4935 = vcombine.low %v4748, %v4750
    %v4936 = vcombine.high %v4748, %v4750
    %v4938 = vunpack.c.l.s4 1983009808
    %v4939 = vunpack.c.0.s8 %v4938
    %v4940 = vlaneseq
    %v4941 = vshrl.u32 %v4940, 7
    %v4942 = vsub.s32 %v4939, %v4941
    %v4943 = vrot.slane %v4935, %v4942
    %v4945 = vunpack.c.l.s4 1983009808
    %v4946 = vunpack.c.0.s8 %v4945
    %v4947 = vlaneseq
    %v4948 = vshrl.u32 %v4947, 7
    %v4949 = vsub.s32 %v4946, %v4948
    %v4950 = vrot.slane %v4936, %v4949
    %v4951 = vcombine.low %v4895, %v4911
    %v4952 = vcombine.high %v4895, %v4911
    %v4954 = vunpack.c.l.s4 1934713408
    %v4955 = vunpack.c.0.s8 %v4954
    %v4956 = vlaneseq
    %v4957 = vshrl.u32 %v4956, 7
    %v4958 = vsub.s32 %v4955, %v4957
    %v4959 = vrot.slane %v4951, %v4958
    %v4961 = vunpack.c.l.s4 1934713408
    %v4962 = vunpack.c.0.s8 %v4961
    %v4963 = vlaneseq
    %v4964 = vshrl.u32 %v4963, 7
    %v4965 = vsub.s32 %v4962, %v4964
    %v4966 = vrot.slane %v4952, %v4965
    %v4967 = vcombine.low %v4902, %v4918
    %v4968 = vcombine.high %v4902, %v4918
    %v4970 = vunpack.c.l.s4 1934713408
    %v4971 = vunpack.c.0.s8 %v4970
    %v4972 = vlaneseq
    %v4973 = vshrl.u32 %v4972, 7
    %v4974 = vsub.s32 %v4971, %v4973
    %v4975 = vrot.slane %v4967, %v4974
    %v4977 = vunpack.c.l.s4 1934713408
    %v4978 = vunpack.c.0.s8 %v4977
    %v4979 = vlaneseq
    %v4980 = vshrl.u32 %v4979, 7
    %v4981 = vsub.s32 %v4978, %v4980
    %v4982 = vrot.slane %v4968, %v4981
    %v4983 = vcombine.low %v4927, %v4943
    %v4984 = vcombine.high %v4927, %v4943
    %v4986 = vunpack.c.l.s4 1934713408
    %v4987 = vunpack.c.0.s8 %v4986
    %v4988 = vlaneseq
    %v4989 = vshrl.u32 %v4988, 7
    %v4990 = vsub.s32 %v4987, %v4989
    %v4991 = vrot.slane %v4983, %v4990
    %v4993 = vunpack.c.l.s4 1934713408
    %v4994 = vunpack.c.0.s8 %v4993
    %v4995 = vlaneseq
    %v4996 = vshrl.u32 %v4995, 7
    %v4997 = vsub.s32 %v4994, %v4996
    %v4998 = vrot.slane %v4984, %v4997
    %v4999 = vcombine.low %v4934, %v4950
    %v5000 = vcombine.high %v4934, %v4950
    %v5002 = vunpack.c.l.s4 1934713408
    %v5003 = vunpack.c.0.s8 %v5002
    %v5004 = vlaneseq
    %v5005 = vshrl.u32 %v5004, 7
    %v5006 = vsub.s32 %v5003, %v5005
    %v5007 = vrot.slane %v4999, %v5006
    %v5009 = vunpack.c.l.s4 1934713408
    %v5010 = vunpack.c.0.s8 %v5009
    %v5011 = vlaneseq
    %v5012 = vshrl.u32 %v5011, 7
    %v5013 = vsub.s32 %v5010, %v5012
    %v5014 = vrot.slane %v5000, %v5013
    %v5015 = vcombine.low %v4959, %v4991
    %v5016 = vcombine.high %v4959, %v4991
    %v5017 = vcombine.low %v4966, %v4998
    %v5018 = vcombine.high %v4966, %v4998
    %v5019 = vcombine.low %v4975, %v5007
    %v5020 = vcombine.high %v4975, %v5007
    %v5021 = vcombine.low %v4982, %v5014
    %v5022 = vcombine.high %v4982, %v5014
    %5025 = vrot.lane.b32.xlu0 %v4880, 4
    %v5026 = vpop.permute.xlu0 %5025
    %5027 = vrot.lane.b32.xlu0 %v5016, 4
    %v5028 = vpop.permute.xlu0 %5027
    %5033 = vrot.lane.b32.xlu0 %v4881, 8
    %v5034 = vpop.permute.xlu0 %5033
    %5035 = vrot.lane.b32.xlu0 %v5017, 8
    %v5036 = vpop.permute.xlu0 %5035
    %5041 = vrot.lane.b32.xlu0 %v4882, 12
    %v5042 = vpop.permute.xlu0 %5041
    %5043 = vrot.lane.b32.xlu0 %v5018, 12
    %v5044 = vpop.permute.xlu0 %5043
    %5049 = vrot.lane.b32.xlu0 %v4883, 16
    %v5050 = vpop.permute.xlu0 %5049
    %5051 = vrot.lane.b32.xlu0 %v5019, 16
    %v5052 = vpop.permute.xlu0 %5051
    %5057 = vrot.lane.b32.xlu0 %v4884, 20
    %v5058 = vpop.permute.xlu0 %5057
    %5059 = vrot.lane.b32.xlu0 %v5020, 20
    %v5060 = vpop.permute.xlu0 %5059
    %5065 = vrot.lane.b32.xlu0 %v4885, 24
    %v5066 = vpop.permute.xlu0 %5065
    %5067 = vrot.lane.b32.xlu0 %v5021, 24
    %v5068 = vpop.permute.xlu0 %5067
    %5073 = vrot.lane.b32.xlu0 %v4886, 28
    %v5074 = vpop.permute.xlu0 %5073
    %5075 = vrot.lane.b32.xlu0 %v5022, 28
    %v5076 = vpop.permute.xlu0 %5075
    %v5079 = vsel %vm1901, %v4879, %v5026
    %v5080 = vsel %vm1901, %v5015, %v5028
    %v5081 = vsel %vm3134, %v5079, %v5034
    %v5082 = vsel %vm3134, %v5080, %v5036
    %vm5083 = vcmask 97280
    %v5084 = vsel %vm5083, %v5081, %v5042
    %v5085 = vsel %vm5083, %v5082, %v5044
    %vm5086 = vcmask 130048
    %v5087 = vsel %vm5086, %v5084, %v5050
    %v5088 = vsel %vm5086, %v5085, %v5052
    %vm5089 = vcmask 162816
    %v5090 = vsel %vm5089, %v5087, %v5058
    %v5091 = vsel %vm5089, %v5088, %v5060
    %vm5092 = vcmask 195584
    %v5093 = vsel %vm5092, %v5090, %v5066
    %v5094 = vsel %vm5092, %v5091, %v5068
    %vm5095 = vcmask 228352
    %v5096 = vsel %vm5095, %v5093, %v5074
    %v5097 = vsel %vm5095, %v5094, %v5076
    %v5098 = vld [vmem:[%s2] sm:$0xff]
    %v5099 = vld [vmem:[%s2 + $0x8] sm:$0xff]
    %v5100 = vld [vmem:[%s2 + $0x10] sm:$0xff]
    %v5101 = vld [vmem:[%s2 + $0x18] sm:$0xff]
    %v5102 = vld [vmem:[%s6] sm:$0x1]
    %v5103 = vlaneseq
    %v5104 = vshrl.u32 %v5103, 7
    %v5105 = vsub.s32 0, %v5104
    %v5106 = vrot.slane %v5102, %v5105
    %v5108 = vsel %vm47, %v5096, 0
    %v5111 = vsel %vm47, %v5097, 0
    %5113 = vmatprep.subr.mxu0 0.0
    %5114 = vmatpush1.msra.mxu0 %v5098
    %5115 = vmatprep.subr.mxu0 0.0
    %5116 = vmatpush1.msra.mxu0 %v5099
    %5117 = vmatprep.subr.mxu0 0.0
    %5118 = vmatpush1.msra.mxu0 %v5100
    %5119 = vmatprep.subr.mxu0 0.0
    %5120 = vmatpush1.msra.mxu0 %v5101
    %5121 = vmatprep.subr.mxu0 0.0
    %5122 = vmatpush1.msra.mxu0 0.0
    %5123 = vmatprep.subr.mxu0 0.0
    %5124 = vmatpush1.msra.mxu0 0.0
    %5125 = vmatprep.subr.mxu0 0.0
    %5126 = vmatpush1.msra.mxu0 0.0
    %5127 = vmatprep.subr.mxu0 0.0
    %5128 = vmatpush1.msra.mxu0 0.0
    %5129 = vmatprep.subr.mxu0 0.0
    %5130 = vmatpush1.msra.mxu0 0.0
    %5131 = vmatprep.subr.mxu0 0.0
    %5132 = vmatpush1.msra.mxu0 0.0
    %5133 = vmatprep.subr.mxu0 0.0
    %5134 = vmatpush1.msra.mxu0 0.0
    %5135 = vmatprep.subr.mxu0 0.0
    %5136 = vmatpush1.msra.mxu0 0.0
    %5137 = vmatprep.subr.mxu0 0.0
    %5138 = vmatpush1.msra.mxu0 0.0
    %5139 = vmatprep.subr.mxu0 0.0
    %5140 = vmatpush1.msra.mxu0 0.0
    %5141 = vmatprep.subr.mxu0 0.0
    %5142 = vmatpush1.msra.mxu0 0.0
    %5143 = vmatprep.subr.mxu0 0.0
    %5144 = vmatpush1.msra.mxu0 0.0
    %5145 = vmatprep.subr.mxu0 0.0
    %5146 = vmatpush1.msra.mxu0 0.0
    %5147 = vmatprep.subr.mxu0 0.0
    %5148 = vmatpush1.msra.mxu0 0.0
    %5149 = vmatprep.subr.mxu0 0.0
    %5150 = vmatpush1.msra.mxu0 0.0
    %5151 = vmatprep.subr.mxu0 0.0
    %5152 = vmatpush1.msra.mxu0 0.0
    %5153 = vmatprep.subr.mxu0 0.0
    %5154 = vmatpush1.msra.mxu0 0.0
    %5155 = vmatprep.subr.mxu0 0.0
    %5156 = vmatpush1.msra.mxu0 0.0
    %5157 = vmatprep.subr.mxu0 0.0
    %5158 = vmatpush1.msra.mxu0 0.0
    %5159 = vmatprep.subr.mxu0 0.0
    %5160 = vmatpush1.msra.mxu0 0.0
    %5161 = vmatprep.subr.mxu0 0.0
    %5162 = vmatpush1.msra.mxu0 0.0
    %5163 = vmatprep.subr.mxu0 0.0
    %5164 = vmatpush1.msra.mxu0 0.0
    %5165 = vmatprep.subr.mxu0 0.0
    %5166 = vmatpush1.msra.mxu0 0.0
    %5167 = vmatprep.subr.mxu0 0.0
    %5168 = vmatpush1.msra.mxu0 0.0
    %5169 = vmatprep.subr.mxu0 0.0
    %5170 = vmatpush1.msra.mxu0 0.0
    %5171 = vmatprep.subr.mxu0 0.0
    %5172 = vmatpush1.msra.mxu0 0.0
    %5173 = vmatprep.subr.mxu0 0.0
    %5174 = vmatpush1.msra.mxu0 0.0
    %5175 = vmatprep.subr.mxu0 0.0
    %5176 = vmatpush1.msra.mxu0 0.0
    %5177 = vmatprep.mubr.f32.mxu0 0.0
    %5178 = vmatmul.mubr.f32.gmra.mrb[0].mxu0 %v5108
    %v5179 = vpop.f32.mrb[0].mxu0
    %v5180 = vadd.f32 %v5106, %v5179
    %v5181 = vpop.f32.mrb[0].mxu0
    %5182 = vmatprep.mubr.f32.mxu0 0.0
    %5183 = vmatmul.mubr.f32.gmra.mrb[0].mxu0 %v5111
    %v5184 = vpop.f32.mrb[0].mxu0
    %v5185 = vadd.f32 %v5106, %v5184
    %v5186 = vpop.f32.mrb[0].mxu0
    %5187 = vdwg.mxu0
    %v5188 = vadd.f32 %v41, %v5180
    %v5189 = vadd.f32 %v42, %v5185
    %v5190 = vld [vmem:[%s6 + $0x1] sm:$0x1]
    %v5191 = vld [vmem:[%s6 + $0x2] sm:$0x1]
    %v5192 = vsel %vm47, %v5188, 0.0
    %5193 = vadd.xlane.f32.xlu0 %v5192
    %v5194 = vpop.xlane.xlu0 %5193
    %v5195 = vsel %vm47, %v5189, 0.0
    %5196 = vadd.xlane.f32.xlu0 %v5195
    %v5197 = vpop.xlane.xlu0 %5196
    %v5198 = vrcp.pop 32.0
    %v5199 = vmul.f32 %v5194, %v5198
    %v5200 = vmul.f32 %v5197, %v5198
    %v5201 = vmul.f32 %v5188, %v5188
    %v5202 = vmul.f32 %v5189, %v5189
    %v5203 = vsel %vm47, %v5201, 0.0
    %5204 = vadd.xlane.f32.xlu0 %v5203
    %v5205 = vpop.xlane.xlu0 %5204
    %v5206 = vsel %vm47, %v5202, 0.0
    %5207 = vadd.xlane.f32.xlu0 %v5206
    %v5208 = vpop.xlane.xlu0 %5207
    %v5209 = vmul.f32 %v5205, %v5198
    %v5210 = vmul.f32 %v5208, %v5198
    %v5211 = vmul.f32 %v5199, %v5199
    %v5212 = vmul.f32 %v5200, %v5200
    %v5213 = vsub.f32 %v5209, %v5211
    %v5214 = vsub.f32 %v5210, %v5212
    %v5215 = vsub.f32 %v5188, %v5199
    %v5216 = vsub.f32 %v5189, %v5200
    %v5217 = vadd.f32 %v5213, 1e-05
    %v5218 = vadd.f32 %v5214, 1e-05
    %v5219 = vrsqrt.pop %v5217
    %v5220 = vrsqrt.pop %v5218
    %v5221 = vmul.f32 %v5215, %v5219
    %v5222 = vmul.f32 %v5216, %v5220
    %v5223 = vlaneseq
    %v5224 = vshrl.u32 %v5223, 7
    %v5225 = vsub.s32 0, %v5224
    %v5226 = vrot.slane %v5190, %v5225
    %v5227 = vmul.f32 %v5221, %v5226
    %v5228 = vmul.f32 %v5222, %v5226
    %v5229 = vlaneseq
    %v5230 = vshrl.u32 %v5229, 7
    %v5231 = vsub.s32 0, %v5230
    %v5232 = vrot.slane %v5191, %v5231
    %v5233 = vadd.f32 %v5227, %v5232
    %v5234 = vadd.f32 %v5228, %v5232
    %v5235 = vld [vmem:[%s3] sm:$0xff]
    %v5236 = vld [vmem:[%s3 + $0x8] sm:$0xff]
    %v5237 = vld [vmem:[%s3 + $0x10] sm:$0xff]
    %v5238 = vld [vmem:[%s3 + $0x18] sm:$0xff]
    %v5239 = vld [vmem:[%s4] sm:$0x1]
    %v5241 = vlaneseq
    %v5242 = vshrl.u32 %v5241, 7
    %v5243 = vsub.s32 0, %v5242
    %v5244 = vrot.slane %v5239, %v5243
    %v5247 = vsel %vm47, %v5233, 0
    %v5250 = vsel %vm47, %v5234, 0
    %5252 = vmatprep.subr.mxu0 0.0
    %5253 = vmatpush1.msra.mxu0 %v5235
    %5254 = vmatprep.subr.mxu0 0.0
    %5255 = vmatpush1.msra.mxu0 %v5236
    %5256 = vmatprep.subr.mxu0 0.0
    %5257 = vmatpush1.msra.mxu0 %v5237
    %5258 = vmatprep.subr.mxu0 0.0
    %5259 = vmatpush1.msra.mxu0 %v5238
    %5260 = vmatprep.subr.mxu0 0.0
    %5261 = vmatpush1.msra.mxu0 0.0
    %5262 = vmatprep.subr.mxu0 0.0
    %5263 = vmatpush1.msra.mxu0 0.0
    %5264 = vmatprep.subr.mxu0 0.0
    %5265 = vmatpush1.msra.mxu0 0.0
    %5266 = vmatprep.subr.mxu0 0.0
    %5267 = vmatpush1.msra.mxu0 0.0
    %5268 = vmatprep.subr.mxu0 0.0
    %5269 = vmatpush1.msra.mxu0 0.0
    %5270 = vmatprep.subr.mxu0 0.0
    %5271 = vmatpush1.msra.mxu0 0.0
    %5272 = vmatprep.subr.mxu0 0.0
    %5273 = vmatpush1.msra.mxu0 0.0
    %5274 = vmatprep.subr.mxu0 0.0
    %5275 = vmatpush1.msra.mxu0 0.0
    %5276 = vmatprep.subr.mxu0 0.0
    %5277 = vmatpush1.msra.mxu0 0.0
    %5278 = vmatprep.subr.mxu0 0.0
    %5279 = vmatpush1.msra.mxu0 0.0
    %5280 = vmatprep.subr.mxu0 0.0
    %5281 = vmatpush1.msra.mxu0 0.0
    %5282 = vmatprep.subr.mxu0 0.0
    %5283 = vmatpush1.msra.mxu0 0.0
    %5284 = vmatprep.subr.mxu0 0.0
    %5285 = vmatpush1.msra.mxu0 0.0
    %5286 = vmatprep.subr.mxu0 0.0
    %5287 = vmatpush1.msra.mxu0 0.0
    %5288 = vmatprep.subr.mxu0 0.0
    %5289 = vmatpush1.msra.mxu0 0.0
    %5290 = vmatprep.subr.mxu0 0.0
    %5291 = vmatpush1.msra.mxu0 0.0
    %5292 = vmatprep.subr.mxu0 0.0
    %5293 = vmatpush1.msra.mxu0 0.0
    %5294 = vmatprep.subr.mxu0 0.0
    %5295 = vmatpush1.msra.mxu0 0.0
    %5296 = vmatprep.subr.mxu0 0.0
    %5297 = vmatpush1.msra.mxu0 0.0
    %5298 = vmatprep.subr.mxu0 0.0
    %5299 = vmatpush1.msra.mxu0 0.0
    %5300 = vmatprep.subr.mxu0 0.0
    %5301 = vmatpush1.msra.mxu0 0.0
    %5302 = vmatprep.subr.mxu0 0.0
    %5303 = vmatpush1.msra.mxu0 0.0
    %5304 = vmatprep.subr.mxu0 0.0
    %5305 = vmatpush1.msra.mxu0 0.0
    %5306 = vmatprep.subr.mxu0 0.0
    %5307 = vmatpush1.msra.mxu0 0.0
    %5308 = vmatprep.subr.mxu0 0.0
    %5309 = vmatpush1.msra.mxu0 0.0
    %5310 = vmatprep.subr.mxu0 0.0
    %5311 = vmatpush1.msra.mxu0 0.0
    %5312 = vmatprep.subr.mxu0 0.0
    %5313 = vmatpush1.msra.mxu0 0.0
    %5314 = vmatprep.subr.mxu0 0.0
    %5315 = vmatpush1.msra.mxu0 0.0
    %5316 = vmatprep.mubr.f32.mxu0 0.0
    %5317 = vmatmul.mubr.f32.gmra.mrb[0].mxu0 %v5247
    %v5318 = vpop.f32.mrb[0].mxu0
    %v5319 = vadd.f32 %v5244, %v5318
    %v5320 = vpop.f32.mrb[0].mxu0
    %5321 = vmatprep.mubr.f32.mxu0 0.0
    %5322 = vmatmul.mubr.f32.gmra.mrb[0].mxu0 %v5250
    %v5323 = vpop.f32.mrb[0].mxu0
    %v5324 = vadd.f32 %v5244, %v5323
    %v5325 = vpop.f32.mrb[0].mxu0
    %5326 = vdwg.mxu0
    %v5327 = vmax.f32 %v5319, 0.0
    %v5328 = vmax.f32 %v5324, 0.0
    %v5329 = vld [vmem:[%s5] sm:$0xff]
    %v5330 = vld [vmem:[%s5 + $0x8] sm:$0xff]
    %v5331 = vld [vmem:[%s5 + $0x10] sm:$0xff]
    %v5332 = vld [vmem:[%s5 + $0x18] sm:$0xff]
    %v5333 = vld [vmem:[%s5 + $0x20] sm:$0xff]
    %v5334 = vld [vmem:[%s5 + $0x28] sm:$0xff]
    %v5335 = vld [vmem:[%s5 + $0x30] sm:$0xff]
    %v5336 = vld [vmem:[%s5 + $0x38] sm:$0xff]
    %v5337 = vld [vmem:[%s6 + $0x5] sm:$0x1]
    %v5338 = vlaneseq
    %v5339 = vshrl.u32 %v5338, 7
    %v5340 = vsub.s32 0, %v5339
    %v5341 = vrot.slane %v5337, %v5340
    %vm5342 = vcmask 523264
    %v5344 = vsel %vm5342, %v5327, 0
    %v5347 = vsel %vm5342, %v5328, 0
    %5349 = vmatprep.subr.mxu0 0.0
    %5350 = vmatpush1.msra.mxu0 %v5329
    %5351 = vmatprep.subr.mxu0 0.0
    %5352 = vmatpush1.msra.mxu0 %v5330
    %5353 = vmatprep.subr.mxu0 0.0
    %5354 = vmatpush1.msra.mxu0 %v5331
    %5355 = vmatprep.subr.mxu0 0.0
    %5356 = vmatpush1.msra.mxu0 %v5332
    %5357 = vmatprep.subr.mxu0 0.0
    %5358 = vmatpush1.msra.mxu0 %v5333
    %5359 = vmatprep.subr.mxu0 0.0
    %5360 = vmatpush1.msra.mxu0 %v5334
    %5361 = vmatprep.subr.mxu0 0.0
    %5362 = vmatpush1.msra.mxu0 %v5335
    %5363 = vmatprep.subr.mxu0 0.0
    %5364 = vmatpush1.msra.mxu0 %v5336
    %5365 = vmatprep.subr.mxu0 0.0
    %5366 = vmatpush1.msra.mxu0 0.0
    %5367 = vmatprep.subr.mxu0 0.0
    %5368 = vmatpush1.msra.mxu0 0.0
    %5369 = vmatprep.subr.mxu0 0.0
    %5370 = vmatpush1.msra.mxu0 0.0
    %5371 = vmatprep.subr.mxu0 0.0
    %5372 = vmatpush1.msra.mxu0 0.0
    %5373 = vmatprep.subr.mxu0 0.0
    %5374 = vmatpush1.msra.mxu0 0.0
    %5375 = vmatprep.subr.mxu0 0.0
    %5376 = vmatpush1.msra.mxu0 0.0
    %5377 = vmatprep.subr.mxu0 0.0
    %5378 = vmatpush1.msra.mxu0 0.0
    %5379 = vmatprep.subr.mxu0 0.0
    %5380 = vmatpush1.msra.mxu0 0.0
    %5381 = vmatprep.subr.mxu0 0.0
    %5382 = vmatpush1.msra.mxu0 0.0
    %5383 = vmatprep.subr.mxu0 0.0
    %5384 = vmatpush1.msra.mxu0 0.0
    %5385 = vmatprep.subr.mxu0 0.0
    %5386 = vmatpush1.msra.mxu0 0.0
    %5387 = vmatprep.subr.mxu0 0.0
    %5388 = vmatpush1.msra.mxu0 0.0
    %5389 = vmatprep.subr.mxu0 0.0
    %5390 = vmatpush1.msra.mxu0 0.0
    %5391 = vmatprep.subr.mxu0 0.0
    %5392 = vmatpush1.msra.mxu0 0.0
    %5393 = vmatprep.subr.mxu0 0.0
    %5394 = vmatpush1.msra.mxu0 0.0
    %5395 = vmatprep.subr.mxu0 0.0
    %5396 = vmatpush1.msra.mxu0 0.0
    %5397 = vmatprep.subr.mxu0 0.0
    %5398 = vmatpush1.msra.mxu0 0.0
    %5399 = vmatprep.subr.mxu0 0.0
    %5400 = vmatpush1.msra.mxu0 0.0
    %5401 = vmatprep.subr.mxu0 0.0
    %5402 = vmatpush1.msra.mxu0 0.0
    %5403 = vmatprep.subr.mxu0 0.0
    %5404 = vmatpush1.msra.mxu0 0.0
    %5405 = vmatprep.subr.mxu0 0.0
    %5406 = vmatpush1.msra.mxu0 0.0
    %5407 = vmatprep.subr.mxu0 0.0
    %5408 = vmatpush1.msra.mxu0 0.0
    %5409 = vmatprep.subr.mxu0 0.0
    %5410 = vmatpush1.msra.mxu0 0.0
    %5411 = vmatprep.subr.mxu0 0.0
    %5412 = vmatpush1.msra.mxu0 0.0
    %5413 = vmatprep.mubr.f32.mxu0 0.0
    %5414 = vmatmul.mubr.f32.gmra.mrb[0].mxu0 %v5344
    %v5415 = vpop.f32.mrb[0].mxu0
    %v5416 = vadd.f32 %v5341, %v5415
    %v5417 = vpop.f32.mrb[0].mxu0
    %5418 = vmatprep.mubr.f32.mxu0 0.0
    %5419 = vmatmul.mubr.f32.gmra.mrb[0].mxu0 %v5347
    %v5420 = vpop.f32.mrb[0].mxu0
    %v5421 = vadd.f32 %v5341, %v5420
    %v5422 = vpop.f32.mrb[0].mxu0
    %5423 = vdwg.mxu0
    %v5424 = vadd.f32 %v5233, %v5416
    %v5425 = vadd.f32 %v5234, %v5421
    %v5426 = vld [vmem:[%s6 + $0x3] sm:$0x1]
    %v5427 = vld [vmem:[%s6 + $0x4] sm:$0x1]
    %v5428 = vsel %vm47, %v5424, 0.0
    %5429 = vadd.xlane.f32.xlu0 %v5428
    %v5430 = vpop.xlane.xlu0 %5429
    %v5431 = vsel %vm47, %v5425, 0.0
    %5432 = vadd.xlane.f32.xlu0 %v5431
    %v5433 = vpop.xlane.xlu0 %5432
    %v5434 = vmul.f32 %v5430, %v5198
    %v5435 = vmul.f32 %v5433, %v5198
    %v5436 = vmul.f32 %v5424, %v5424
    %v5437 = vmul.f32 %v5425, %v5425
    %v5438 = vsel %vm47, %v5436, 0.0
    %5439 = vadd.xlane.f32.xlu0 %v5438
    %v5440 = vpop.xlane.xlu0 %5439
    %v5441 = vsel %vm47, %v5437, 0.0
    %5442 = vadd.xlane.f32.xlu0 %v5441
    %v5443 = vpop.xlane.xlu0 %5442
    %v5444 = vmul.f32 %v5440, %v5198
    %v5445 = vmul.f32 %v5443, %v5198
    %v5446 = vmul.f32 %v5434, %v5434
    %v5447 = vmul.f32 %v5435, %v5435
    %v5448 = vsub.f32 %v5444, %v5446
    %v5449 = vsub.f32 %v5445, %v5447
    %v5450 = vsub.f32 %v5424, %v5434
    %v5451 = vsub.f32 %v5425, %v5435
    %v5452 = vadd.f32 %v5448, 1e-05
    %v5453 = vadd.f32 %v5449, 1e-05
    %v5454 = vrsqrt.pop %v5452
    %v5455 = vrsqrt.pop %v5453
    %v5456 = vmul.f32 %v5450, %v5454
    %v5457 = vmul.f32 %v5451, %v5455
    %v5458 = vlaneseq
    %v5459 = vshrl.u32 %v5458, 7
    %v5460 = vsub.s32 0, %v5459
    %v5461 = vrot.slane %v5426, %v5460
    %v5462 = vmul.f32 %v5456, %v5461
    %v5463 = vmul.f32 %v5457, %v5461
    %v5464 = vlaneseq
    %v5465 = vshrl.u32 %v5464, 7
    %v5466 = vsub.s32 0, %v5465
    %v5467 = vrot.slane %v5427, %v5466
    %v5468 = vadd.f32 %v5462, %v5467
    %v5469 = vadd.f32 %v5463, %v5467
    %5470 = vst.msk [vmem:[#allocation5] sm:$0xff] %vm47, %v5468
    %5471 = vst.msk [vmem:[#allocation5 + $0x8] sm:$0xff] %vm47, %v5469
    // Predicated region
    $region34: #{tpu_custom_call.1} parent=1 // pred_check
      _
    $region35: #{tpu_custom_call.1} parent=1 // pred_check_branch
      %5473 = sbr.rel (0) target = $region37
    $region36: #{tpu_custom_call.1} parent=1 // pred_region
      %s5475 = ssub.s32 256, 256
      %5476 = vsyncadd [#allocation4], %s5475
      %s5477 = sshll.u32 [#allocation5], 4
      %s5478 = int_to_ptr.vmem [resolvable:$true] %s5477
      %5483 = dma.vmem_to_hbm [thread:$0]  %s5478, 256, %s7, [#allocation4], 128, 128, 8
    $region37: #{tpu_custom_call.1} parent=1 // pred_fallthru
      _
    // Predicated region
    $region38: #{tpu_custom_call.1} parent=1 // pred_check
      _
    $region39: #{tpu_custom_call.1} parent=1 // pred_check_branch
      %5485 = sbr.rel (0) target = $region41
    $region40: #{tpu_custom_call.1} parent=1 // pred_region
      %5486 = dma.done [#allocation4], 256
    $region41: #{tpu_custom_call.1} parent=1 // pred_fallthru
      _
    %5487 = vsyncpa [#allocation3], 1
    %5488 = vsyncpa [#allocation4], 1

</llo_original>
